<compile_context>
chip_gen: v7x
topology: tpu7x:2x2x1
jax: 0.10.0
libtpu: 0.0.40
codegen_flags: <defaults>
</compile_context>

<pallas_src>
import functools

import jax
import jax.numpy as jnp
from jax.experimental import pallas as pl
from jax.experimental.pallas import tpu as pltpu


def _decoder_kernel(x_ref, w1_ref, b1_ref, w2_ref, b2_ref, w3_ref, b3_ref, o_ref,
                    *, num_heads, hidden_dim, bins_pad):
    """One grid step = one row-tile through all 12 MLP heads.

    x_ref : (tile_n, D)          action-token column only (gathered by BlockSpec)
    w1_ref: (D, 12H)      bf16   b1_ref: (1, 12H)    f32
    w2_ref: (12, H, H)    bf16   b2_ref: (12, 1, H)  f32
    w3_ref: (12, H, P)    bf16   b3_ref: (12, 1, P)  f32  (-1e9 in the pad bins)
    o_ref : (tile_n, 12P) f32    lane-dense (12P = 384 = 3*128)
    """
    x = x_ref[...].astype(jnp.bfloat16)

    # Layer 1, fused across all heads: dense (D, 12H) -> no wasted MXU work.
    h1 = jnp.dot(x, w1_ref[...], preferred_element_type=jnp.float32) + b1_ref[...]
    h1 = jnp.maximum(h1, 0.0).astype(jnp.bfloat16)

    # Layers 2 & 3, unrolled per head: 12 small dense matmuls instead of one
    # block-diagonal one (~12x less MXU work, O(12*H^2) resident weights).
    # At real sizes (H, bins_pad multiples of 128/256) these lane slices are
    # aligned; at the toy H=32 Mosaic just relayouts the 32-lane windows.
    for i in range(num_heads):
        h1_i = h1[:, i * hidden_dim:(i + 1) * hidden_dim]
        h2_i = (jnp.dot(h1_i, w2_ref[i], preferred_element_type=jnp.float32)
                + b2_ref[i])
        h2_i = jnp.maximum(h2_i, 0.0).astype(jnp.bfloat16)
        # Zero pad-columns in W3 (exact 0 even in bf16) + f32 (-1e9) bias give
        # the exact collate padding value in the padded bins.
        o_ref[:, i * bins_pad:(i + 1) * bins_pad] = (
            jnp.dot(h2_i, w3_ref[i], preferred_element_type=jnp.float32)
            + b3_ref[i])


def run_fused_action_decoder(x_slab, fused_params, *, max_num_objects, embed_dim,
                             max_tile_n=256, min_grid_steps=2,
                             weight_pipeline_mode=None,
                             vmem_limit_bytes=48 * 1024 * 1024):
    """x_slab: [N, (m+1)*D] timestep slabs; fused weights from fuse_params."""
    w1f, b1f, w2f, b2f, w3f, b3f = fused_params
    n, _ = x_slab.shape
    num_heads, hidden_dim, bins_pad = w3f.shape
    dh = num_heads * hidden_dim
    pout = num_heads * bins_pad

    # Row tile: sublane-aligned and small enough that the grid has >=
    # min_grid_steps steps (megacore needs >=2 steps on the "parallel" axis to
    # use both v7x TensorCores, and the DMA pipeline needs something to overlap).
    # max_tile_n=256 keeps the live [tile_n, 12H]/[tile_n, H] intermediates small
    # at real sizes; re-derive together with vmem_limit_bytes per generation.
    per_step = pl.cdiv(n, min_grid_steps)
    tile_n = max(8, min(max_tile_n, ((per_step + 7) // 8) * 8))
    grid = (pl.cdiv(n, tile_n),)

    kernel = functools.partial(_decoder_kernel, num_heads=num_heads,
                               hidden_dim=hidden_dim, bins_pad=bins_pad)

    def resident(shape):
        """Weight spec: same block every grid step -> fetched once, stays in VMEM.

        weight_pipeline_mode=pl.Buffered(1) single-buffers it (halves its VMEM
        footprint); None uses the default double buffering.
        """
        zeros = (0,) * len(shape)
        index_map = lambda i: zeros
        if weight_pipeline_mode is None:
            return pl.BlockSpec(shape, index_map)
        return pl.BlockSpec(shape, index_map, pipeline_mode=weight_pipeline_mode)

    m = max_num_objects
    grid_spec = pltpu.PrefetchScalarGridSpec(
        num_scalar_prefetch=0,
        grid=grid,
        in_specs=[
            # Fused gather: only lane-block (m-1) -- the predicted-action token
            # column -- is DMA'd HBM->VMEM ((m+1)x less input traffic than the
            # whole slab), and the window start (m-1)*D is 128-aligned.
            pl.BlockSpec((tile_n, embed_dim), lambda i: (i, m - 1)),
            resident((embed_dim, dh)),                        # W1 (bf16)
            resident((1, dh)),                                # b1 (f32)
            resident((num_heads, hidden_dim, hidden_dim)),    # W2 stack (bf16)
            resident((num_heads, 1, hidden_dim)),             # b2 stack (f32)
            resident((num_heads, hidden_dim, bins_pad)),      # W3 stack (bf16)
            resident((num_heads, 1, bins_pad)),               # b3 stack (f32, -1e9 pads)
        ],
        out_specs=pl.BlockSpec((tile_n, pout), lambda i: (i, 0)),
    )

    return pl.pallas_call(
        kernel,
        out_shape=jax.ShapeDtypeStruct((n, pout), jnp.float32),
        grid_spec=grid_spec,
        compiler_params=pltpu.CompilerParams(
            dimension_semantics=("parallel",),      # row axis shards across TCs
            vmem_limit_bytes=vmem_limit_bytes),     # above 16/32 MiB scoped defaults
    )(x_slab, w1f, b1f, w2f, b2f, w3f, b3f)


def vima_action_decoder_forward(transformer_output, fused_params, *, max_num_objects,
                                max_bins, max_tile_n=256, weight_pipeline_mode=None):
    """Full VIMAActionDecoder.forward.

    transformer_output: [B, L, D]
    returns logits: [num_axes=12, B, T, max_bins]  (padding value -1e9)
    """
    b, l, d = transformer_output.shape
    m = max_num_objects
    stride = m + 1
    if d % 128 != 0:
        # TODO(synk): non-lane-aligned embed dims would need the whole-slab DMA +
        # in-kernel slice fallback; real VIMA uses D=768, which is aligned.
        raise NotImplementedError("embed_dim must be a multiple of 128")

    t = (l + 1) // stride          # tokens the torch strided slice yields
    l_needed = t * stride
    if l < l_needed:               # rare: pad L so the free reshape is valid
        transformer_output = jnp.pad(
            transformer_output, ((0, 0), (0, l_needed - l), (0, 0)))
    elif l > l_needed:             # trailing rows the slice never selects
        transformer_output = transformer_output[:, :l_needed]

    # Free (metadata-only) reshape: row n = one (batch, timestep) slab of
    # `stride` tokens; the action token is lane-block (m-1), gathered by the
    # input BlockSpec -> no [B,T,D] HBM round-trip, no slab-wide DMA.
    x_slab = transformer_output.reshape(b * t, stride * d)

    out = run_fused_action_decoder(
        x_slab, fused_params, max_num_objects=m, embed_dim=d,
        max_tile_n=max_tile_n, weight_pipeline_mode=weight_pipeline_mode)

    num_heads = fused_params[4].shape[0]
    bins_pad = fused_params[4].shape[2]
    out = out.reshape(b * t, num_heads, bins_pad)[:, :, :max_bins]
    return out.transpose(1, 0, 2).reshape(num_heads, b, t, max_bins)


def make_params(key, *, embed_dim, hidden_dim, axis_dims, scale=0.05):
    """Deterministic per-axis MLP weights (hidden_depth=2), true nbins per head."""
    keys = jax.random.split(key, 6 * len(axis_dims))
    w1s, b1s, w2s, b2s, w3s, b3s = [], [], [], [], [], []
    for i, nb in enumerate(axis_dims):
        k = keys[6 * i:6 * i + 6]
        w1s.append(scale * jax.random.normal(k[0], (embed_dim, hidden_dim), jnp.float32))
        b1s.append(scale * jax.random.normal(k[1], (hidden_dim,), jnp.float32))
        w2s.append(scale * jax.random.normal(k[2], (hidden_dim, hidden_dim), jnp.float32))
        b2s.append(scale * jax.random.normal(k[3], (hidden_dim,), jnp.float32))
        w3s.append(scale * jax.random.normal(k[4], (hidden_dim, nb), jnp.float32))
        b3s.append(scale * jax.random.normal(k[5], (nb,), jnp.float32))
    return (w1s, b1s, w2s, b2s, w3s, b3s)


def fuse_params(per_head, *, axis_dims, bins_pad, pad_value=-1000000000.0,
                matmul_dtype=jnp.bfloat16):
    """Build fused weights once outside jit.

    Layer 1 is concatenated (dense); layers 2/3 are per-head stacks (NOT
    block-diagonal).  Matmul operands are bf16; biases stay f32 so the bias
    adds and the -1e9 collate padding are exact.
    """
    w1s, b1s, w2s, b2s, w3s, b3s = per_head
    num_heads = len(axis_dims)
    h = w1s[0].shape[1]
    w1f = jnp.concatenate(w1s, axis=1).astype(matmul_dtype)           # (D, 12H)
    b1f = jnp.concatenate(b1s, axis=0)[None, :].astype(jnp.float32)   # (1, 12H)
    w2f = jnp.stack(w2s, axis=0).astype(matmul_dtype)                 # (12, H, H)
    b2f = jnp.stack(b2s, axis=0)[:, None, :].astype(jnp.float32)      # (12, 1, H)
    w3f = jnp.zeros((num_heads, h, bins_pad), jnp.float32)
    b3f = jnp.full((num_heads, 1, bins_pad), pad_value, jnp.float32)
    for i, nb in enumerate(axis_dims):
        w3f = w3f.at[i, :, :nb].set(w3s[i])
        b3f = b3f.at[i, 0, :nb].set(b3s[i])
    return (w1f, b1f, w2f, b2f, w3f.astype(matmul_dtype), b3f)


def reference_forward(transformer_output, per_head, *, max_num_objects, axis_dims,
                      pad_value=-1000000000.0):
    """Pure-JAX f32 reference replicating the PyTorch module (for verification)."""
    w1s, b1s, w2s, b2s, w3s, b3s = per_head
    tokens = transformer_output[:, max_num_objects - 1::max_num_objects + 1]  # [B, T, D]
    b, t, d = tokens.shape
    x = tokens.reshape(b * t, d)
    max_bins = max(axis_dims)
    outs = []
    for i, nb in enumerate(axis_dims):
        h1 = jax.nn.relu(x @ w1s[i] + b1s[i])
        h2 = jax.nn.relu(h1 @ w2s[i] + b2s[i])
        logits = h2 @ w3s[i] + b3s[i]                                  # (N, nb)
        padded = jnp.full((b * t, max_bins), pad_value, jnp.float32)
        padded = padded.at[:, :nb].set(logits)
        outs.append(padded.reshape(b, t, max_bins))
    return jnp.stack(outs, axis=0)


if __name__ == "__main__":
    # Small, module-consistent shapes (real VIMA: D=768, larger H/bins).
    B = 2
    max_num_objects = 4
    T = 8                                # timesteps -> N = B*T = 16 -> 2 grid steps
    L = T * (max_num_objects + 1)        # 40; strided slice yields T action tokens
    D = 128                              # transformer embed dim (lane-aligned)
    H = 32                               # action-decoder hidden dim (hidden_depth=2)

    # 12 categorical axes, sorted pose action types.
    axis_dims = [8, 16] + [8] * 4 + [8, 16] + [8] * 4
    num_axes = len(axis_dims)
    max_bins = max(axis_dims)            # 16
    bins_pad = 32                        # per-head pad so 12*32 = 384 = 3*128 lanes
    pad_value = -1000000000.0

    key = jax.random.PRNGKey(0)
    k_x, k_p = jax.random.split(key)
    transformer_output = jax.random.normal(k_x, (B, L, D), jnp.float32)
    per_head = make_params(k_p, embed_dim=D, hidden_dim=H, axis_dims=axis_dims)
    fused = fuse_params(per_head, axis_dims=axis_dims, bins_pad=bins_pad,
                        pad_value=pad_value)

    def make_fwd(weight_pipeline_mode):
        return jax.jit(functools.partial(
            vima_action_decoder_forward, max_num_objects=max_num_objects,
            max_bins=max_bins, weight_pipeline_mode=weight_pipeline_mode))

    try:
        # Preferred: single-buffer the resident (constant-index) weight specs.
        fwd = make_fwd(pl.Buffered(1))
        logits = jax.block_until_ready(fwd(transformer_output, fused))
    except Exception:
        # Fallback for JAX versions where pipeline_mode=Buffered(1) is not
        # accepted on the top-level pallas_call pipeline; identical numerics,
        # the weights just keep the default double buffering.
        fwd = make_fwd(None)
        logits = jax.block_until_ready(fwd(transformer_output, fused))

    ref = reference_forward(transformer_output, per_head,
                            max_num_objects=max_num_objects, axis_dims=axis_dims,
                            pad_value=pad_value)
    assert logits.shape == (num_axes, B, T, max_bins), logits.shape
    max_err = float(jnp.max(jnp.abs(logits - ref)))
    # bf16 matmul operands with f32 accumulation -> small absolute error vs f32 ref.
    assert jnp.allclose(logits, ref, atol=5e-2, rtol=5e-2), max_err

    print("KERNEL_OK")
</pallas_src>

<mosaic_0001>
module attributes {stable_mosaic.version = 11 : i64} {
  func.func @_decoder_kernel(%arg0: i32, %arg1: memref<8x128xf32, #tpu.memory_space<vmem>>, %arg2: memref<128x384xbf16, #tpu.memory_space<vmem>>, %arg3: memref<1x384xf32, #tpu.memory_space<vmem>>, %arg4: memref<12x32x32xbf16, #tpu.memory_space<vmem>>, %arg5: memref<12x1x32xf32, #tpu.memory_space<vmem>>, %arg6: memref<12x32x32xbf16, #tpu.memory_space<vmem>>, %arg7: memref<12x1x32xf32, #tpu.memory_space<vmem>>, %arg8: memref<8x384xf32, #tpu.memory_space<vmem>>) attributes {dimension_semantics = [#tpu.dimension_semantics<parallel>], iteration_bounds = array<i64: 2>, scalar_prefetch = 0 : i64, scratch_operands = 0 : i64, tpu.core_type = #tpu.core_type<tc>, window_params = [{transform_indices = @transform_0, window_bounds = array<i64: 8, 128>}, {pipeline_mode = #tpu.pipeline_mode<synchronous>, transform_indices = @transform_1, window_bounds = array<i64: 128, 384>}, {pipeline_mode = #tpu.pipeline_mode<synchronous>, transform_indices = @transform_2, window_bounds = array<i64: 1, 384>}, {pipeline_mode = #tpu.pipeline_mode<synchronous>, transform_indices = @transform_3, window_bounds = array<i64: 12, 32, 32>}, {pipeline_mode = #tpu.pipeline_mode<synchronous>, transform_indices = @transform_4, window_bounds = array<i64: 12, 1, 32>}, {pipeline_mode = #tpu.pipeline_mode<synchronous>, transform_indices = @transform_5, window_bounds = array<i64: 12, 32, 32>}, {pipeline_mode = #tpu.pipeline_mode<synchronous>, transform_indices = @transform_6, window_bounds = array<i64: 12, 1, 32>}, {transform_indices = @transform_7, window_bounds = array<i64: 8, 384>}]} {
    %c0 = arith.constant 0 : index
    %c0_0 = arith.constant 0 : index
    %0 = vector.load %arg1[%c0, %c0_0] : memref<8x128xf32, #tpu.memory_space<vmem>>, vector<8x128xf32>
    %1 = arith.truncf %0 : vector<8x128xf32> to vector<8x128xbf16>
    %c0_1 = arith.constant 0 : index
    %c0_2 = arith.constant 0 : index
    %2 = vector.load %arg2[%c0_1, %c0_2] : memref<128x384xbf16, #tpu.memory_space<vmem>>, vector<128x384xbf16>
    %cst = arith.constant dense<0.000000e+00> : vector<8x384xf32>
    %3 = tpu.matmul %1, %2, %cst {dimension_numbers = #tpu.dot_dimension_numbers<[1], [0], [0], [1], [0, 0, 1, 1], [], []>} : vector<8x128xbf16>, vector<128x384xbf16>, vector<8x384xf32> -> vector<8x384xf32>
    %c0_3 = arith.constant 0 : index
    %c0_4 = arith.constant 0 : index
    %4 = vector.load %arg3[%c0_3, %c0_4] : memref<1x384xf32, #tpu.memory_space<vmem>>, vector<1x384xf32>
    %5 = vector.broadcast %4 : vector<1x384xf32> to vector<8x384xf32>
    %6 = arith.addf %3, %5 : vector<8x384xf32>
    %cst_5 = arith.constant 0.000000e+00 : f32
    %7 = vector.broadcast %cst_5 : f32 to vector<8x384xf32>
    %8 = arith.maximumf %6, %7 : vector<8x384xf32>
    %9 = arith.truncf %8 : vector<8x384xf32> to vector<8x384xbf16>
    %10 = vector.extract_strided_slice %9 {offsets = [0, 0], sizes = [8, 32], strides = [1, 1]} : vector<8x384xbf16> to vector<8x32xbf16>
    %c0_6 = arith.constant 0 : index
    %c0_7 = arith.constant 0 : index
    %c0_8 = arith.constant 0 : index
    %11 = vector.load %arg4[%c0_6, %c0_7, %c0_8] : memref<12x32x32xbf16, #tpu.memory_space<vmem>>, vector<1x32x32xbf16>
    %12 = vector.shape_cast %11 : vector<1x32x32xbf16> to vector<32x32xbf16>
    %cst_9 = arith.constant dense<0.000000e+00> : vector<8x32xf32>
    %13 = tpu.matmul %10, %12, %cst_9 {dimension_numbers = #tpu.dot_dimension_numbers<[1], [0], [0], [1], [0, 0, 1, 1], [], []>} : vector<8x32xbf16>, vector<32x32xbf16>, vector<8x32xf32> -> vector<8x32xf32>
    %c0_10 = arith.constant 0 : index
    %c0_11 = arith.constant 0 : index
    %c0_12 = arith.constant 0 : index
    %14 = vector.load %arg5[%c0_10, %c0_11, %c0_12] : memref<12x1x32xf32, #tpu.memory_space<vmem>>, vector<1x1x32xf32>
    %15 = vector.shape_cast %14 : vector<1x1x32xf32> to vector<1x32xf32>
    %16 = vector.broadcast %15 : vector<1x32xf32> to vector<8x32xf32>
    %17 = arith.addf %13, %16 : vector<8x32xf32>
    %cst_13 = arith.constant 0.000000e+00 : f32
    %18 = vector.broadcast %cst_13 : f32 to vector<8x32xf32>
    %19 = arith.maximumf %17, %18 : vector<8x32xf32>
    %20 = arith.truncf %19 : vector<8x32xf32> to vector<8x32xbf16>
    %c0_14 = arith.constant 0 : index
    %c0_15 = arith.constant 0 : index
    %c0_16 = arith.constant 0 : index
    %21 = vector.load %arg6[%c0_14, %c0_15, %c0_16] : memref<12x32x32xbf16, #tpu.memory_space<vmem>>, vector<1x32x32xbf16>
    %22 = vector.shape_cast %21 : vector<1x32x32xbf16> to vector<32x32xbf16>
    %cst_17 = arith.constant dense<0.000000e+00> : vector<8x32xf32>
    %23 = tpu.matmul %20, %22, %cst_17 {dimension_numbers = #tpu.dot_dimension_numbers<[1], [0], [0], [1], [0, 0, 1, 1], [], []>} : vector<8x32xbf16>, vector<32x32xbf16>, vector<8x32xf32> -> vector<8x32xf32>
    %c0_18 = arith.constant 0 : index
    %c0_19 = arith.constant 0 : index
    %c0_20 = arith.constant 0 : index
    %24 = vector.load %arg7[%c0_18, %c0_19, %c0_20] : memref<12x1x32xf32, #tpu.memory_space<vmem>>, vector<1x1x32xf32>
    %25 = vector.shape_cast %24 : vector<1x1x32xf32> to vector<1x32xf32>
    %26 = vector.broadcast %25 : vector<1x32xf32> to vector<8x32xf32>
    %27 = arith.addf %23, %26 : vector<8x32xf32>
    %c0_21 = arith.constant 0 : index
    %c0_22 = arith.constant 0 : index
    %28 = vector.load %arg8[%c0_21, %c0_22] : memref<8x384xf32, #tpu.memory_space<vmem>>, vector<8x32xf32>
    tpu.vector_store %arg8[%c0_21, %c0_22], %27 {strides = array<i32>} : memref<8x384xf32, #tpu.memory_space<vmem>>, vector<8x32xf32>,
    %29 = vector.extract_strided_slice %9 {offsets = [0, 32], sizes = [8, 32], strides = [1, 1]} : vector<8x384xbf16> to vector<8x32xbf16>
    %c1 = arith.constant 1 : index
    %c0_23 = arith.constant 0 : index
    %c0_24 = arith.constant 0 : index
    %30 = vector.load %arg4[%c1, %c0_23, %c0_24] : memref<12x32x32xbf16, #tpu.memory_space<vmem>>, vector<1x32x32xbf16>
    %31 = vector.shape_cast %30 : vector<1x32x32xbf16> to vector<32x32xbf16>
    %cst_25 = arith.constant dense<0.000000e+00> : vector<8x32xf32>
    %32 = tpu.matmul %29, %31, %cst_25 {dimension_numbers = #tpu.dot_dimension_numbers<[1], [0], [0], [1], [0, 0, 1, 1], [], []>} : vector<8x32xbf16>, vector<32x32xbf16>, vector<8x32xf32> -> vector<8x32xf32>
    %c1_26 = arith.constant 1 : index
    %c0_27 = arith.constant 0 : index
    %c0_28 = arith.constant 0 : index
    %33 = vector.load %arg5[%c1_26, %c0_27, %c0_28] : memref<12x1x32xf32, #tpu.memory_space<vmem>>, vector<1x1x32xf32>
    %34 = vector.shape_cast %33 : vector<1x1x32xf32> to vector<1x32xf32>
    %35 = vector.broadcast %34 : vector<1x32xf32> to vector<8x32xf32>
    %36 = arith.addf %32, %35 : vector<8x32xf32>
    %cst_29 = arith.constant 0.000000e+00 : f32
    %37 = vector.broadcast %cst_29 : f32 to vector<8x32xf32>
    %38 = arith.maximumf %36, %37 : vector<8x32xf32>
    %39 = arith.truncf %38 : vector<8x32xf32> to vector<8x32xbf16>
    %c1_30 = arith.constant 1 : index
    %c0_31 = arith.constant 0 : index
    %c0_32 = arith.constant 0 : index
    %40 = vector.load %arg6[%c1_30, %c0_31, %c0_32] : memref<12x32x32xbf16, #tpu.memory_space<vmem>>, vector<1x32x32xbf16>
    %41 = vector.shape_cast %40 : vector<1x32x32xbf16> to vector<32x32xbf16>
    %cst_33 = arith.constant dense<0.000000e+00> : vector<8x32xf32>
    %42 = tpu.matmul %39, %41, %cst_33 {dimension_numbers = #tpu.dot_dimension_numbers<[1], [0], [0], [1], [0, 0, 1, 1], [], []>} : vector<8x32xbf16>, vector<32x32xbf16>, vector<8x32xf32> -> vector<8x32xf32>
    %c1_34 = arith.constant 1 : index
    %c0_35 = arith.constant 0 : index
    %c0_36 = arith.constant 0 : index
    %43 = vector.load %arg7[%c1_34, %c0_35, %c0_36] : memref<12x1x32xf32, #tpu.memory_space<vmem>>, vector<1x1x32xf32>
    %44 = vector.shape_cast %43 : vector<1x1x32xf32> to vector<1x32xf32>
    %45 = vector.broadcast %44 : vector<1x32xf32> to vector<8x32xf32>
    %46 = arith.addf %42, %45 : vector<8x32xf32>
    %c0_37 = arith.constant 0 : index
    %c32 = arith.constant 32 : index
    %47 = vector.load %arg8[%c0_37, %c32] : memref<8x384xf32, #tpu.memory_space<vmem>>, vector<8x32xf32>
    tpu.vector_store %arg8[%c0_37, %c32], %46 {strides = array<i32>} : memref<8x384xf32, #tpu.memory_space<vmem>>, vector<8x32xf32>,
    %48 = vector.extract_strided_slice %9 {offsets = [0, 64], sizes = [8, 32], strides = [1, 1]} : vector<8x384xbf16> to vector<8x32xbf16>
    %c2 = arith.constant 2 : index
    %c0_38 = arith.constant 0 : index
    %c0_39 = arith.constant 0 : index
    %49 = vector.load %arg4[%c2, %c0_38, %c0_39] : memref<12x32x32xbf16, #tpu.memory_space<vmem>>, vector<1x32x32xbf16>
    %50 = vector.shape_cast %49 : vector<1x32x32xbf16> to vector<32x32xbf16>
    %cst_40 = arith.constant dense<0.000000e+00> : vector<8x32xf32>
    %51 = tpu.matmul %48, %50, %cst_40 {dimension_numbers = #tpu.dot_dimension_numbers<[1], [0], [0], [1], [0, 0, 1, 1], [], []>} : vector<8x32xbf16>, vector<32x32xbf16>, vector<8x32xf32> -> vector<8x32xf32>
    %c2_41 = arith.constant 2 : index
    %c0_42 = arith.constant 0 : index
    %c0_43 = arith.constant 0 : index
    %52 = vector.load %arg5[%c2_41, %c0_42, %c0_43] : memref<12x1x32xf32, #tpu.memory_space<vmem>>, vector<1x1x32xf32>
    %53 = vector.shape_cast %52 : vector<1x1x32xf32> to vector<1x32xf32>
    %54 = vector.broadcast %53 : vector<1x32xf32> to vector<8x32xf32>
    %55 = arith.addf %51, %54 : vector<8x32xf32>
    %cst_44 = arith.constant 0.000000e+00 : f32
    %56 = vector.broadcast %cst_44 : f32 to vector<8x32xf32>
    %57 = arith.maximumf %55, %56 : vector<8x32xf32>
    %58 = arith.truncf %57 : vector<8x32xf32> to vector<8x32xbf16>
    %c2_45 = arith.constant 2 : index
    %c0_46 = arith.constant 0 : index
    %c0_47 = arith.constant 0 : index
    %59 = vector.load %arg6[%c2_45, %c0_46, %c0_47] : memref<12x32x32xbf16, #tpu.memory_space<vmem>>, vector<1x32x32xbf16>
    %60 = vector.shape_cast %59 : vector<1x32x32xbf16> to vector<32x32xbf16>
    %cst_48 = arith.constant dense<0.000000e+00> : vector<8x32xf32>
    %61 = tpu.matmul %58, %60, %cst_48 {dimension_numbers = #tpu.dot_dimension_numbers<[1], [0], [0], [1], [0, 0, 1, 1], [], []>} : vector<8x32xbf16>, vector<32x32xbf16>, vector<8x32xf32> -> vector<8x32xf32>
    %c2_49 = arith.constant 2 : index
    %c0_50 = arith.constant 0 : index
    %c0_51 = arith.constant 0 : index
    %62 = vector.load %arg7[%c2_49, %c0_50, %c0_51] : memref<12x1x32xf32, #tpu.memory_space<vmem>>, vector<1x1x32xf32>
    %63 = vector.shape_cast %62 : vector<1x1x32xf32> to vector<1x32xf32>
    %64 = vector.broadcast %63 : vector<1x32xf32> to vector<8x32xf32>
    %65 = arith.addf %61, %64 : vector<8x32xf32>
    %c0_52 = arith.constant 0 : index
    %c64 = arith.constant 64 : index
    %66 = vector.load %arg8[%c0_52, %c64] : memref<8x384xf32, #tpu.memory_space<vmem>>, vector<8x32xf32>
    tpu.vector_store %arg8[%c0_52, %c64], %65 {strides = array<i32>} : memref<8x384xf32, #tpu.memory_space<vmem>>, vector<8x32xf32>,
    %67 = vector.extract_strided_slice %9 {offsets = [0, 96], sizes = [8, 32], strides = [1, 1]} : vector<8x384xbf16> to vector<8x32xbf16>
    %c3 = arith.constant 3 : index
    %c0_53 = arith.constant 0 : index
    %c0_54 = arith.constant 0 : index
    %68 = vector.load %arg4[%c3, %c0_53, %c0_54] : memref<12x32x32xbf16, #tpu.memory_space<vmem>>, vector<1x32x32xbf16>
    %69 = vector.shape_cast %68 : vector<1x32x32xbf16> to vector<32x32xbf16>
    %cst_55 = arith.constant dense<0.000000e+00> : vector<8x32xf32>
    %70 = tpu.matmul %67, %69, %cst_55 {dimension_numbers = #tpu.dot_dimension_numbers<[1], [0], [0], [1], [0, 0, 1, 1], [], []>} : vector<8x32xbf16>, vector<32x32xbf16>, vector<8x32xf32> -> vector<8x32xf32>
    %c3_56 = arith.constant 3 : index
    %c0_57 = arith.constant 0 : index
    %c0_58 = arith.constant 0 : index
    %71 = vector.load %arg5[%c3_56, %c0_57, %c0_58] : memref<12x1x32xf32, #tpu.memory_space<vmem>>, vector<1x1x32xf32>
    %72 = vector.shape_cast %71 : vector<1x1x32xf32> to vector<1x32xf32>
    %73 = vector.broadcast %72 : vector<1x32xf32> to vector<8x32xf32>
    %74 = arith.addf %70, %73 : vector<8x32xf32>
    %cst_59 = arith.constant 0.000000e+00 : f32
    %75 = vector.broadcast %cst_59 : f32 to vector<8x32xf32>
    %76 = arith.maximumf %74, %75 : vector<8x32xf32>
    %77 = arith.truncf %76 : vector<8x32xf32> to vector<8x32xbf16>
    %c3_60 = arith.constant 3 : index
    %c0_61 = arith.constant 0 : index
    %c0_62 = arith.constant 0 : index
    %78 = vector.load %arg6[%c3_60, %c0_61, %c0_62] : memref<12x32x32xbf16, #tpu.memory_space<vmem>>, vector<1x32x32xbf16>
    %79 = vector.shape_cast %78 : vector<1x32x32xbf16> to vector<32x32xbf16>
    %cst_63 = arith.constant dense<0.000000e+00> : vector<8x32xf32>
    %80 = tpu.matmul %77, %79, %cst_63 {dimension_numbers = #tpu.dot_dimension_numbers<[1], [0], [0], [1], [0, 0, 1, 1], [], []>} : vector<8x32xbf16>, vector<32x32xbf16>, vector<8x32xf32> -> vector<8x32xf32>
    %c3_64 = arith.constant 3 : index
    %c0_65 = arith.constant 0 : index
    %c0_66 = arith.constant 0 : index
    %81 = vector.load %arg7[%c3_64, %c0_65, %c0_66] : memref<12x1x32xf32, #tpu.memory_space<vmem>>, vector<1x1x32xf32>
    %82 = vector.shape_cast %81 : vector<1x1x32xf32> to vector<1x32xf32>
    %83 = vector.broadcast %82 : vector<1x32xf32> to vector<8x32xf32>
    %84 = arith.addf %80, %83 : vector<8x32xf32>
    %c0_67 = arith.constant 0 : index
    %c96 = arith.constant 96 : index
    %85 = vector.load %arg8[%c0_67, %c96] : memref<8x384xf32, #tpu.memory_space<vmem>>, vector<8x32xf32>
    tpu.vector_store %arg8[%c0_67, %c96], %84 {strides = array<i32>} : memref<8x384xf32, #tpu.memory_space<vmem>>, vector<8x32xf32>,
    %86 = vector.extract_strided_slice %9 {offsets = [0, 128], sizes = [8, 32], strides = [1, 1]} : vector<8x384xbf16> to vector<8x32xbf16>
    %c4 = arith.constant 4 : index
    %c0_68 = arith.constant 0 : index
    %c0_69 = arith.constant 0 : index
    %87 = vector.load %arg4[%c4, %c0_68, %c0_69] : memref<12x32x32xbf16, #tpu.memory_space<vmem>>, vector<1x32x32xbf16>
    %88 = vector.shape_cast %87 : vector<1x32x32xbf16> to vector<32x32xbf16>
    %cst_70 = arith.constant dense<0.000000e+00> : vector<8x32xf32>
    %89 = tpu.matmul %86, %88, %cst_70 {dimension_numbers = #tpu.dot_dimension_numbers<[1], [0], [0], [1], [0, 0, 1, 1], [], []>} : vector<8x32xbf16>, vector<32x32xbf16>, vector<8x32xf32> -> vector<8x32xf32>
    %c4_71 = arith.constant 4 : index
    %c0_72 = arith.constant 0 : index
    %c0_73 = arith.constant 0 : index
    %90 = vector.load %arg5[%c4_71, %c0_72, %c0_73] : memref<12x1x32xf32, #tpu.memory_space<vmem>>, vector<1x1x32xf32>
    %91 = vector.shape_cast %90 : vector<1x1x32xf32> to vector<1x32xf32>
    %92 = vector.broadcast %91 : vector<1x32xf32> to vector<8x32xf32>
    %93 = arith.addf %89, %92 : vector<8x32xf32>
    %cst_74 = arith.constant 0.000000e+00 : f32
    %94 = vector.broadcast %cst_74 : f32 to vector<8x32xf32>
    %95 = arith.maximumf %93, %94 : vector<8x32xf32>
    %96 = arith.truncf %95 : vector<8x32xf32> to vector<8x32xbf16>
    %c4_75 = arith.constant 4 : index
    %c0_76 = arith.constant 0 : index
    %c0_77 = arith.constant 0 : index
    %97 = vector.load %arg6[%c4_75, %c0_76, %c0_77] : memref<12x32x32xbf16, #tpu.memory_space<vmem>>, vector<1x32x32xbf16>
    %98 = vector.shape_cast %97 : vector<1x32x32xbf16> to vector<32x32xbf16>
    %cst_78 = arith.constant dense<0.000000e+00> : vector<8x32xf32>
    %99 = tpu.matmul %96, %98, %cst_78 {dimension_numbers = #tpu.dot_dimension_numbers<[1], [0], [0], [1], [0, 0, 1, 1], [], []>} : vector<8x32xbf16>, vector<32x32xbf16>, vector<8x32xf32> -> vector<8x32xf32>
    %c4_79 = arith.constant 4 : index
    %c0_80 = arith.constant 0 : index
    %c0_81 = arith.constant 0 : index
    %100 = vector.load %arg7[%c4_79, %c0_80, %c0_81] : memref<12x1x32xf32, #tpu.memory_space<vmem>>, vector<1x1x32xf32>
    %101 = vector.shape_cast %100 : vector<1x1x32xf32> to vector<1x32xf32>
    %102 = vector.broadcast %101 : vector<1x32xf32> to vector<8x32xf32>
    %103 = arith.addf %99, %102 : vector<8x32xf32>
    %c0_82 = arith.constant 0 : index
    %c128 = arith.constant 128 : index
    %104 = vector.load %arg8[%c0_82, %c128] : memref<8x384xf32, #tpu.memory_space<vmem>>, vector<8x32xf32>
    tpu.vector_store %arg8[%c0_82, %c128], %103 {strides = array<i32>} : memref<8x384xf32, #tpu.memory_space<vmem>>, vector<8x32xf32>,
    %105 = vector.extract_strided_slice %9 {offsets = [0, 160], sizes = [8, 32], strides = [1, 1]} : vector<8x384xbf16> to vector<8x32xbf16>
    %c5 = arith.constant 5 : index
    %c0_83 = arith.constant 0 : index
    %c0_84 = arith.constant 0 : index
    %106 = vector.load %arg4[%c5, %c0_83, %c0_84] : memref<12x32x32xbf16, #tpu.memory_space<vmem>>, vector<1x32x32xbf16>
    %107 = vector.shape_cast %106 : vector<1x32x32xbf16> to vector<32x32xbf16>
    %cst_85 = arith.constant dense<0.000000e+00> : vector<8x32xf32>
    %108 = tpu.matmul %105, %107, %cst_85 {dimension_numbers = #tpu.dot_dimension_numbers<[1], [0], [0], [1], [0, 0, 1, 1], [], []>} : vector<8x32xbf16>, vector<32x32xbf16>, vector<8x32xf32> -> vector<8x32xf32>
    %c5_86 = arith.constant 5 : index
    %c0_87 = arith.constant 0 : index
    %c0_88 = arith.constant 0 : index
    %109 = vector.load %arg5[%c5_86, %c0_87, %c0_88] : memref<12x1x32xf32, #tpu.memory_space<vmem>>, vector<1x1x32xf32>
    %110 = vector.shape_cast %109 : vector<1x1x32xf32> to vector<1x32xf32>
    %111 = vector.broadcast %110 : vector<1x32xf32> to vector<8x32xf32>
    %112 = arith.addf %108, %111 : vector<8x32xf32>
    %cst_89 = arith.constant 0.000000e+00 : f32
    %113 = vector.broadcast %cst_89 : f32 to vector<8x32xf32>
    %114 = arith.maximumf %112, %113 : vector<8x32xf32>
    %115 = arith.truncf %114 : vector<8x32xf32> to vector<8x32xbf16>
    %c5_90 = arith.constant 5 : index
    %c0_91 = arith.constant 0 : index
    %c0_92 = arith.constant 0 : index
    %116 = vector.load %arg6[%c5_90, %c0_91, %c0_92] : memref<12x32x32xbf16, #tpu.memory_space<vmem>>, vector<1x32x32xbf16>
    %117 = vector.shape_cast %116 : vector<1x32x32xbf16> to vector<32x32xbf16>
    %cst_93 = arith.constant dense<0.000000e+00> : vector<8x32xf32>
    %118 = tpu.matmul %115, %117, %cst_93 {dimension_numbers = #tpu.dot_dimension_numbers<[1], [0], [0], [1], [0, 0, 1, 1], [], []>} : vector<8x32xbf16>, vector<32x32xbf16>, vector<8x32xf32> -> vector<8x32xf32>
    %c5_94 = arith.constant 5 : index
    %c0_95 = arith.constant 0 : index
    %c0_96 = arith.constant 0 : index
    %119 = vector.load %arg7[%c5_94, %c0_95, %c0_96] : memref<12x1x32xf32, #tpu.memory_space<vmem>>, vector<1x1x32xf32>
    %120 = vector.shape_cast %119 : vector<1x1x32xf32> to vector<1x32xf32>
    %121 = vector.broadcast %120 : vector<1x32xf32> to vector<8x32xf32>
    %122 = arith.addf %118, %121 : vector<8x32xf32>
    %c0_97 = arith.constant 0 : index
    %c160 = arith.constant 160 : index
    %123 = vector.load %arg8[%c0_97, %c160] : memref<8x384xf32, #tpu.memory_space<vmem>>, vector<8x32xf32>
    tpu.vector_store %arg8[%c0_97, %c160], %122 {strides = array<i32>} : memref<8x384xf32, #tpu.memory_space<vmem>>, vector<8x32xf32>,
    %124 = vector.extract_strided_slice %9 {offsets = [0, 192], sizes = [8, 32], strides = [1, 1]} : vector<8x384xbf16> to vector<8x32xbf16>
    %c6 = arith.constant 6 : index
    %c0_98 = arith.constant 0 : index
    %c0_99 = arith.constant 0 : index
    %125 = vector.load %arg4[%c6, %c0_98, %c0_99] : memref<12x32x32xbf16, #tpu.memory_space<vmem>>, vector<1x32x32xbf16>
    %126 = vector.shape_cast %125 : vector<1x32x32xbf16> to vector<32x32xbf16>
    %cst_100 = arith.constant dense<0.000000e+00> : vector<8x32xf32>
    %127 = tpu.matmul %124, %126, %cst_100 {dimension_numbers = #tpu.dot_dimension_numbers<[1], [0], [0], [1], [0, 0, 1, 1], [], []>} : vector<8x32xbf16>, vector<32x32xbf16>, vector<8x32xf32> -> vector<8x32xf32>
    %c6_101 = arith.constant 6 : index
    %c0_102 = arith.constant 0 : index
    %c0_103 = arith.constant 0 : index
    %128 = vector.load %arg5[%c6_101, %c0_102, %c0_103] : memref<12x1x32xf32, #tpu.memory_space<vmem>>, vector<1x1x32xf32>
    %129 = vector.shape_cast %128 : vector<1x1x32xf32> to vector<1x32xf32>
    %130 = vector.broadcast %129 : vector<1x32xf32> to vector<8x32xf32>
    %131 = arith.addf %127, %130 : vector<8x32xf32>
    %cst_104 = arith.constant 0.000000e+00 : f32
    %132 = vector.broadcast %cst_104 : f32 to vector<8x32xf32>
    %133 = arith.maximumf %131, %132 : vector<8x32xf32>
    %134 = arith.truncf %133 : vector<8x32xf32> to vector<8x32xbf16>
    %c6_105 = arith.constant 6 : index
    %c0_106 = arith.constant 0 : index
    %c0_107 = arith.constant 0 : index
    %135 = vector.load %arg6[%c6_105, %c0_106, %c0_107] : memref<12x32x32xbf16, #tpu.memory_space<vmem>>, vector<1x32x32xbf16>
    %136 = vector.shape_cast %135 : vector<1x32x32xbf16> to vector<32x32xbf16>
    %cst_108 = arith.constant dense<0.000000e+00> : vector<8x32xf32>
    %137 = tpu.matmul %134, %136, %cst_108 {dimension_numbers = #tpu.dot_dimension_numbers<[1], [0], [0], [1], [0, 0, 1, 1], [], []>} : vector<8x32xbf16>, vector<32x32xbf16>, vector<8x32xf32> -> vector<8x32xf32>
    %c6_109 = arith.constant 6 : index
    %c0_110 = arith.constant 0 : index
    %c0_111 = arith.constant 0 : index
    %138 = vector.load %arg7[%c6_109, %c0_110, %c0_111] : memref<12x1x32xf32, #tpu.memory_space<vmem>>, vector<1x1x32xf32>
    %139 = vector.shape_cast %138 : vector<1x1x32xf32> to vector<1x32xf32>
    %140 = vector.broadcast %139 : vector<1x32xf32> to vector<8x32xf32>
    %141 = arith.addf %137, %140 : vector<8x32xf32>
    %c0_112 = arith.constant 0 : index
    %c192 = arith.constant 192 : index
    %142 = vector.load %arg8[%c0_112, %c192] : memref<8x384xf32, #tpu.memory_space<vmem>>, vector<8x32xf32>
    tpu.vector_store %arg8[%c0_112, %c192], %141 {strides = array<i32>} : memref<8x384xf32, #tpu.memory_space<vmem>>, vector<8x32xf32>,
    %143 = vector.extract_strided_slice %9 {offsets = [0, 224], sizes = [8, 32], strides = [1, 1]} : vector<8x384xbf16> to vector<8x32xbf16>
    %c7 = arith.constant 7 : index
    %c0_113 = arith.constant 0 : index
    %c0_114 = arith.constant 0 : index
    %144 = vector.load %arg4[%c7, %c0_113, %c0_114] : memref<12x32x32xbf16, #tpu.memory_space<vmem>>, vector<1x32x32xbf16>
    %145 = vector.shape_cast %144 : vector<1x32x32xbf16> to vector<32x32xbf16>
    %cst_115 = arith.constant dense<0.000000e+00> : vector<8x32xf32>
    %146 = tpu.matmul %143, %145, %cst_115 {dimension_numbers = #tpu.dot_dimension_numbers<[1], [0], [0], [1], [0, 0, 1, 1], [], []>} : vector<8x32xbf16>, vector<32x32xbf16>, vector<8x32xf32> -> vector<8x32xf32>
    %c7_116 = arith.constant 7 : index
    %c0_117 = arith.constant 0 : index
    %c0_118 = arith.constant 0 : index
    %147 = vector.load %arg5[%c7_116, %c0_117, %c0_118] : memref<12x1x32xf32, #tpu.memory_space<vmem>>, vector<1x1x32xf32>
    %148 = vector.shape_cast %147 : vector<1x1x32xf32> to vector<1x32xf32>
    %149 = vector.broadcast %148 : vector<1x32xf32> to vector<8x32xf32>
    %150 = arith.addf %146, %149 : vector<8x32xf32>
    %cst_119 = arith.constant 0.000000e+00 : f32
    %151 = vector.broadcast %cst_119 : f32 to vector<8x32xf32>
    %152 = arith.maximumf %150, %151 : vector<8x32xf32>
    %153 = arith.truncf %152 : vector<8x32xf32> to vector<8x32xbf16>
    %c7_120 = arith.constant 7 : index
    %c0_121 = arith.constant 0 : index
    %c0_122 = arith.constant 0 : index
    %154 = vector.load %arg6[%c7_120, %c0_121, %c0_122] : memref<12x32x32xbf16, #tpu.memory_space<vmem>>, vector<1x32x32xbf16>
    %155 = vector.shape_cast %154 : vector<1x32x32xbf16> to vector<32x32xbf16>
    %cst_123 = arith.constant dense<0.000000e+00> : vector<8x32xf32>
    %156 = tpu.matmul %153, %155, %cst_123 {dimension_numbers = #tpu.dot_dimension_numbers<[1], [0], [0], [1], [0, 0, 1, 1], [], []>} : vector<8x32xbf16>, vector<32x32xbf16>, vector<8x32xf32> -> vector<8x32xf32>
    %c7_124 = arith.constant 7 : index
    %c0_125 = arith.constant 0 : index
    %c0_126 = arith.constant 0 : index
    %157 = vector.load %arg7[%c7_124, %c0_125, %c0_126] : memref<12x1x32xf32, #tpu.memory_space<vmem>>, vector<1x1x32xf32>
    %158 = vector.shape_cast %157 : vector<1x1x32xf32> to vector<1x32xf32>
    %159 = vector.broadcast %158 : vector<1x32xf32> to vector<8x32xf32>
    %160 = arith.addf %156, %159 : vector<8x32xf32>
    %c0_127 = arith.constant 0 : index
    %c224 = arith.constant 224 : index
    %161 = vector.load %arg8[%c0_127, %c224] : memref<8x384xf32, #tpu.memory_space<vmem>>, vector<8x32xf32>
    tpu.vector_store %arg8[%c0_127, %c224], %160 {strides = array<i32>} : memref<8x384xf32, #tpu.memory_space<vmem>>, vector<8x32xf32>,
    %162 = vector.extract_strided_slice %9 {offsets = [0, 256], sizes = [8, 32], strides = [1, 1]} : vector<8x384xbf16> to vector<8x32xbf16>
    %c8 = arith.constant 8 : index
    %c0_128 = arith.constant 0 : index
    %c0_129 = arith.constant 0 : index
    %163 = vector.load %arg4[%c8, %c0_128, %c0_129] : memref<12x32x32xbf16, #tpu.memory_space<vmem>>, vector<1x32x32xbf16>
    %164 = vector.shape_cast %163 : vector<1x32x32xbf16> to vector<32x32xbf16>
    %cst_130 = arith.constant dense<0.000000e+00> : vector<8x32xf32>
    %165 = tpu.matmul %162, %164, %cst_130 {dimension_numbers = #tpu.dot_dimension_numbers<[1], [0], [0], [1], [0, 0, 1, 1], [], []>} : vector<8x32xbf16>, vector<32x32xbf16>, vector<8x32xf32> -> vector<8x32xf32>
    %c8_131 = arith.constant 8 : index
    %c0_132 = arith.constant 0 : index
    %c0_133 = arith.constant 0 : index
    %166 = vector.load %arg5[%c8_131, %c0_132, %c0_133] : memref<12x1x32xf32, #tpu.memory_space<vmem>>, vector<1x1x32xf32>
    %167 = vector.shape_cast %166 : vector<1x1x32xf32> to vector<1x32xf32>
    %168 = vector.broadcast %167 : vector<1x32xf32> to vector<8x32xf32>
    %169 = arith.addf %165, %168 : vector<8x32xf32>
    %cst_134 = arith.constant 0.000000e+00 : f32
    %170 = vector.broadcast %cst_134 : f32 to vector<8x32xf32>
    %171 = arith.maximumf %169, %170 : vector<8x32xf32>
    %172 = arith.truncf %171 : vector<8x32xf32> to vector<8x32xbf16>
    %c8_135 = arith.constant 8 : index
    %c0_136 = arith.constant 0 : index
    %c0_137 = arith.constant 0 : index
    %173 = vector.load %arg6[%c8_135, %c0_136, %c0_137] : memref<12x32x32xbf16, #tpu.memory_space<vmem>>, vector<1x32x32xbf16>
    %174 = vector.shape_cast %173 : vector<1x32x32xbf16> to vector<32x32xbf16>
    %cst_138 = arith.constant dense<0.000000e+00> : vector<8x32xf32>
    %175 = tpu.matmul %172, %174, %cst_138 {dimension_numbers = #tpu.dot_dimension_numbers<[1], [0], [0], [1], [0, 0, 1, 1], [], []>} : vector<8x32xbf16>, vector<32x32xbf16>, vector<8x32xf32> -> vector<8x32xf32>
    %c8_139 = arith.constant 8 : index
    %c0_140 = arith.constant 0 : index
    %c0_141 = arith.constant 0 : index
    %176 = vector.load %arg7[%c8_139, %c0_140, %c0_141] : memref<12x1x32xf32, #tpu.memory_space<vmem>>, vector<1x1x32xf32>
    %177 = vector.shape_cast %176 : vector<1x1x32xf32> to vector<1x32xf32>
    %178 = vector.broadcast %177 : vector<1x32xf32> to vector<8x32xf32>
    %179 = arith.addf %175, %178 : vector<8x32xf32>
    %c0_142 = arith.constant 0 : index
    %c256 = arith.constant 256 : index
    %180 = vector.load %arg8[%c0_142, %c256] : memref<8x384xf32, #tpu.memory_space<vmem>>, vector<8x32xf32>
    tpu.vector_store %arg8[%c0_142, %c256], %179 {strides = array<i32>} : memref<8x384xf32, #tpu.memory_space<vmem>>, vector<8x32xf32>,
    %181 = vector.extract_strided_slice %9 {offsets = [0, 288], sizes = [8, 32], strides = [1, 1]} : vector<8x384xbf16> to vector<8x32xbf16>
    %c9 = arith.constant 9 : index
    %c0_143 = arith.constant 0 : index
    %c0_144 = arith.constant 0 : index
    %182 = vector.load %arg4[%c9, %c0_143, %c0_144] : memref<12x32x32xbf16, #tpu.memory_space<vmem>>, vector<1x32x32xbf16>
    %183 = vector.shape_cast %182 : vector<1x32x32xbf16> to vector<32x32xbf16>
    %cst_145 = arith.constant dense<0.000000e+00> : vector<8x32xf32>
    %184 = tpu.matmul %181, %183, %cst_145 {dimension_numbers = #tpu.dot_dimension_numbers<[1], [0], [0], [1], [0, 0, 1, 1], [], []>} : vector<8x32xbf16>, vector<32x32xbf16>, vector<8x32xf32> -> vector<8x32xf32>
    %c9_146 = arith.constant 9 : index
    %c0_147 = arith.constant 0 : index
    %c0_148 = arith.constant 0 : index
    %185 = vector.load %arg5[%c9_146, %c0_147, %c0_148] : memref<12x1x32xf32, #tpu.memory_space<vmem>>, vector<1x1x32xf32>
    %186 = vector.shape_cast %185 : vector<1x1x32xf32> to vector<1x32xf32>
    %187 = vector.broadcast %186 : vector<1x32xf32> to vector<8x32xf32>
    %188 = arith.addf %184, %187 : vector<8x32xf32>
    %cst_149 = arith.constant 0.000000e+00 : f32
    %189 = vector.broadcast %cst_149 : f32 to vector<8x32xf32>
    %190 = arith.maximumf %188, %189 : vector<8x32xf32>
    %191 = arith.truncf %190 : vector<8x32xf32> to vector<8x32xbf16>
    %c9_150 = arith.constant 9 : index
    %c0_151 = arith.constant 0 : index
    %c0_152 = arith.constant 0 : index
    %192 = vector.load %arg6[%c9_150, %c0_151, %c0_152] : memref<12x32x32xbf16, #tpu.memory_space<vmem>>, vector<1x32x32xbf16>
    %193 = vector.shape_cast %192 : vector<1x32x32xbf16> to vector<32x32xbf16>
    %cst_153 = arith.constant dense<0.000000e+00> : vector<8x32xf32>
    %194 = tpu.matmul %191, %193, %cst_153 {dimension_numbers = #tpu.dot_dimension_numbers<[1], [0], [0], [1], [0, 0, 1, 1], [], []>} : vector<8x32xbf16>, vector<32x32xbf16>, vector<8x32xf32> -> vector<8x32xf32>
    %c9_154 = arith.constant 9 : index
    %c0_155 = arith.constant 0 : index
    %c0_156 = arith.constant 0 : index
    %195 = vector.load %arg7[%c9_154, %c0_155, %c0_156] : memref<12x1x32xf32, #tpu.memory_space<vmem>>, vector<1x1x32xf32>
    %196 = vector.shape_cast %195 : vector<1x1x32xf32> to vector<1x32xf32>
    %197 = vector.broadcast %196 : vector<1x32xf32> to vector<8x32xf32>
    %198 = arith.addf %194, %197 : vector<8x32xf32>
    %c0_157 = arith.constant 0 : index
    %c288 = arith.constant 288 : index
    %199 = vector.load %arg8[%c0_157, %c288] : memref<8x384xf32, #tpu.memory_space<vmem>>, vector<8x32xf32>
    tpu.vector_store %arg8[%c0_157, %c288], %198 {strides = array<i32>} : memref<8x384xf32, #tpu.memory_space<vmem>>, vector<8x32xf32>,
    %200 = vector.extract_strided_slice %9 {offsets = [0, 320], sizes = [8, 32], strides = [1, 1]} : vector<8x384xbf16> to vector<8x32xbf16>
    %c10 = arith.constant 10 : index
    %c0_158 = arith.constant 0 : index
    %c0_159 = arith.constant 0 : index
    %201 = vector.load %arg4[%c10, %c0_158, %c0_159] : memref<12x32x32xbf16, #tpu.memory_space<vmem>>, vector<1x32x32xbf16>
    %202 = vector.shape_cast %201 : vector<1x32x32xbf16> to vector<32x32xbf16>
    %cst_160 = arith.constant dense<0.000000e+00> : vector<8x32xf32>
    %203 = tpu.matmul %200, %202, %cst_160 {dimension_numbers = #tpu.dot_dimension_numbers<[1], [0], [0], [1], [0, 0, 1, 1], [], []>} : vector<8x32xbf16>, vector<32x32xbf16>, vector<8x32xf32> -> vector<8x32xf32>
    %c10_161 = arith.constant 10 : index
    %c0_162 = arith.constant 0 : index
    %c0_163 = arith.constant 0 : index
    %204 = vector.load %arg5[%c10_161, %c0_162, %c0_163] : memref<12x1x32xf32, #tpu.memory_space<vmem>>, vector<1x1x32xf32>
    %205 = vector.shape_cast %204 : vector<1x1x32xf32> to vector<1x32xf32>
    %206 = vector.broadcast %205 : vector<1x32xf32> to vector<8x32xf32>
    %207 = arith.addf %203, %206 : vector<8x32xf32>
    %cst_164 = arith.constant 0.000000e+00 : f32
    %208 = vector.broadcast %cst_164 : f32 to vector<8x32xf32>
    %209 = arith.maximumf %207, %208 : vector<8x32xf32>
    %210 = arith.truncf %209 : vector<8x32xf32> to vector<8x32xbf16>
    %c10_165 = arith.constant 10 : index
    %c0_166 = arith.constant 0 : index
    %c0_167 = arith.constant 0 : index
    %211 = vector.load %arg6[%c10_165, %c0_166, %c0_167] : memref<12x32x32xbf16, #tpu.memory_space<vmem>>, vector<1x32x32xbf16>
    %212 = vector.shape_cast %211 : vector<1x32x32xbf16> to vector<32x32xbf16>
    %cst_168 = arith.constant dense<0.000000e+00> : vector<8x32xf32>
    %213 = tpu.matmul %210, %212, %cst_168 {dimension_numbers = #tpu.dot_dimension_numbers<[1], [0], [0], [1], [0, 0, 1, 1], [], []>} : vector<8x32xbf16>, vector<32x32xbf16>, vector<8x32xf32> -> vector<8x32xf32>
    %c10_169 = arith.constant 10 : index
    %c0_170 = arith.constant 0 : index
    %c0_171 = arith.constant 0 : index
    %214 = vector.load %arg7[%c10_169, %c0_170, %c0_171] : memref<12x1x32xf32, #tpu.memory_space<vmem>>, vector<1x1x32xf32>
    %215 = vector.shape_cast %214 : vector<1x1x32xf32> to vector<1x32xf32>
    %216 = vector.broadcast %215 : vector<1x32xf32> to vector<8x32xf32>
    %217 = arith.addf %213, %216 : vector<8x32xf32>
    %c0_172 = arith.constant 0 : index
    %c320 = arith.constant 320 : index
    %218 = vector.load %arg8[%c0_172, %c320] : memref<8x384xf32, #tpu.memory_space<vmem>>, vector<8x32xf32>
    tpu.vector_store %arg8[%c0_172, %c320], %217 {strides = array<i32>} : memref<8x384xf32, #tpu.memory_space<vmem>>, vector<8x32xf32>,
    %219 = vector.extract_strided_slice %9 {offsets = [0, 352], sizes = [8, 32], strides = [1, 1]} : vector<8x384xbf16> to vector<8x32xbf16>
    %c11 = arith.constant 11 : index
    %c0_173 = arith.constant 0 : index
    %c0_174 = arith.constant 0 : index
    %220 = vector.load %arg4[%c11, %c0_173, %c0_174] : memref<12x32x32xbf16, #tpu.memory_space<vmem>>, vector<1x32x32xbf16>
    %221 = vector.shape_cast %220 : vector<1x32x32xbf16> to vector<32x32xbf16>
    %cst_175 = arith.constant dense<0.000000e+00> : vector<8x32xf32>
    %222 = tpu.matmul %219, %221, %cst_175 {dimension_numbers = #tpu.dot_dimension_numbers<[1], [0], [0], [1], [0, 0, 1, 1], [], []>} : vector<8x32xbf16>, vector<32x32xbf16>, vector<8x32xf32> -> vector<8x32xf32>
    %c11_176 = arith.constant 11 : index
    %c0_177 = arith.constant 0 : index
    %c0_178 = arith.constant 0 : index
    %223 = vector.load %arg5[%c11_176, %c0_177, %c0_178] : memref<12x1x32xf32, #tpu.memory_space<vmem>>, vector<1x1x32xf32>
    %224 = vector.shape_cast %223 : vector<1x1x32xf32> to vector<1x32xf32>
    %225 = vector.broadcast %224 : vector<1x32xf32> to vector<8x32xf32>
    %226 = arith.addf %222, %225 : vector<8x32xf32>
    %cst_179 = arith.constant 0.000000e+00 : f32
    %227 = vector.broadcast %cst_179 : f32 to vector<8x32xf32>
    %228 = arith.maximumf %226, %227 : vector<8x32xf32>
    %229 = arith.truncf %228 : vector<8x32xf32> to vector<8x32xbf16>
    %c11_180 = arith.constant 11 : index
    %c0_181 = arith.constant 0 : index
    %c0_182 = arith.constant 0 : index
    %230 = vector.load %arg6[%c11_180, %c0_181, %c0_182] : memref<12x32x32xbf16, #tpu.memory_space<vmem>>, vector<1x32x32xbf16>
    %231 = vector.shape_cast %230 : vector<1x32x32xbf16> to vector<32x32xbf16>
    %cst_183 = arith.constant dense<0.000000e+00> : vector<8x32xf32>
    %232 = tpu.matmul %229, %231, %cst_183 {dimension_numbers = #tpu.dot_dimension_numbers<[1], [0], [0], [1], [0, 0, 1, 1], [], []>} : vector<8x32xbf16>, vector<32x32xbf16>, vector<8x32xf32> -> vector<8x32xf32>
    %c11_184 = arith.constant 11 : index
    %c0_185 = arith.constant 0 : index
    %c0_186 = arith.constant 0 : index
    %233 = vector.load %arg7[%c11_184, %c0_185, %c0_186] : memref<12x1x32xf32, #tpu.memory_space<vmem>>, vector<1x1x32xf32>
    %234 = vector.shape_cast %233 : vector<1x1x32xf32> to vector<1x32xf32>
    %235 = vector.broadcast %234 : vector<1x32xf32> to vector<8x32xf32>
    %236 = arith.addf %232, %235 : vector<8x32xf32>
    %c0_187 = arith.constant 0 : index
    %c352 = arith.constant 352 : index
    %237 = vector.load %arg8[%c0_187, %c352] : memref<8x384xf32, #tpu.memory_space<vmem>>, vector<8x32xf32>
    tpu.vector_store %arg8[%c0_187, %c352], %236 {strides = array<i32>} : memref<8x384xf32, #tpu.memory_space<vmem>>, vector<8x32xf32>,
    return
  }
  func.func @transform_0(%arg0: i32) -> (i32, i32) {
    %c3_i32 = arith.constant 3 : i32
    %c0_i32 = arith.constant 0 : i32
    return %arg0, %c3_i32 : i32, i32
  }
  func.func @transform_1(%arg0: i32) -> (i32, i32) {
    %c0_i32 = arith.constant 0 : i32
    %c0_i32_0 = arith.constant 0 : i32
    %c0_i32_1 = arith.constant 0 : i32
    return %c0_i32, %c0_i32_0 : i32, i32
  }
  func.func @transform_2(%arg0: i32) -> (i32, i32) {
    %c0_i32 = arith.constant 0 : i32
    %c0_i32_0 = arith.constant 0 : i32
    %c0_i32_1 = arith.constant 0 : i32
    return %c0_i32, %c0_i32_0 : i32, i32
  }
  func.func @transform_3(%arg0: i32) -> (i32, i32, i32) {
    %c0_i32 = arith.constant 0 : i32
    %c0_i32_0 = arith.constant 0 : i32
    %c0_i32_1 = arith.constant 0 : i32
    %c0_i32_2 = arith.constant 0 : i32
    return %c0_i32, %c0_i32_0, %c0_i32_1 : i32, i32, i32
  }
  func.func @transform_4(%arg0: i32) -> (i32, i32, i32) {
    %c0_i32 = arith.constant 0 : i32
    %c0_i32_0 = arith.constant 0 : i32
    %c0_i32_1 = arith.constant 0 : i32
    %c0_i32_2 = arith.constant 0 : i32
    return %c0_i32, %c0_i32_0, %c0_i32_1 : i32, i32, i32
  }
  func.func @transform_5(%arg0: i32) -> (i32, i32, i32) {
    %c0_i32 = arith.constant 0 : i32
    %c0_i32_0 = arith.constant 0 : i32
    %c0_i32_1 = arith.constant 0 : i32
    %c0_i32_2 = arith.constant 0 : i32
    return %c0_i32, %c0_i32_0, %c0_i32_1 : i32, i32, i32
  }
  func.func @transform_6(%arg0: i32) -> (i32, i32, i32) {
    %c0_i32 = arith.constant 0 : i32
    %c0_i32_0 = arith.constant 0 : i32
    %c0_i32_1 = arith.constant 0 : i32
    %c0_i32_2 = arith.constant 0 : i32
    return %c0_i32, %c0_i32_0, %c0_i32_1 : i32, i32, i32
  }
  func.func @transform_7(%arg0: i32) -> (i32, i32) {
    %c0_i32 = arith.constant 0 : i32
    %c0_i32_0 = arith.constant 0 : i32
    return %arg0, %c0_i32 : i32, i32
  }
}

module attributes {stable_mosaic.version = 11 : i64} {
  func.func @_decoder_kernel(%arg0: i32, %arg1: memref<8x128xf32, #tpu.memory_space<vmem>>, %arg2: memref<128x384xbf16, #tpu.memory_space<vmem>>, %arg3: memref<1x384xf32, #tpu.memory_space<vmem>>, %arg4: memref<12x32x32xbf16, #tpu.memory_space<vmem>>, %arg5: memref<12x1x32xf32, #tpu.memory_space<vmem>>, %arg6: memref<12x32x32xbf16, #tpu.memory_space<vmem>>, %arg7: memref<12x1x32xf32, #tpu.memory_space<vmem>>, %arg8: memref<8x384xf32, #tpu.memory_space<vmem>>) attributes {dimension_semantics = [#tpu.dimension_semantics<parallel>], iteration_bounds = array<i64: 2>, scalar_prefetch = 0 : i64, scratch_operands = 0 : i64, tpu.core_type = #tpu.core_type<tc>, window_params = [{transform_indices = @transform_0, window_bounds = array<i64: 8, 128>}, {pipeline_mode = #tpu.pipeline_mode<synchronous>, transform_indices = @transform_1, window_bounds = array<i64: 128, 384>}, {pipeline_mode = #tpu.pipeline_mode<synchronous>, transform_indices = @transform_2, window_bounds = array<i64: 1, 384>}, {pipeline_mode = #tpu.pipeline_mode<synchronous>, transform_indices = @transform_3, window_bounds = array<i64: 12, 32, 32>}, {pipeline_mode = #tpu.pipeline_mode<synchronous>, transform_indices = @transform_4, window_bounds = array<i64: 12, 1, 32>}, {pipeline_mode = #tpu.pipeline_mode<synchronous>, transform_indices = @transform_5, window_bounds = array<i64: 12, 32, 32>}, {pipeline_mode = #tpu.pipeline_mode<synchronous>, transform_indices = @transform_6, window_bounds = array<i64: 12, 1, 32>}, {transform_indices = @transform_7, window_bounds = array<i64: 8, 384>}]} {
    %c0 = arith.constant 0 : index
    %c0_0 = arith.constant 0 : index
    %0 = vector.load %arg1[%c0, %c0_0] : memref<8x128xf32, #tpu.memory_space<vmem>>, vector<8x128xf32>
    %1 = arith.truncf %0 : vector<8x128xf32> to vector<8x128xbf16>
    %c0_1 = arith.constant 0 : index
    %c0_2 = arith.constant 0 : index
    %2 = vector.load %arg2[%c0_1, %c0_2] : memref<128x384xbf16, #tpu.memory_space<vmem>>, vector<128x384xbf16>
    %cst = arith.constant dense<0.000000e+00> : vector<8x384xf32>
    %3 = tpu.matmul %1, %2, %cst {dimension_numbers = #tpu.dot_dimension_numbers<[1], [0], [0], [1], [0, 0, 1, 1], [], []>} : vector<8x128xbf16>, vector<128x384xbf16>, vector<8x384xf32> -> vector<8x384xf32>
    %c0_3 = arith.constant 0 : index
    %c0_4 = arith.constant 0 : index
    %4 = vector.load %arg3[%c0_3, %c0_4] : memref<1x384xf32, #tpu.memory_space<vmem>>, vector<1x384xf32>
    %5 = vector.broadcast %4 : vector<1x384xf32> to vector<8x384xf32>
    %6 = arith.addf %3, %5 : vector<8x384xf32>
    %cst_5 = arith.constant 0.000000e+00 : f32
    %7 = vector.broadcast %cst_5 : f32 to vector<8x384xf32>
    %8 = arith.maximumf %6, %7 : vector<8x384xf32>
    %9 = arith.truncf %8 : vector<8x384xf32> to vector<8x384xbf16>
    %10 = vector.extract_strided_slice %9 {offsets = [0, 0], sizes = [8, 32], strides = [1, 1]} : vector<8x384xbf16> to vector<8x32xbf16>
    %c0_6 = arith.constant 0 : index
    %c0_7 = arith.constant 0 : index
    %c0_8 = arith.constant 0 : index
    %11 = vector.load %arg4[%c0_6, %c0_7, %c0_8] : memref<12x32x32xbf16, #tpu.memory_space<vmem>>, vector<1x32x32xbf16>
    %12 = vector.shape_cast %11 : vector<1x32x32xbf16> to vector<32x32xbf16>
    %cst_9 = arith.constant dense<0.000000e+00> : vector<8x32xf32>
    %13 = tpu.matmul %10, %12, %cst_9 {dimension_numbers = #tpu.dot_dimension_numbers<[1], [0], [0], [1], [0, 0, 1, 1], [], []>} : vector<8x32xbf16>, vector<32x32xbf16>, vector<8x32xf32> -> vector<8x32xf32>
    %c0_10 = arith.constant 0 : index
    %c0_11 = arith.constant 0 : index
    %c0_12 = arith.constant 0 : index
    %14 = vector.load %arg5[%c0_10, %c0_11, %c0_12] : memref<12x1x32xf32, #tpu.memory_space<vmem>>, vector<1x1x32xf32>
    %15 = vector.shape_cast %14 : vector<1x1x32xf32> to vector<1x32xf32>
    %16 = vector.broadcast %15 : vector<1x32xf32> to vector<8x32xf32>
    %17 = arith.addf %13, %16 : vector<8x32xf32>
    %cst_13 = arith.constant 0.000000e+00 : f32
    %18 = vector.broadcast %cst_13 : f32 to vector<8x32xf32>
    %19 = arith.maximumf %17, %18 : vector<8x32xf32>
    %20 = arith.truncf %19 : vector<8x32xf32> to vector<8x32xbf16>
    %c0_14 = arith.constant 0 : index
    %c0_15 = arith.constant 0 : index
    %c0_16 = arith.constant 0 : index
    %21 = vector.load %arg6[%c0_14, %c0_15, %c0_16] : memref<12x32x32xbf16, #tpu.memory_space<vmem>>, vector<1x32x32xbf16>
    %22 = vector.shape_cast %21 : vector<1x32x32xbf16> to vector<32x32xbf16>
    %cst_17 = arith.constant dense<0.000000e+00> : vector<8x32xf32>
    %23 = tpu.matmul %20, %22, %cst_17 {dimension_numbers = #tpu.dot_dimension_numbers<[1], [0], [0], [1], [0, 0, 1, 1], [], []>} : vector<8x32xbf16>, vector<32x32xbf16>, vector<8x32xf32> -> vector<8x32xf32>
    %c0_18 = arith.constant 0 : index
    %c0_19 = arith.constant 0 : index
    %c0_20 = arith.constant 0 : index
    %24 = vector.load %arg7[%c0_18, %c0_19, %c0_20] : memref<12x1x32xf32, #tpu.memory_space<vmem>>, vector<1x1x32xf32>
    %25 = vector.shape_cast %24 : vector<1x1x32xf32> to vector<1x32xf32>
    %26 = vector.broadcast %25 : vector<1x32xf32> to vector<8x32xf32>
    %27 = arith.addf %23, %26 : vector<8x32xf32>
    %c0_21 = arith.constant 0 : index
    %c0_22 = arith.constant 0 : index
    %28 = vector.load %arg8[%c0_21, %c0_22] : memref<8x384xf32, #tpu.memory_space<vmem>>, vector<8x32xf32>
    tpu.vector_store %arg8[%c0_21, %c0_22], %27 {strides = array<i32>} : memref<8x384xf32, #tpu.memory_space<vmem>>, vector<8x32xf32>,
    %29 = vector.extract_strided_slice %9 {offsets = [0, 32], sizes = [8, 32], strides = [1, 1]} : vector<8x384xbf16> to vector<8x32xbf16>
    %c1 = arith.constant 1 : index
    %c0_23 = arith.constant 0 : index
    %c0_24 = arith.constant 0 : index
    %30 = vector.load %arg4[%c1, %c0_23, %c0_24] : memref<12x32x32xbf16, #tpu.memory_space<vmem>>, vector<1x32x32xbf16>
    %31 = vector.shape_cast %30 : vector<1x32x32xbf16> to vector<32x32xbf16>
    %cst_25 = arith.constant dense<0.000000e+00> : vector<8x32xf32>
    %32 = tpu.matmul %29, %31, %cst_25 {dimension_numbers = #tpu.dot_dimension_numbers<[1], [0], [0], [1], [0, 0, 1, 1], [], []>} : vector<8x32xbf16>, vector<32x32xbf16>, vector<8x32xf32> -> vector<8x32xf32>
    %c1_26 = arith.constant 1 : index
    %c0_27 = arith.constant 0 : index
    %c0_28 = arith.constant 0 : index
    %33 = vector.load %arg5[%c1_26, %c0_27, %c0_28] : memref<12x1x32xf32, #tpu.memory_space<vmem>>, vector<1x1x32xf32>
    %34 = vector.shape_cast %33 : vector<1x1x32xf32> to vector<1x32xf32>
    %35 = vector.broadcast %34 : vector<1x32xf32> to vector<8x32xf32>
    %36 = arith.addf %32, %35 : vector<8x32xf32>
    %cst_29 = arith.constant 0.000000e+00 : f32
    %37 = vector.broadcast %cst_29 : f32 to vector<8x32xf32>
    %38 = arith.maximumf %36, %37 : vector<8x32xf32>
    %39 = arith.truncf %38 : vector<8x32xf32> to vector<8x32xbf16>
    %c1_30 = arith.constant 1 : index
    %c0_31 = arith.constant 0 : index
    %c0_32 = arith.constant 0 : index
    %40 = vector.load %arg6[%c1_30, %c0_31, %c0_32] : memref<12x32x32xbf16, #tpu.memory_space<vmem>>, vector<1x32x32xbf16>
    %41 = vector.shape_cast %40 : vector<1x32x32xbf16> to vector<32x32xbf16>
    %cst_33 = arith.constant dense<0.000000e+00> : vector<8x32xf32>
    %42 = tpu.matmul %39, %41, %cst_33 {dimension_numbers = #tpu.dot_dimension_numbers<[1], [0], [0], [1], [0, 0, 1, 1], [], []>} : vector<8x32xbf16>, vector<32x32xbf16>, vector<8x32xf32> -> vector<8x32xf32>
    %c1_34 = arith.constant 1 : index
    %c0_35 = arith.constant 0 : index
    %c0_36 = arith.constant 0 : index
    %43 = vector.load %arg7[%c1_34, %c0_35, %c0_36] : memref<12x1x32xf32, #tpu.memory_space<vmem>>, vector<1x1x32xf32>
    %44 = vector.shape_cast %43 : vector<1x1x32xf32> to vector<1x32xf32>
    %45 = vector.broadcast %44 : vector<1x32xf32> to vector<8x32xf32>
    %46 = arith.addf %42, %45 : vector<8x32xf32>
    %c0_37 = arith.constant 0 : index
    %c32 = arith.constant 32 : index
    %47 = vector.load %arg8[%c0_37, %c32] : memref<8x384xf32, #tpu.memory_space<vmem>>, vector<8x32xf32>
    tpu.vector_store %arg8[%c0_37, %c32], %46 {strides = array<i32>} : memref<8x384xf32, #tpu.memory_space<vmem>>, vector<8x32xf32>,
    %48 = vector.extract_strided_slice %9 {offsets = [0, 64], sizes = [8, 32], strides = [1, 1]} : vector<8x384xbf16> to vector<8x32xbf16>
    %c2 = arith.constant 2 : index
    %c0_38 = arith.constant 0 : index
    %c0_39 = arith.constant 0 : index
    %49 = vector.load %arg4[%c2, %c0_38, %c0_39] : memref<12x32x32xbf16, #tpu.memory_space<vmem>>, vector<1x32x32xbf16>
    %50 = vector.shape_cast %49 : vector<1x32x32xbf16> to vector<32x32xbf16>
    %cst_40 = arith.constant dense<0.000000e+00> : vector<8x32xf32>
    %51 = tpu.matmul %48, %50, %cst_40 {dimension_numbers = #tpu.dot_dimension_numbers<[1], [0], [0], [1], [0, 0, 1, 1], [], []>} : vector<8x32xbf16>, vector<32x32xbf16>, vector<8x32xf32> -> vector<8x32xf32>
    %c2_41 = arith.constant 2 : index
    %c0_42 = arith.constant 0 : index
    %c0_43 = arith.constant 0 : index
    %52 = vector.load %arg5[%c2_41, %c0_42, %c0_43] : memref<12x1x32xf32, #tpu.memory_space<vmem>>, vector<1x1x32xf32>
    %53 = vector.shape_cast %52 : vector<1x1x32xf32> to vector<1x32xf32>
    %54 = vector.broadcast %53 : vector<1x32xf32> to vector<8x32xf32>
    %55 = arith.addf %51, %54 : vector<8x32xf32>
    %cst_44 = arith.constant 0.000000e+00 : f32
    %56 = vector.broadcast %cst_44 : f32 to vector<8x32xf32>
    %57 = arith.maximumf %55, %56 : vector<8x32xf32>
    %58 = arith.truncf %57 : vector<8x32xf32> to vector<8x32xbf16>
    %c2_45 = arith.constant 2 : index
    %c0_46 = arith.constant 0 : index
    %c0_47 = arith.constant 0 : index
    %59 = vector.load %arg6[%c2_45, %c0_46, %c0_47] : memref<12x32x32xbf16, #tpu.memory_space<vmem>>, vector<1x32x32xbf16>
    %60 = vector.shape_cast %59 : vector<1x32x32xbf16> to vector<32x32xbf16>
    %cst_48 = arith.constant dense<0.000000e+00> : vector<8x32xf32>
    %61 = tpu.matmul %58, %60, %cst_48 {dimension_numbers = #tpu.dot_dimension_numbers<[1], [0], [0], [1], [0, 0, 1, 1], [], []>} : vector<8x32xbf16>, vector<32x32xbf16>, vector<8x32xf32> -> vector<8x32xf32>
    %c2_49 = arith.constant 2 : index
    %c0_50 = arith.constant 0 : index
    %c0_51 = arith.constant 0 : index
    %62 = vector.load %arg7[%c2_49, %c0_50, %c0_51] : memref<12x1x32xf32, #tpu.memory_space<vmem>>, vector<1x1x32xf32>
    %63 = vector.shape_cast %62 : vector<1x1x32xf32> to vector<1x32xf32>
    %64 = vector.broadcast %63 : vector<1x32xf32> to vector<8x32xf32>
    %65 = arith.addf %61, %64 : vector<8x32xf32>
    %c0_52 = arith.constant 0 : index
    %c64 = arith.constant 64 : index
    %66 = vector.load %arg8[%c0_52, %c64] : memref<8x384xf32, #tpu.memory_space<vmem>>, vector<8x32xf32>
    tpu.vector_store %arg8[%c0_52, %c64], %65 {strides = array<i32>} : memref<8x384xf32, #tpu.memory_space<vmem>>, vector<8x32xf32>,
    %67 = vector.extract_strided_slice %9 {offsets = [0, 96], sizes = [8, 32], strides = [1, 1]} : vector<8x384xbf16> to vector<8x32xbf16>
    %c3 = arith.constant 3 : index
    %c0_53 = arith.constant 0 : index
    %c0_54 = arith.constant 0 : index
    %68 = vector.load %arg4[%c3, %c0_53, %c0_54] : memref<12x32x32xbf16, #tpu.memory_space<vmem>>, vector<1x32x32xbf16>
    %69 = vector.shape_cast %68 : vector<1x32x32xbf16> to vector<32x32xbf16>
    %cst_55 = arith.constant dense<0.000000e+00> : vector<8x32xf32>
    %70 = tpu.matmul %67, %69, %cst_55 {dimension_numbers = #tpu.dot_dimension_numbers<[1], [0], [0], [1], [0, 0, 1, 1], [], []>} : vector<8x32xbf16>, vector<32x32xbf16>, vector<8x32xf32> -> vector<8x32xf32>
    %c3_56 = arith.constant 3 : index
    %c0_57 = arith.constant 0 : index
    %c0_58 = arith.constant 0 : index
    %71 = vector.load %arg5[%c3_56, %c0_57, %c0_58] : memref<12x1x32xf32, #tpu.memory_space<vmem>>, vector<1x1x32xf32>
    %72 = vector.shape_cast %71 : vector<1x1x32xf32> to vector<1x32xf32>
    %73 = vector.broadcast %72 : vector<1x32xf32> to vector<8x32xf32>
    %74 = arith.addf %70, %73 : vector<8x32xf32>
    %cst_59 = arith.constant 0.000000e+00 : f32
    %75 = vector.broadcast %cst_59 : f32 to vector<8x32xf32>
    %76 = arith.maximumf %74, %75 : vector<8x32xf32>
    %77 = arith.truncf %76 : vector<8x32xf32> to vector<8x32xbf16>
    %c3_60 = arith.constant 3 : index
    %c0_61 = arith.constant 0 : index
    %c0_62 = arith.constant 0 : index
    %78 = vector.load %arg6[%c3_60, %c0_61, %c0_62] : memref<12x32x32xbf16, #tpu.memory_space<vmem>>, vector<1x32x32xbf16>
    %79 = vector.shape_cast %78 : vector<1x32x32xbf16> to vector<32x32xbf16>
    %cst_63 = arith.constant dense<0.000000e+00> : vector<8x32xf32>
    %80 = tpu.matmul %77, %79, %cst_63 {dimension_numbers = #tpu.dot_dimension_numbers<[1], [0], [0], [1], [0, 0, 1, 1], [], []>} : vector<8x32xbf16>, vector<32x32xbf16>, vector<8x32xf32> -> vector<8x32xf32>
    %c3_64 = arith.constant 3 : index
    %c0_65 = arith.constant 0 : index
    %c0_66 = arith.constant 0 : index
    %81 = vector.load %arg7[%c3_64, %c0_65, %c0_66] : memref<12x1x32xf32, #tpu.memory_space<vmem>>, vector<1x1x32xf32>
    %82 = vector.shape_cast %81 : vector<1x1x32xf32> to vector<1x32xf32>
    %83 = vector.broadcast %82 : vector<1x32xf32> to vector<8x32xf32>
    %84 = arith.addf %80, %83 : vector<8x32xf32>
    %c0_67 = arith.constant 0 : index
    %c96 = arith.constant 96 : index
    %85 = vector.load %arg8[%c0_67, %c96] : memref<8x384xf32, #tpu.memory_space<vmem>>, vector<8x32xf32>
    tpu.vector_store %arg8[%c0_67, %c96], %84 {strides = array<i32>} : memref<8x384xf32, #tpu.memory_space<vmem>>, vector<8x32xf32>,
    %86 = vector.extract_strided_slice %9 {offsets = [0, 128], sizes = [8, 32], strides = [1, 1]} : vector<8x384xbf16> to vector<8x32xbf16>
    %c4 = arith.constant 4 : index
    %c0_68 = arith.constant 0 : index
    %c0_69 = arith.constant 0 : index
    %87 = vector.load %arg4[%c4, %c0_68, %c0_69] : memref<12x32x32xbf16, #tpu.memory_space<vmem>>, vector<1x32x32xbf16>
    %88 = vector.shape_cast %87 : vector<1x32x32xbf16> to vector<32x32xbf16>
    %cst_70 = arith.constant dense<0.000000e+00> : vector<8x32xf32>
    %89 = tpu.matmul %86, %88, %cst_70 {dimension_numbers = #tpu.dot_dimension_numbers<[1], [0], [0], [1], [0, 0, 1, 1], [], []>} : vector<8x32xbf16>, vector<32x32xbf16>, vector<8x32xf32> -> vector<8x32xf32>
    %c4_71 = arith.constant 4 : index
    %c0_72 = arith.constant 0 : index
    %c0_73 = arith.constant 0 : index
    %90 = vector.load %arg5[%c4_71, %c0_72, %c0_73] : memref<12x1x32xf32, #tpu.memory_space<vmem>>, vector<1x1x32xf32>
    %91 = vector.shape_cast %90 : vector<1x1x32xf32> to vector<1x32xf32>
    %92 = vector.broadcast %91 : vector<1x32xf32> to vector<8x32xf32>
    %93 = arith.addf %89, %92 : vector<8x32xf32>
    %cst_74 = arith.constant 0.000000e+00 : f32
    %94 = vector.broadcast %cst_74 : f32 to vector<8x32xf32>
    %95 = arith.maximumf %93, %94 : vector<8x32xf32>
    %96 = arith.truncf %95 : vector<8x32xf32> to vector<8x32xbf16>
    %c4_75 = arith.constant 4 : index
    %c0_76 = arith.constant 0 : index
    %c0_77 = arith.constant 0 : index
    %97 = vector.load %arg6[%c4_75, %c0_76, %c0_77] : memref<12x32x32xbf16, #tpu.memory_space<vmem>>, vector<1x32x32xbf16>
    %98 = vector.shape_cast %97 : vector<1x32x32xbf16> to vector<32x32xbf16>
    %cst_78 = arith.constant dense<0.000000e+00> : vector<8x32xf32>
    %99 = tpu.matmul %96, %98, %cst_78 {dimension_numbers = #tpu.dot_dimension_numbers<[1], [0], [0], [1], [0, 0, 1, 1], [], []>} : vector<8x32xbf16>, vector<32x32xbf16>, vector<8x32xf32> -> vector<8x32xf32>
    %c4_79 = arith.constant 4 : index
    %c0_80 = arith.constant 0 : index
    %c0_81 = arith.constant 0 : index
    %100 = vector.load %arg7[%c4_79, %c0_80, %c0_81] : memref<12x1x32xf32, #tpu.memory_space<vmem>>, vector<1x1x32xf32>
    %101 = vector.shape_cast %100 : vector<1x1x32xf32> to vector<1x32xf32>
    %102 = vector.broadcast %101 : vector<1x32xf32> to vector<8x32xf32>
    %103 = arith.addf %99, %102 : vector<8x32xf32>
    %c0_82 = arith.constant 0 : index
    %c128 = arith.constant 128 : index
    %104 = vector.load %arg8[%c0_82, %c128] : memref<8x384xf32, #tpu.memory_space<vmem>>, vector<8x32xf32>
    tpu.vector_store %arg8[%c0_82, %c128], %103 {strides = array<i32>} : memref<8x384xf32, #tpu.memory_space<vmem>>, vector<8x32xf32>,
    %105 = vector.extract_strided_slice %9 {offsets = [0, 160], sizes = [8, 32], strides = [1, 1]} : vector<8x384xbf16> to vector<8x32xbf16>
    %c5 = arith.constant 5 : index
    %c0_83 = arith.constant 0 : index
    %c0_84 = arith.constant 0 : index
    %106 = vector.load %arg4[%c5, %c0_83, %c0_84] : memref<12x32x32xbf16, #tpu.memory_space<vmem>>, vector<1x32x32xbf16>
    %107 = vector.shape_cast %106 : vector<1x32x32xbf16> to vector<32x32xbf16>
    %cst_85 = arith.constant dense<0.000000e+00> : vector<8x32xf32>
    %108 = tpu.matmul %105, %107, %cst_85 {dimension_numbers = #tpu.dot_dimension_numbers<[1], [0], [0], [1], [0, 0, 1, 1], [], []>} : vector<8x32xbf16>, vector<32x32xbf16>, vector<8x32xf32> -> vector<8x32xf32>
    %c5_86 = arith.constant 5 : index
    %c0_87 = arith.constant 0 : index
    %c0_88 = arith.constant 0 : index
    %109 = vector.load %arg5[%c5_86, %c0_87, %c0_88] : memref<12x1x32xf32, #tpu.memory_space<vmem>>, vector<1x1x32xf32>
    %110 = vector.shape_cast %109 : vector<1x1x32xf32> to vector<1x32xf32>
    %111 = vector.broadcast %110 : vector<1x32xf32> to vector<8x32xf32>
    %112 = arith.addf %108, %111 : vector<8x32xf32>
    %cst_89 = arith.constant 0.000000e+00 : f32
    %113 = vector.broadcast %cst_89 : f32 to vector<8x32xf32>
    %114 = arith.maximumf %112, %113 : vector<8x32xf32>
    %115 = arith.truncf %114 : vector<8x32xf32> to vector<8x32xbf16>
    %c5_90 = arith.constant 5 : index
    %c0_91 = arith.constant 0 : index
    %c0_92 = arith.constant 0 : index
    %116 = vector.load %arg6[%c5_90, %c0_91, %c0_92] : memref<12x32x32xbf16, #tpu.memory_space<vmem>>, vector<1x32x32xbf16>
    %117 = vector.shape_cast %116 : vector<1x32x32xbf16> to vector<32x32xbf16>
    %cst_93 = arith.constant dense<0.000000e+00> : vector<8x32xf32>
    %118 = tpu.matmul %115, %117, %cst_93 {dimension_numbers = #tpu.dot_dimension_numbers<[1], [0], [0], [1], [0, 0, 1, 1], [], []>} : vector<8x32xbf16>, vector<32x32xbf16>, vector<8x32xf32> -> vector<8x32xf32>
    %c5_94 = arith.constant 5 : index
    %c0_95 = arith.constant 0 : index
    %c0_96 = arith.constant 0 : index
    %119 = vector.load %arg7[%c5_94, %c0_95, %c0_96] : memref<12x1x32xf32, #tpu.memory_space<vmem>>, vector<1x1x32xf32>
    %120 = vector.shape_cast %119 : vector<1x1x32xf32> to vector<1x32xf32>
    %121 = vector.broadcast %120 : vector<1x32xf32> to vector<8x32xf32>
    %122 = arith.addf %118, %121 : vector<8x32xf32>
    %c0_97 = arith.constant 0 : index
    %c160 = arith.constant 160 : index
    %123 = vector.load %arg8[%c0_97, %c160] : memref<8x384xf32, #tpu.memory_space<vmem>>, vector<8x32xf32>
    tpu.vector_store %arg8[%c0_97, %c160], %122 {strides = array<i32>} : memref<8x384xf32, #tpu.memory_space<vmem>>, vector<8x32xf32>,
    %124 = vector.extract_strided_slice %9 {offsets = [0, 192], sizes = [8, 32], strides = [1, 1]} : vector<8x384xbf16> to vector<8x32xbf16>
    %c6 = arith.constant 6 : index
    %c0_98 = arith.constant 0 : index
    %c0_99 = arith.constant 0 : index
    %125 = vector.load %arg4[%c6, %c0_98, %c0_99] : memref<12x32x32xbf16, #tpu.memory_space<vmem>>, vector<1x32x32xbf16>
    %126 = vector.shape_cast %125 : vector<1x32x32xbf16> to vector<32x32xbf16>
    %cst_100 = arith.constant dense<0.000000e+00> : vector<8x32xf32>
    %127 = tpu.matmul %124, %126, %cst_100 {dimension_numbers = #tpu.dot_dimension_numbers<[1], [0], [0], [1], [0, 0, 1, 1], [], []>} : vector<8x32xbf16>, vector<32x32xbf16>, vector<8x32xf32> -> vector<8x32xf32>
    %c6_101 = arith.constant 6 : index
    %c0_102 = arith.constant 0 : index
    %c0_103 = arith.constant 0 : index
    %128 = vector.load %arg5[%c6_101, %c0_102, %c0_103] : memref<12x1x32xf32, #tpu.memory_space<vmem>>, vector<1x1x32xf32>
    %129 = vector.shape_cast %128 : vector<1x1x32xf32> to vector<1x32xf32>
    %130 = vector.broadcast %129 : vector<1x32xf32> to vector<8x32xf32>
    %131 = arith.addf %127, %130 : vector<8x32xf32>
    %cst_104 = arith.constant 0.000000e+00 : f32
    %132 = vector.broadcast %cst_104 : f32 to vector<8x32xf32>
    %133 = arith.maximumf %131, %132 : vector<8x32xf32>
    %134 = arith.truncf %133 : vector<8x32xf32> to vector<8x32xbf16>
    %c6_105 = arith.constant 6 : index
    %c0_106 = arith.constant 0 : index
    %c0_107 = arith.constant 0 : index
    %135 = vector.load %arg6[%c6_105, %c0_106, %c0_107] : memref<12x32x32xbf16, #tpu.memory_space<vmem>>, vector<1x32x32xbf16>
    %136 = vector.shape_cast %135 : vector<1x32x32xbf16> to vector<32x32xbf16>
    %cst_108 = arith.constant dense<0.000000e+00> : vector<8x32xf32>
    %137 = tpu.matmul %134, %136, %cst_108 {dimension_numbers = #tpu.dot_dimension_numbers<[1], [0], [0], [1], [0, 0, 1, 1], [], []>} : vector<8x32xbf16>, vector<32x32xbf16>, vector<8x32xf32> -> vector<8x32xf32>
    %c6_109 = arith.constant 6 : index
    %c0_110 = arith.constant 0 : index
    %c0_111 = arith.constant 0 : index
    %138 = vector.load %arg7[%c6_109, %c0_110, %c0_111] : memref<12x1x32xf32, #tpu.memory_space<vmem>>, vector<1x1x32xf32>
    %139 = vector.shape_cast %138 : vector<1x1x32xf32> to vector<1x32xf32>
    %140 = vector.broadcast %139 : vector<1x32xf32> to vector<8x32xf32>
    %141 = arith.addf %137, %140 : vector<8x32xf32>
    %c0_112 = arith.constant 0 : index
    %c192 = arith.constant 192 : index
    %142 = vector.load %arg8[%c0_112, %c192] : memref<8x384xf32, #tpu.memory_space<vmem>>, vector<8x32xf32>
    tpu.vector_store %arg8[%c0_112, %c192], %141 {strides = array<i32>} : memref<8x384xf32, #tpu.memory_space<vmem>>, vector<8x32xf32>,
    %143 = vector.extract_strided_slice %9 {offsets = [0, 224], sizes = [8, 32], strides = [1, 1]} : vector<8x384xbf16> to vector<8x32xbf16>
    %c7 = arith.constant 7 : index
    %c0_113 = arith.constant 0 : index
    %c0_114 = arith.constant 0 : index
    %144 = vector.load %arg4[%c7, %c0_113, %c0_114] : memref<12x32x32xbf16, #tpu.memory_space<vmem>>, vector<1x32x32xbf16>
    %145 = vector.shape_cast %144 : vector<1x32x32xbf16> to vector<32x32xbf16>
    %cst_115 = arith.constant dense<0.000000e+00> : vector<8x32xf32>
    %146 = tpu.matmul %143, %145, %cst_115 {dimension_numbers = #tpu.dot_dimension_numbers<[1], [0], [0], [1], [0, 0, 1, 1], [], []>} : vector<8x32xbf16>, vector<32x32xbf16>, vector<8x32xf32> -> vector<8x32xf32>
    %c7_116 = arith.constant 7 : index
    %c0_117 = arith.constant 0 : index
    %c0_118 = arith.constant 0 : index
    %147 = vector.load %arg5[%c7_116, %c0_117, %c0_118] : memref<12x1x32xf32, #tpu.memory_space<vmem>>, vector<1x1x32xf32>
    %148 = vector.shape_cast %147 : vector<1x1x32xf32> to vector<1x32xf32>
    %149 = vector.broadcast %148 : vector<1x32xf32> to vector<8x32xf32>
    %150 = arith.addf %146, %149 : vector<8x32xf32>
    %cst_119 = arith.constant 0.000000e+00 : f32
    %151 = vector.broadcast %cst_119 : f32 to vector<8x32xf32>
    %152 = arith.maximumf %150, %151 : vector<8x32xf32>
    %153 = arith.truncf %152 : vector<8x32xf32> to vector<8x32xbf16>
    %c7_120 = arith.constant 7 : index
    %c0_121 = arith.constant 0 : index
    %c0_122 = arith.constant 0 : index
    %154 = vector.load %arg6[%c7_120, %c0_121, %c0_122] : memref<12x32x32xbf16, #tpu.memory_space<vmem>>, vector<1x32x32xbf16>
    %155 = vector.shape_cast %154 : vector<1x32x32xbf16> to vector<32x32xbf16>
    %cst_123 = arith.constant dense<0.000000e+00> : vector<8x32xf32>
    %156 = tpu.matmul %153, %155, %cst_123 {dimension_numbers = #tpu.dot_dimension_numbers<[1], [0], [0], [1], [0, 0, 1, 1], [], []>} : vector<8x32xbf16>, vector<32x32xbf16>, vector<8x32xf32> -> vector<8x32xf32>
    %c7_124 = arith.constant 7 : index
    %c0_125 = arith.constant 0 : index
    %c0_126 = arith.constant 0 : index
    %157 = vector.load %arg7[%c7_124, %c0_125, %c0_126] : memref<12x1x32xf32, #tpu.memory_space<vmem>>, vector<1x1x32xf32>
    %158 = vector.shape_cast %157 : vector<1x1x32xf32> to vector<1x32xf32>
    %159 = vector.broadcast %158 : vector<1x32xf32> to vector<8x32xf32>
    %160 = arith.addf %156, %159 : vector<8x32xf32>
    %c0_127 = arith.constant 0 : index
    %c224 = arith.constant 224 : index
    %161 = vector.load %arg8[%c0_127, %c224] : memref<8x384xf32, #tpu.memory_space<vmem>>, vector<8x32xf32>
    tpu.vector_store %arg8[%c0_127, %c224], %160 {strides = array<i32>} : memref<8x384xf32, #tpu.memory_space<vmem>>, vector<8x32xf32>,
    %162 = vector.extract_strided_slice %9 {offsets = [0, 256], sizes = [8, 32], strides = [1, 1]} : vector<8x384xbf16> to vector<8x32xbf16>
    %c8 = arith.constant 8 : index
    %c0_128 = arith.constant 0 : index
    %c0_129 = arith.constant 0 : index
    %163 = vector.load %arg4[%c8, %c0_128, %c0_129] : memref<12x32x32xbf16, #tpu.memory_space<vmem>>, vector<1x32x32xbf16>
    %164 = vector.shape_cast %163 : vector<1x32x32xbf16> to vector<32x32xbf16>
    %cst_130 = arith.constant dense<0.000000e+00> : vector<8x32xf32>
    %165 = tpu.matmul %162, %164, %cst_130 {dimension_numbers = #tpu.dot_dimension_numbers<[1], [0], [0], [1], [0, 0, 1, 1], [], []>} : vector<8x32xbf16>, vector<32x32xbf16>, vector<8x32xf32> -> vector<8x32xf32>
    %c8_131 = arith.constant 8 : index
    %c0_132 = arith.constant 0 : index
    %c0_133 = arith.constant 0 : index
    %166 = vector.load %arg5[%c8_131, %c0_132, %c0_133] : memref<12x1x32xf32, #tpu.memory_space<vmem>>, vector<1x1x32xf32>
    %167 = vector.shape_cast %166 : vector<1x1x32xf32> to vector<1x32xf32>
    %168 = vector.broadcast %167 : vector<1x32xf32> to vector<8x32xf32>
    %169 = arith.addf %165, %168 : vector<8x32xf32>
    %cst_134 = arith.constant 0.000000e+00 : f32
    %170 = vector.broadcast %cst_134 : f32 to vector<8x32xf32>
    %171 = arith.maximumf %169, %170 : vector<8x32xf32>
    %172 = arith.truncf %171 : vector<8x32xf32> to vector<8x32xbf16>
    %c8_135 = arith.constant 8 : index
    %c0_136 = arith.constant 0 : index
    %c0_137 = arith.constant 0 : index
    %173 = vector.load %arg6[%c8_135, %c0_136, %c0_137] : memref<12x32x32xbf16, #tpu.memory_space<vmem>>, vector<1x32x32xbf16>
    %174 = vector.shape_cast %173 : vector<1x32x32xbf16> to vector<32x32xbf16>
    %cst_138 = arith.constant dense<0.000000e+00> : vector<8x32xf32>
    %175 = tpu.matmul %172, %174, %cst_138 {dimension_numbers = #tpu.dot_dimension_numbers<[1], [0], [0], [1], [0, 0, 1, 1], [], []>} : vector<8x32xbf16>, vector<32x32xbf16>, vector<8x32xf32> -> vector<8x32xf32>
    %c8_139 = arith.constant 8 : index
    %c0_140 = arith.constant 0 : index
    %c0_141 = arith.constant 0 : index
    %176 = vector.load %arg7[%c8_139, %c0_140, %c0_141] : memref<12x1x32xf32, #tpu.memory_space<vmem>>, vector<1x1x32xf32>
    %177 = vector.shape_cast %176 : vector<1x1x32xf32> to vector<1x32xf32>
    %178 = vector.broadcast %177 : vector<1x32xf32> to vector<8x32xf32>
    %179 = arith.addf %175, %178 : vector<8x32xf32>
    %c0_142 = arith.constant 0 : index
    %c256 = arith.constant 256 : index
    %180 = vector.load %arg8[%c0_142, %c256] : memref<8x384xf32, #tpu.memory_space<vmem>>, vector<8x32xf32>
    tpu.vector_store %arg8[%c0_142, %c256], %179 {strides = array<i32>} : memref<8x384xf32, #tpu.memory_space<vmem>>, vector<8x32xf32>,
    %181 = vector.extract_strided_slice %9 {offsets = [0, 288], sizes = [8, 32], strides = [1, 1]} : vector<8x384xbf16> to vector<8x32xbf16>
    %c9 = arith.constant 9 : index
    %c0_143 = arith.constant 0 : index
    %c0_144 = arith.constant 0 : index
    %182 = vector.load %arg4[%c9, %c0_143, %c0_144] : memref<12x32x32xbf16, #tpu.memory_space<vmem>>, vector<1x32x32xbf16>
    %183 = vector.shape_cast %182 : vector<1x32x32xbf16> to vector<32x32xbf16>
    %cst_145 = arith.constant dense<0.000000e+00> : vector<8x32xf32>
    %184 = tpu.matmul %181, %183, %cst_145 {dimension_numbers = #tpu.dot_dimension_numbers<[1], [0], [0], [1], [0, 0, 1, 1], [], []>} : vector<8x32xbf16>, vector<32x32xbf16>, vector<8x32xf32> -> vector<8x32xf32>
    %c9_146 = arith.constant 9 : index
    %c0_147 = arith.constant 0 : index
    %c0_148 = arith.constant 0 : index
    %185 = vector.load %arg5[%c9_146, %c0_147, %c0_148] : memref<12x1x32xf32, #tpu.memory_space<vmem>>, vector<1x1x32xf32>
    %186 = vector.shape_cast %185 : vector<1x1x32xf32> to vector<1x32xf32>
    %187 = vector.broadcast %186 : vector<1x32xf32> to vector<8x32xf32>
    %188 = arith.addf %184, %187 : vector<8x32xf32>
    %cst_149 = arith.constant 0.000000e+00 : f32
    %189 = vector.broadcast %cst_149 : f32 to vector<8x32xf32>
    %190 = arith.maximumf %188, %189 : vector<8x32xf32>
    %191 = arith.truncf %190 : vector<8x32xf32> to vector<8x32xbf16>
    %c9_150 = arith.constant 9 : index
    %c0_151 = arith.constant 0 : index
    %c0_152 = arith.constant 0 : index
    %192 = vector.load %arg6[%c9_150, %c0_151, %c0_152] : memref<12x32x32xbf16, #tpu.memory_space<vmem>>, vector<1x32x32xbf16>
    %193 = vector.shape_cast %192 : vector<1x32x32xbf16> to vector<32x32xbf16>
    %cst_153 = arith.constant dense<0.000000e+00> : vector<8x32xf32>
    %194 = tpu.matmul %191, %193, %cst_153 {dimension_numbers = #tpu.dot_dimension_numbers<[1], [0], [0], [1], [0, 0, 1, 1], [], []>} : vector<8x32xbf16>, vector<32x32xbf16>, vector<8x32xf32> -> vector<8x32xf32>
    %c9_154 = arith.constant 9 : index
    %c0_155 = arith.constant 0 : index
    %c0_156 = arith.constant 0 : index
    %195 = vector.load %arg7[%c9_154, %c0_155, %c0_156] : memref<12x1x32xf32, #tpu.memory_space<vmem>>, vector<1x1x32xf32>
    %196 = vector.shape_cast %195 : vector<1x1x32xf32> to vector<1x32xf32>
    %197 = vector.broadcast %196 : vector<1x32xf32> to vector<8x32xf32>
    %198 = arith.addf %194, %197 : vector<8x32xf32>
    %c0_157 = arith.constant 0 : index
    %c288 = arith.constant 288 : index
    %199 = vector.load %arg8[%c0_157, %c288] : memref<8x384xf32, #tpu.memory_space<vmem>>, vector<8x32xf32>
    tpu.vector_store %arg8[%c0_157, %c288], %198 {strides = array<i32>} : memref<8x384xf32, #tpu.memory_space<vmem>>, vector<8x32xf32>,
    %200 = vector.extract_strided_slice %9 {offsets = [0, 320], sizes = [8, 32], strides = [1, 1]} : vector<8x384xbf16> to vector<8x32xbf16>
    %c10 = arith.constant 10 : index
    %c0_158 = arith.constant 0 : index
    %c0_159 = arith.constant 0 : index
    %201 = vector.load %arg4[%c10, %c0_158, %c0_159] : memref<12x32x32xbf16, #tpu.memory_space<vmem>>, vector<1x32x32xbf16>
    %202 = vector.shape_cast %201 : vector<1x32x32xbf16> to vector<32x32xbf16>
    %cst_160 = arith.constant dense<0.000000e+00> : vector<8x32xf32>
    %203 = tpu.matmul %200, %202, %cst_160 {dimension_numbers = #tpu.dot_dimension_numbers<[1], [0], [0], [1], [0, 0, 1, 1], [], []>} : vector<8x32xbf16>, vector<32x32xbf16>, vector<8x32xf32> -> vector<8x32xf32>
    %c10_161 = arith.constant 10 : index
    %c0_162 = arith.constant 0 : index
    %c0_163 = arith.constant 0 : index
    %204 = vector.load %arg5[%c10_161, %c0_162, %c0_163] : memref<12x1x32xf32, #tpu.memory_space<vmem>>, vector<1x1x32xf32>
    %205 = vector.shape_cast %204 : vector<1x1x32xf32> to vector<1x32xf32>
    %206 = vector.broadcast %205 : vector<1x32xf32> to vector<8x32xf32>
    %207 = arith.addf %203, %206 : vector<8x32xf32>
    %cst_164 = arith.constant 0.000000e+00 : f32
    %208 = vector.broadcast %cst_164 : f32 to vector<8x32xf32>
    %209 = arith.maximumf %207, %208 : vector<8x32xf32>
    %210 = arith.truncf %209 : vector<8x32xf32> to vector<8x32xbf16>
    %c10_165 = arith.constant 10 : index
    %c0_166 = arith.constant 0 : index
    %c0_167 = arith.constant 0 : index
    %211 = vector.load %arg6[%c10_165, %c0_166, %c0_167] : memref<12x32x32xbf16, #tpu.memory_space<vmem>>, vector<1x32x32xbf16>
    %212 = vector.shape_cast %211 : vector<1x32x32xbf16> to vector<32x32xbf16>
    %cst_168 = arith.constant dense<0.000000e+00> : vector<8x32xf32>
    %213 = tpu.matmul %210, %212, %cst_168 {dimension_numbers = #tpu.dot_dimension_numbers<[1], [0], [0], [1], [0, 0, 1, 1], [], []>} : vector<8x32xbf16>, vector<32x32xbf16>, vector<8x32xf32> -> vector<8x32xf32>
    %c10_169 = arith.constant 10 : index
    %c0_170 = arith.constant 0 : index
    %c0_171 = arith.constant 0 : index
    %214 = vector.load %arg7[%c10_169, %c0_170, %c0_171] : memref<12x1x32xf32, #tpu.memory_space<vmem>>, vector<1x1x32xf32>
    %215 = vector.shape_cast %214 : vector<1x1x32xf32> to vector<1x32xf32>
    %216 = vector.broadcast %215 : vector<1x32xf32> to vector<8x32xf32>
    %217 = arith.addf %213, %216 : vector<8x32xf32>
    %c0_172 = arith.constant 0 : index
    %c320 = arith.constant 320 : index
    %218 = vector.load %arg8[%c0_172, %c320] : memref<8x384xf32, #tpu.memory_space<vmem>>, vector<8x32xf32>
    tpu.vector_store %arg8[%c0_172, %c320], %217 {strides = array<i32>} : memref<8x384xf32, #tpu.memory_space<vmem>>, vector<8x32xf32>,
    %219 = vector.extract_strided_slice %9 {offsets = [0, 352], sizes = [8, 32], strides = [1, 1]} : vector<8x384xbf16> to vector<8x32xbf16>
    %c11 = arith.constant 11 : index
    %c0_173 = arith.constant 0 : index
    %c0_174 = arith.constant 0 : index
    %220 = vector.load %arg4[%c11, %c0_173, %c0_174] : memref<12x32x32xbf16, #tpu.memory_space<vmem>>, vector<1x32x32xbf16>
    %221 = vector.shape_cast %220 : vector<1x32x32xbf16> to vector<32x32xbf16>
    %cst_175 = arith.constant dense<0.000000e+00> : vector<8x32xf32>
    %222 = tpu.matmul %219, %221, %cst_175 {dimension_numbers = #tpu.dot_dimension_numbers<[1], [0], [0], [1], [0, 0, 1, 1], [], []>} : vector<8x32xbf16>, vector<32x32xbf16>, vector<8x32xf32> -> vector<8x32xf32>
    %c11_176 = arith.constant 11 : index
    %c0_177 = arith.constant 0 : index
    %c0_178 = arith.constant 0 : index
    %223 = vector.load %arg5[%c11_176, %c0_177, %c0_178] : memref<12x1x32xf32, #tpu.memory_space<vmem>>, vector<1x1x32xf32>
    %224 = vector.shape_cast %223 : vector<1x1x32xf32> to vector<1x32xf32>
    %225 = vector.broadcast %224 : vector<1x32xf32> to vector<8x32xf32>
    %226 = arith.addf %222, %225 : vector<8x32xf32>
    %cst_179 = arith.constant 0.000000e+00 : f32
    %227 = vector.broadcast %cst_179 : f32 to vector<8x32xf32>
    %228 = arith.maximumf %226, %227 : vector<8x32xf32>
    %229 = arith.truncf %228 : vector<8x32xf32> to vector<8x32xbf16>
    %c11_180 = arith.constant 11 : index
    %c0_181 = arith.constant 0 : index
    %c0_182 = arith.constant 0 : index
    %230 = vector.load %arg6[%c11_180, %c0_181, %c0_182] : memref<12x32x32xbf16, #tpu.memory_space<vmem>>, vector<1x32x32xbf16>
    %231 = vector.shape_cast %230 : vector<1x32x32xbf16> to vector<32x32xbf16>
    %cst_183 = arith.constant dense<0.000000e+00> : vector<8x32xf32>
    %232 = tpu.matmul %229, %231, %cst_183 {dimension_numbers = #tpu.dot_dimension_numbers<[1], [0], [0], [1], [0, 0, 1, 1], [], []>} : vector<8x32xbf16>, vector<32x32xbf16>, vector<8x32xf32> -> vector<8x32xf32>
    %c11_184 = arith.constant 11 : index
    %c0_185 = arith.constant 0 : index
    %c0_186 = arith.constant 0 : index
    %233 = vector.load %arg7[%c11_184, %c0_185, %c0_186] : memref<12x1x32xf32, #tpu.memory_space<vmem>>, vector<1x1x32xf32>
    %234 = vector.shape_cast %233 : vector<1x1x32xf32> to vector<1x32xf32>
    %235 = vector.broadcast %234 : vector<1x32xf32> to vector<8x32xf32>
    %236 = arith.addf %232, %235 : vector<8x32xf32>
    %c0_187 = arith.constant 0 : index
    %c352 = arith.constant 352 : index
    %237 = vector.load %arg8[%c0_187, %c352] : memref<8x384xf32, #tpu.memory_space<vmem>>, vector<8x32xf32>
    tpu.vector_store %arg8[%c0_187, %c352], %236 {strides = array<i32>} : memref<8x384xf32, #tpu.memory_space<vmem>>, vector<8x32xf32>,
    return
  }
  func.func @transform_0(%arg0: i32) -> (i32, i32) {
    %c3_i32 = arith.constant 3 : i32
    %c0_i32 = arith.constant 0 : i32
    return %arg0, %c3_i32 : i32, i32
  }
  func.func @transform_1(%arg0: i32) -> (i32, i32) {
    %c0_i32 = arith.constant 0 : i32
    %c0_i32_0 = arith.constant 0 : i32
    %c0_i32_1 = arith.constant 0 : i32
    return %c0_i32, %c0_i32_0 : i32, i32
  }
  func.func @transform_2(%arg0: i32) -> (i32, i32) {
    %c0_i32 = arith.constant 0 : i32
    %c0_i32_0 = arith.constant 0 : i32
    %c0_i32_1 = arith.constant 0 : i32
    return %c0_i32, %c0_i32_0 : i32, i32
  }
  func.func @transform_3(%arg0: i32) -> (i32, i32, i32) {
    %c0_i32 = arith.constant 0 : i32
    %c0_i32_0 = arith.constant 0 : i32
    %c0_i32_1 = arith.constant 0 : i32
    %c0_i32_2 = arith.constant 0 : i32
    return %c0_i32, %c0_i32_0, %c0_i32_1 : i32, i32, i32
  }
  func.func @transform_4(%arg0: i32) -> (i32, i32, i32) {
    %c0_i32 = arith.constant 0 : i32
    %c0_i32_0 = arith.constant 0 : i32
    %c0_i32_1 = arith.constant 0 : i32
    %c0_i32_2 = arith.constant 0 : i32
    return %c0_i32, %c0_i32_0, %c0_i32_1 : i32, i32, i32
  }
  func.func @transform_5(%arg0: i32) -> (i32, i32, i32) {
    %c0_i32 = arith.constant 0 : i32
    %c0_i32_0 = arith.constant 0 : i32
    %c0_i32_1 = arith.constant 0 : i32
    %c0_i32_2 = arith.constant 0 : i32
    return %c0_i32, %c0_i32_0, %c0_i32_1 : i32, i32, i32
  }
  func.func @transform_6(%arg0: i32) -> (i32, i32, i32) {
    %c0_i32 = arith.constant 0 : i32
    %c0_i32_0 = arith.constant 0 : i32
    %c0_i32_1 = arith.constant 0 : i32
    %c0_i32_2 = arith.constant 0 : i32
    return %c0_i32, %c0_i32_0, %c0_i32_1 : i32, i32, i32
  }
  func.func @transform_7(%arg0: i32) -> (i32, i32) {
    %c0_i32 = arith.constant 0 : i32
    %c0_i32_0 = arith.constant 0 : i32
    return %arg0, %c0_i32 : i32, i32
  }
}

</mosaic_0001>

<llo_original>
// kernel: vima_action_decoder_forward.1
$region0: #{vima_action_decoder_forward.1}
  #allocation0 [shape = 'u32[]', space=smem, size = 0x4, offset = 0x4, fixed_abs, tag = 'smem constant byte address 0x4 - core index']
  #allocation1 [shape = 'u32[144,128]{1,0:T(1,128)}', space=vmem, size = 0x12000, scoped, tag = 'internal scratch']
  %s0 = inlined_call_operand.vmem [shape: f32[16,640], index: 0, kind: input, shape index: {}]
  %s1 = inlined_call_operand.hbm [shape: bf16[128,384], index: 1, kind: input, shape index: {}]
  %s2 = inlined_call_operand.vmem [shape: f32[1,384], index: 2, kind: input, shape index: {}]
  %s3 = inlined_call_operand.hbm [shape: bf16[12,32,32], index: 3, kind: input, shape index: {}]
  %s4 = inlined_call_operand.vmem [shape: f32[12,1,32], index: 4, kind: input, shape index: {}]
  %s5 = inlined_call_operand.hbm [shape: bf16[12,32,32], index: 5, kind: input, shape index: {}]
  %s6 = inlined_call_operand.vmem [shape: f32[12,1,32], index: 6, kind: input, shape index: {}]
  %s7 = inlined_call_operand.vmem [shape: f32[16,384], index: 7, kind: output, shape index: {}]
  %s8 = sld [smem:[#allocation0]]
  $region73: #{vima_action_decoder_forward.1} parent=0
    _
  %s10 = ssub.s32 1, %s8
  %s11 = scalar_select 0, %s10, %s8
  $region1: #{vima_action_decoder_forward.1} parent=0
    #allocation2 [shape = 'u8[98304]{0}', space=vmem, size = 0x18000, scoped, tag = 'input window, operand 1, single buffered']
    #allocation3 [shape = 's32[2]{0}', space=sflag, size = 0x8, scoped, tag = 'scoped memory for vima_action_decoder_forward.1']
    #allocation4 [shape = 'u8[98304]{0}', space=vmem, size = 0x18000, scoped, tag = 'input window, operand 3, single buffered']
    #allocation5 [shape = 's32[1]{0}', space=sflag, size = 0x4, scoped, tag = 'scoped memory for vima_action_decoder_forward.1']
    #allocation6 [shape = 'u8[98304]{0}', space=vmem, size = 0x18000, scoped, tag = 'input window, operand 5, single buffered']
    %12 = vsyncpa [#allocation3], 0
    %13 = vsyncpa [#allocation5], 0
    loop: start=0, step=1, limit=4
    $region2: #{vima_action_decoder_forward.1} parent=1 // loop_pre_header
      _
    $region3: #{vima_action_decoder_forward.1} parent=1 // loop_header
      %s15 = sphi 0, %s19
      %p16 = scmp.ge.s32.totalorder %s15, 4
      %s25 = sphi 0, %s27
      %s28 = sphi 0, %s25
      %s29 = sphi 0, %s28
      %s45 = sphi 0, %s29
      %s49 = sphi 0, %s49
      %s51 = sphi 0, %s49
      %s52 = sphi 0, %s51
      %s66 = sphi 0, %s52
      %s70 = sphi 0, %s70
      %s72 = sphi 0, %s70
      %s73 = sphi 0, %s72
      %s87 = sphi 0, %s73
      %s91 = sphi 0, %s91
      %s93 = sphi 0, %s91
      %s94 = sphi 0, %s93
      %s108 = sphi 0, %s94
      %s112 = sphi 0, %s112
      %s114 = sphi 0, %s112
      %s115 = sphi 0, %s114
      %s129 = sphi 0, %s115
      %s133 = sphi 0, %s133
      %s135 = sphi 0, %s133
      %s136 = sphi 0, %s135
      %s150 = sphi 0, %s136
      %s154 = sphi 0, %s154
      %s156 = sphi 0, %s154
      %s157 = sphi 0, %s156
      %s171 = sphi 0, %s157
      %s177 = sphi 0, %s179
      %s180 = sphi 0, %s177
      %s181 = sphi 0, %s180
      %s197 = sphi 0, %s181
    $region4: #{vima_action_decoder_forward.1} parent=1 // loop_header_branch
      %18 = sbr.rel (%p16) target = $region8
    $region5: #{vima_action_decoder_forward.1} parent=1 // loop_body
      %s20 = ssub.s32 %s15, 1
      %s21 = ssub.s32 %s15, 2
      %s22 = sadd.s32 %s15, 1
      %s23 = ssub.s32 %s15, %s22
      %p24 = scmp.eq.s32.totalorder %s23, 0
      %s26 = sadd.s32 %s25, 1
      %s27 = scalar_select %p24, %s25, %s26
      %p30 = pneg %p24
      %p31 = scmp.eq.s32.totalorder %s15, 1
      %p32 = por %p30, %p31
      %p33 = scmp.ne.s32.totalorder %s25, %s28
      %p34 = scmp.eq.s32.totalorder %s15, 0
      %p35 = por %p33, %p34
      %p36 = scmp.ne.s32.totalorder %s25, %s28
      %p37 = scmp.eq.s32.totalorder %s20, 1
      %p38 = por %p36, %p37
      %p39 = scmp.ne.s32.totalorder %s28, %s29
      %p40 = scmp.eq.s32.totalorder %s20, 0
      %p41 = por %p39, %p40
      %p42 = scmp.ne.s32.totalorder %s28, %s29
      %p43 = scmp.eq.s32.totalorder %s21, 1
      %p44 = por %p42, %p43
      %p46 = scmp.ne.s32.totalorder %s29, %s45
      %p47 = scmp.eq.s32.totalorder %s21, 0
      %p48 = por %p46, %p47
      %s50 = sadd.s32 %s49, 1
      %p53 = scmp.eq.s32.totalorder %s15, 1
      %p54 = scmp.ne.s32.totalorder %s49, %s51
      %p55 = scmp.eq.s32.totalorder %s15, 0
      %p56 = por %p54, %p55
      %p57 = scmp.ne.s32.totalorder %s49, %s51
      %p58 = scmp.eq.s32.totalorder %s20, 1
      %p59 = por %p57, %p58
      %p60 = scmp.ne.s32.totalorder %s51, %s52
      %p61 = scmp.eq.s32.totalorder %s20, 0
      %p62 = por %p60, %p61
      %p63 = scmp.ne.s32.totalorder %s51, %s52
      %p64 = scmp.eq.s32.totalorder %s21, 1
      %p65 = por %p63, %p64
      %p67 = scmp.ne.s32.totalorder %s52, %s66
      %p68 = scmp.eq.s32.totalorder %s21, 0
      %p69 = por %p67, %p68
      %s71 = sadd.s32 %s70, 1
      %p74 = scmp.eq.s32.totalorder %s15, 1
      %p75 = scmp.ne.s32.totalorder %s70, %s72
      %p76 = scmp.eq.s32.totalorder %s15, 0
      %p77 = por %p75, %p76
      %p78 = scmp.ne.s32.totalorder %s70, %s72
      %p79 = scmp.eq.s32.totalorder %s20, 1
      %p80 = por %p78, %p79
      %p81 = scmp.ne.s32.totalorder %s72, %s73
      %p82 = scmp.eq.s32.totalorder %s20, 0
      %p83 = por %p81, %p82
      %p84 = scmp.ne.s32.totalorder %s72, %s73
      %p85 = scmp.eq.s32.totalorder %s21, 1
      %p86 = por %p84, %p85
      %p88 = scmp.ne.s32.totalorder %s73, %s87
      %p89 = scmp.eq.s32.totalorder %s21, 0
      %p90 = por %p88, %p89
      %s92 = sadd.s32 %s91, 1
      %p95 = scmp.eq.s32.totalorder %s15, 1
      %p96 = scmp.ne.s32.totalorder %s91, %s93
      %p97 = scmp.eq.s32.totalorder %s15, 0
      %p98 = por %p96, %p97
      %p99 = scmp.ne.s32.totalorder %s91, %s93
      %p100 = scmp.eq.s32.totalorder %s20, 1
      %p101 = por %p99, %p100
      %p102 = scmp.ne.s32.totalorder %s93, %s94
      %p103 = scmp.eq.s32.totalorder %s20, 0
      %p104 = por %p102, %p103
      %p105 = scmp.ne.s32.totalorder %s93, %s94
      %p106 = scmp.eq.s32.totalorder %s21, 1
      %p107 = por %p105, %p106
      %p109 = scmp.ne.s32.totalorder %s94, %s108
      %p110 = scmp.eq.s32.totalorder %s21, 0
      %p111 = por %p109, %p110
      %s113 = sadd.s32 %s112, 1
      %p116 = scmp.eq.s32.totalorder %s15, 1
      %p117 = scmp.ne.s32.totalorder %s112, %s114
      %p118 = scmp.eq.s32.totalorder %s15, 0
      %p119 = por %p117, %p118
      %p120 = scmp.ne.s32.totalorder %s112, %s114
      %p121 = scmp.eq.s32.totalorder %s20, 1
      %p122 = por %p120, %p121
      %p123 = scmp.ne.s32.totalorder %s114, %s115
      %p124 = scmp.eq.s32.totalorder %s20, 0
      %p125 = por %p123, %p124
      %p126 = scmp.ne.s32.totalorder %s114, %s115
      %p127 = scmp.eq.s32.totalorder %s21, 1
      %p128 = por %p126, %p127
      %p130 = scmp.ne.s32.totalorder %s115, %s129
      %p131 = scmp.eq.s32.totalorder %s21, 0
      %p132 = por %p130, %p131
      %s134 = sadd.s32 %s133, 1
      %p137 = scmp.eq.s32.totalorder %s15, 1
      %p138 = scmp.ne.s32.totalorder %s133, %s135
      %p139 = scmp.eq.s32.totalorder %s15, 0
      %p140 = por %p138, %p139
      %p141 = scmp.ne.s32.totalorder %s133, %s135
      %p142 = scmp.eq.s32.totalorder %s20, 1
      %p143 = por %p141, %p142
      %p144 = scmp.ne.s32.totalorder %s135, %s136
      %p145 = scmp.eq.s32.totalorder %s20, 0
      %p146 = por %p144, %p145
      %p147 = scmp.ne.s32.totalorder %s135, %s136
      %p148 = scmp.eq.s32.totalorder %s21, 1
      %p149 = por %p147, %p148
      %p151 = scmp.ne.s32.totalorder %s136, %s150
      %p152 = scmp.eq.s32.totalorder %s21, 0
      %p153 = por %p151, %p152
      %s155 = sadd.s32 %s154, 1
      %p158 = scmp.eq.s32.totalorder %s15, 1
      %p159 = scmp.ne.s32.totalorder %s154, %s156
      %p160 = scmp.eq.s32.totalorder %s15, 0
      %p161 = por %p159, %p160
      %p162 = scmp.ne.s32.totalorder %s154, %s156
      %p163 = scmp.eq.s32.totalorder %s20, 1
      %p164 = por %p162, %p163
      %p165 = scmp.ne.s32.totalorder %s156, %s157
      %p166 = scmp.eq.s32.totalorder %s20, 0
      %p167 = por %p165, %p166
      %p168 = scmp.ne.s32.totalorder %s156, %s157
      %p169 = scmp.eq.s32.totalorder %s21, 1
      %p170 = por %p168, %p169
      %p172 = scmp.ne.s32.totalorder %s157, %s171
      %p173 = scmp.eq.s32.totalorder %s21, 0
      %p174 = por %p172, %p173
      %s175 = ssub.s32 %s15, %s22
      %p176 = scmp.eq.s32.totalorder %s175, 0
      %s178 = sadd.s32 %s177, 1
      %s179 = scalar_select %p176, %s177, %s178
      %p182 = pneg %p176
      %p183 = scmp.eq.s32.totalorder %s15, 1
      %p184 = por %p182, %p183
      %p185 = scmp.ne.s32.totalorder %s177, %s180
      %p186 = scmp.eq.s32.totalorder %s15, 0
      %p187 = por %p185, %p186
      %p188 = scmp.ne.s32.totalorder %s177, %s180
      %p189 = scmp.eq.s32.totalorder %s20, 1
      %p190 = por %p188, %p189
      %p191 = scmp.ne.s32.totalorder %s180, %s181
      %p192 = scmp.eq.s32.totalorder %s20, 0
      %p193 = por %p191, %p192
      %p194 = scmp.ne.s32.totalorder %s180, %s181
      %p195 = scmp.eq.s32.totalorder %s21, 1
      %p196 = por %p194, %p195
      %p198 = scmp.ne.s32.totalorder %s181, %s197
      %p199 = scmp.eq.s32.totalorder %s21, 0
      %p200 = por %p198, %p199
      %p201 = scmp.le.s32.totalorder 1, %s15
      %p202 = scmp.lt.s32.totalorder %s15, 3
      %p203 = pnand %p201, %p202
      %p204 = pneg %p203
      // Predicated region
      $region9: #{vima_action_decoder_forward.1} parent=5 // pred_check
        _
      $region10: #{vima_action_decoder_forward.1} parent=5 // pred_check_branch
        %206 = sbr.rel (%p203) target = $region12
      $region11: #{vima_action_decoder_forward.1} parent=5 // pred_region
        %s207 = ssub.s32 %s15, 1
        // Predicated region
        $region13: #{vima_action_decoder_forward.1} parent=11 // pred_check
          %p208 = pneg %p62
        $region14: #{vima_action_decoder_forward.1} parent=11 // pred_check_branch
          %210 = sbr.rel (%p208) target = $region16
        $region15: #{vima_action_decoder_forward.1} parent=11 // pred_region
          %s212 = ssub.s32 3072, 3072
          %213 = vsyncadd [#allocation3], %s212
          %s214 = sshll.u32 [#allocation2], 4
          %s215 = int_to_ptr.vmem [resolvable:$true] %s214
          %220 = dma.hbm_to_vmem [thread:$0]  %s1, 3072, %s215, [#allocation3], 192, 192, 12
        $region16: #{vima_action_decoder_forward.1} parent=11 // pred_fallthru
          _
        // Predicated region
        $region17: #{vima_action_decoder_forward.1} parent=11 // pred_check
          %p221 = pneg %p83
        $region18: #{vima_action_decoder_forward.1} parent=11 // pred_check_branch
          %223 = sbr.rel (%p221) target = $region20
        $region19: #{vima_action_decoder_forward.1} parent=11 // pred_region
          _
        $region20: #{vima_action_decoder_forward.1} parent=11 // pred_fallthru
          _
        // Predicated region
        $region21: #{vima_action_decoder_forward.1} parent=11 // pred_check
          %p224 = pneg %p104
        $region22: #{vima_action_decoder_forward.1} parent=11 // pred_check_branch
          %226 = sbr.rel (%p224) target = $region24
        $region23: #{vima_action_decoder_forward.1} parent=11 // pred_region
          %s228 = ssub.s32 3072, 3072
          %229 = vsyncadd [#allocation5], %s228
          %s230 = sshll.u32 [#allocation4], 4
          %s231 = int_to_ptr.vmem [resolvable:$true] %s230
          %236 = dma.hbm_to_vmem [thread:$0]  %s3, 3072, %s231, [#allocation5], 64, 64, 4
        $region24: #{vima_action_decoder_forward.1} parent=11 // pred_fallthru
          _
        // Predicated region
        $region25: #{vima_action_decoder_forward.1} parent=11 // pred_check
          %p237 = pneg %p125
        $region26: #{vima_action_decoder_forward.1} parent=11 // pred_check_branch
          %239 = sbr.rel (%p237) target = $region28
        $region27: #{vima_action_decoder_forward.1} parent=11 // pred_region
          _
        $region28: #{vima_action_decoder_forward.1} parent=11 // pred_fallthru
          _
        // Predicated region
        $region29: #{vima_action_decoder_forward.1} parent=11 // pred_check
          %p240 = pneg %p146
        $region30: #{vima_action_decoder_forward.1} parent=11 // pred_check_branch
          %242 = sbr.rel (%p240) target = $region32
        $region31: #{vima_action_decoder_forward.1} parent=11 // pred_region
          %s244 = ssub.s32 3072, 3072
          %245 = vsyncadd [#allocation5], %s244
          %s246 = sshll.u32 [#allocation6], 4
          %s247 = int_to_ptr.vmem [resolvable:$true] %s246
          %252 = dma.hbm_to_vmem [thread:$0]  %s5, 3072, %s247, [#allocation5], 64, 64, 4
        $region32: #{vima_action_decoder_forward.1} parent=11 // pred_fallthru
          _
        // Predicated region
        $region33: #{vima_action_decoder_forward.1} parent=11 // pred_check
          %p253 = pneg %p167
        $region34: #{vima_action_decoder_forward.1} parent=11 // pred_check_branch
          %255 = sbr.rel (%p253) target = $region36
        $region35: #{vima_action_decoder_forward.1} parent=11 // pred_region
          _
        $region36: #{vima_action_decoder_forward.1} parent=11 // pred_fallthru
          _
      $region12: #{vima_action_decoder_forward.1} parent=5 // pred_fallthru
        _
      %p256 = scmp.lt.s32.totalorder %s15, 2
      // Predicated region
      $region37: #{vima_action_decoder_forward.1} parent=5 // pred_check
        %p257 = pneg %p256
      $region38: #{vima_action_decoder_forward.1} parent=5 // pred_check_branch
        %259 = sbr.rel (%p257) target = $region40
      $region39: #{vima_action_decoder_forward.1} parent=5 // pred_region
        // Predicated region
        $region41: #{vima_action_decoder_forward.1} parent=39 // pred_check
          %p260 = pneg %p35
        $region42: #{vima_action_decoder_forward.1} parent=39 // pred_check_branch
          %262 = sbr.rel (%p260) target = $region44
        $region43: #{vima_action_decoder_forward.1} parent=39 // pred_region
          %p263 = scmp.lt.s32.totalorder %s15, 1
          %s264 = scalar_select %p263, %s15, 1
          %s265 = smul.addr %s264, 5
          %s266 = sadd.s32 3, %s265
          %s267 = smul.addr %s266, 8
          %s268 = scalar_lea.vmem %s0, %s267
        $region44: #{vima_action_decoder_forward.1} parent=39 // pred_fallthru
          _
      $region40: #{vima_action_decoder_forward.1} parent=5 // pred_fallthru
        _
      %p269 = scmp.le.s32.totalorder 1, %s15
      %p270 = scmp.lt.s32.totalorder %s15, 3
      %p271 = pnand %p269, %p270
      %p272 = pneg %p271
      // Predicated region
      $region45: #{vima_action_decoder_forward.1} parent=5 // pred_check
        _
      $region46: #{vima_action_decoder_forward.1} parent=5 // pred_check_branch
        %274 = sbr.rel (%p271) target = $region48
      $region47: #{vima_action_decoder_forward.1} parent=5 // pred_region
        %s275 = ssub.s32 %s15, 1
        // Predicated region
        $region49: #{vima_action_decoder_forward.1} parent=47 // pred_check
          %p276 = pneg %p62
        $region50: #{vima_action_decoder_forward.1} parent=47 // pred_check_branch
          %278 = sbr.rel (%p276) target = $region52
        $region51: #{vima_action_decoder_forward.1} parent=47 // pred_region
          %279 = dma.done [#allocation3], 3072
        $region52: #{vima_action_decoder_forward.1} parent=47 // pred_fallthru
          _
        // Predicated region
        $region53: #{vima_action_decoder_forward.1} parent=47 // pred_check
          %p280 = pneg %p104
        $region54: #{vima_action_decoder_forward.1} parent=47 // pred_check_branch
          %282 = sbr.rel (%p280) target = $region56
        $region55: #{vima_action_decoder_forward.1} parent=47 // pred_region
          %283 = dma.done [#allocation5], 3072
        $region56: #{vima_action_decoder_forward.1} parent=47 // pred_fallthru
          _
        // Predicated region
        $region57: #{vima_action_decoder_forward.1} parent=47 // pred_check
          %p284 = pneg %p146
        $region58: #{vima_action_decoder_forward.1} parent=47 // pred_check_branch
          %286 = sbr.rel (%p284) target = $region60
        $region59: #{vima_action_decoder_forward.1} parent=47 // pred_region
          %287 = dma.done [#allocation5], 3072
        $region60: #{vima_action_decoder_forward.1} parent=47 // pred_fallthru
          _
        %p288 = scmp.lt.s32.totalorder %s20, 1
        %s289 = scalar_select %p288, %s20, 1
        %s290 = smul.addr %s289, 5
        %s291 = sadd.s32 3, %s290
        %s292 = smul.addr %s291, 8
        %s293 = scalar_lea.vmem %s0, %s292
        %p294 = pneg %p41
        %p295 = pneg %p38
        %p296 = pneg %p62
        %p297 = pneg %p59
        %p298 = pneg %p83
        %p299 = pneg %p80
        %p300 = pneg %p104
        %p301 = pneg %p101
        %p302 = pneg %p125
        %p303 = pneg %p122
        %p304 = pneg %p146
        %p305 = pneg %p143
        %p306 = pneg %p167
        %p307 = pneg %p164
        %p308 = pneg %p193
        %p309 = pneg %p190
        %p310 = scmp.lt.s32.totalorder %s20, 1
        %s311 = scalar_select %p310, %s20, 1
        %s312 = smul.addr %s311, 3
        %s313 = smul.addr %s312, 8
        %s314 = scalar_lea.vmem %s7, %s313
        %p315 = scmp.lt.s32.totalorder %s20, 1
        %s316 = scalar_select %p315, %s20, 1
        %s317 = smul.addr %s316, 5
        %s318 = sadd.s32 3, %s317
        %s319 = smul.addr %s318, 8
        %s320 = scalar_lea.vmem %s0, %s319
        %p321 = scmp.lt.s32.totalorder %s20, 1
        %s322 = scalar_select %p321, %s20, 1
        %s323 = smul.addr %s322, 3
        %s324 = smul.addr %s323, 8
        %s325 = scalar_lea.vmem %s7, %s324
        %v327 = vld [vmem:[%s320] sm:$0xff]
        %v328 = vpack.c.bf16 %v327, %v327
        %v329 = vld [vmem:[#allocation2] sm:$0xff]
        %v330 = vld [vmem:[#allocation2 + $0x8] sm:$0xf]
        %v331 = vld [vmem:[#allocation2 + $0xc] sm:$0xff]
        %v332 = vld [vmem:[#allocation2 + $0x14] sm:$0xf]
        %v333 = vld [vmem:[#allocation2 + $0x18] sm:$0xff]
        %v334 = vld [vmem:[#allocation2 + $0x20] sm:$0xf]
        %v335 = vld [vmem:[#allocation2 + $0x24] sm:$0xff]
        %v336 = vld [vmem:[#allocation2 + $0x2c] sm:$0xf]
        %v337 = vld [vmem:[#allocation2 + $0x30] sm:$0xff]
        %v338 = vld [vmem:[#allocation2 + $0x38] sm:$0xf]
        %v339 = vld [vmem:[#allocation2 + $0x3c] sm:$0xff]
        %v340 = vld [vmem:[#allocation2 + $0x44] sm:$0xf]
        %v341 = vld [vmem:[#allocation2 + $0x48] sm:$0xff]
        %v342 = vld [vmem:[#allocation2 + $0x50] sm:$0xf]
        %v343 = vld [vmem:[#allocation2 + $0x54] sm:$0xff]
        %v344 = vld [vmem:[#allocation2 + $0x5c] sm:$0xf]
        %v345 = vld [vmem:[#allocation2 + $0x60] sm:$0xff]
        %v346 = vld [vmem:[#allocation2 + $0x68] sm:$0xf]
        %v347 = vld [vmem:[#allocation2 + $0x6c] sm:$0xff]
        %v348 = vld [vmem:[#allocation2 + $0x74] sm:$0xf]
        %v349 = vld [vmem:[#allocation2 + $0x78] sm:$0xff]
        %v350 = vld [vmem:[#allocation2 + $0x80] sm:$0xf]
        %v351 = vld [vmem:[#allocation2 + $0x84] sm:$0xff]
        %v352 = vld [vmem:[#allocation2 + $0x8c] sm:$0xf]
        %v353 = vld [vmem:[#allocation2 + $0x90] sm:$0xff]
        %v354 = vld [vmem:[#allocation2 + $0x98] sm:$0xf]
        %v355 = vld [vmem:[#allocation2 + $0x9c] sm:$0xff]
        %v356 = vld [vmem:[#allocation2 + $0xa4] sm:$0xf]
        %v357 = vld [vmem:[#allocation2 + $0xa8] sm:$0xff]
        %v358 = vld [vmem:[#allocation2 + $0xb0] sm:$0xf]
        %v359 = vld [vmem:[#allocation2 + $0xb4] sm:$0xff]
        %v360 = vld [vmem:[#allocation2 + $0xbc] sm:$0xf]
        %v361 = vld [vmem:[%s2] sm:$0x7]
        %v363 = vlaneseq
        %v364 = vshrl.u32 %v363, 7
        %v365 = vsub.s32 0, %v364
        %v366 = vrot.slane %v361, %v365
        %v367 = vlaneseq
        %v368 = vshrl.u32 %v367, 7
        %v369 = vsub.s32 1, %v368
        %v370 = vrot.slane %v361, %v369
        %v371 = vlaneseq
        %v372 = vshrl.u32 %v371, 7
        %v373 = vsub.s32 2, %v372
        %v374 = vrot.slane %v361, %v373
        %v410 = vunpack.c.l.b16 %v329
        %v411 = vunpack.c.h.b16 %v329
        %v412 = vunpack.c.l.b16 %v330
        %v413 = vunpack.c.l.b16 %v331
        %v414 = vunpack.c.h.b16 %v331
        %v415 = vunpack.c.l.b16 %v332
        %v416 = vunpack.c.l.b16 %v333
        %v417 = vunpack.c.h.b16 %v333
        %v418 = vunpack.c.l.b16 %v334
        %v419 = vunpack.c.l.b16 %v335
        %v420 = vunpack.c.h.b16 %v335
        %v421 = vunpack.c.l.b16 %v336
        %v422 = vunpack.c.l.b16 %v337
        %v423 = vunpack.c.h.b16 %v337
        %v424 = vunpack.c.l.b16 %v338
        %v425 = vunpack.c.l.b16 %v339
        %v426 = vunpack.c.h.b16 %v339
        %v427 = vunpack.c.l.b16 %v340
        %v428 = vunpack.c.l.b16 %v341
        %v429 = vunpack.c.h.b16 %v341
        %v430 = vunpack.c.l.b16 %v342
        %v431 = vunpack.c.l.b16 %v343
        %v432 = vunpack.c.h.b16 %v343
        %v433 = vunpack.c.l.b16 %v344
        %v434 = vunpack.c.l.b16 %v345
        %v435 = vunpack.c.h.b16 %v345
        %v436 = vunpack.c.l.b16 %v346
        %v437 = vunpack.c.l.b16 %v347
        %v438 = vunpack.c.h.b16 %v347
        %v439 = vunpack.c.l.b16 %v348
        %v440 = vunpack.c.l.b16 %v349
        %v441 = vunpack.c.h.b16 %v349
        %v442 = vunpack.c.l.b16 %v350
        %v443 = vunpack.c.l.b16 %v351
        %v444 = vunpack.c.h.b16 %v351
        %v445 = vunpack.c.l.b16 %v352
        %v446 = vunpack.c.l.b16 %v353
        %v447 = vunpack.c.h.b16 %v353
        %v448 = vunpack.c.l.b16 %v354
        %v449 = vunpack.c.l.b16 %v355
        %v450 = vunpack.c.h.b16 %v355
        %v451 = vunpack.c.l.b16 %v356
        %v452 = vunpack.c.l.b16 %v357
        %v453 = vunpack.c.h.b16 %v357
        %v454 = vunpack.c.l.b16 %v358
        %v455 = vunpack.c.l.b16 %v359
        %v456 = vunpack.c.h.b16 %v359
        %v457 = vunpack.c.l.b16 %v360
        %v458 = vpack.c.b16 %v413, %v410
        %v459 = vpack.c.b16 %v414, %v411
        %v460 = vpack.c.b16 %v415, %v412
        %v461 = vpack.c.b16 %v419, %v416
        %v462 = vpack.c.b16 %v420, %v417
        %v463 = vpack.c.b16 %v421, %v418
        %v464 = vpack.c.b16 %v425, %v422
        %v465 = vpack.c.b16 %v426, %v423
        %v466 = vpack.c.b16 %v427, %v424
        %v467 = vpack.c.b16 %v431, %v428
        %v468 = vpack.c.b16 %v432, %v429
        %v469 = vpack.c.b16 %v433, %v430
        %v470 = vpack.c.b16 %v437, %v434
        %v471 = vpack.c.b16 %v438, %v435
        %v472 = vpack.c.b16 %v439, %v436
        %v473 = vpack.c.b16 %v443, %v440
        %v474 = vpack.c.b16 %v444, %v441
        %v475 = vpack.c.b16 %v445, %v442
        %v476 = vpack.c.b16 %v449, %v446
        %v477 = vpack.c.b16 %v450, %v447
        %v478 = vpack.c.b16 %v451, %v448
        %v479 = vpack.c.b16 %v455, %v452
        %v480 = vpack.c.b16 %v456, %v453
        %v481 = vpack.c.b16 %v457, %v454
        %506 = vmatprep.subr.bf16.mxu0 %v459
        %507 = vmatpush1.bf16.msra.mxu0 %v458
        %508 = vmatprep.subr.bf16.mxu0 %v462
        %509 = vmatpush1.bf16.msra.mxu0 %v461
        %510 = vmatprep.subr.bf16.mxu0 %v465
        %511 = vmatpush1.bf16.msra.mxu0 %v464
        %512 = vmatprep.subr.bf16.mxu0 %v468
        %513 = vmatpush1.bf16.msra.mxu0 %v467
        %514 = vmatprep.subr.bf16.mxu0 %v471
        %515 = vmatpush1.bf16.msra.mxu0 %v470
        %516 = vmatprep.subr.bf16.mxu0 %v474
        %517 = vmatpush1.bf16.msra.mxu0 %v473
        %518 = vmatprep.subr.bf16.mxu0 %v477
        %519 = vmatpush1.bf16.msra.mxu0 %v476
        %520 = vmatprep.subr.bf16.mxu0 %v480
        %521 = vmatpush1.bf16.msra.mxu0 %v479
        %522 = vmatprep.subr.bf16.mxu0 0
        %523 = vmatpush1.bf16.msra.mxu0 0
        %524 = vmatprep.subr.bf16.mxu0 0
        %525 = vmatpush1.bf16.msra.mxu0 0
        %526 = vmatprep.subr.bf16.mxu0 0
        %527 = vmatpush1.bf16.msra.mxu0 0
        %528 = vmatprep.subr.bf16.mxu0 0
        %529 = vmatpush1.bf16.msra.mxu0 0
        %530 = vmatprep.subr.bf16.mxu0 0
        %531 = vmatpush1.bf16.msra.mxu0 0
        %532 = vmatprep.subr.bf16.mxu0 0
        %533 = vmatpush1.bf16.msra.mxu0 0
        %534 = vmatprep.subr.bf16.mxu0 0
        %535 = vmatpush1.bf16.msra.mxu0 0
        %536 = vmatprep.subr.bf16.mxu0 0
        %537 = vmatpush1.bf16.msra.mxu0 0
        %538 = vmatprep.mubr.bf16.mxu0 0
        %539 = vmatmul.mubr.bf16.gmra.mrb[0].mxu0 %v328
        %v540 = vpop.f32.mrb[0].mxu0
        %v541 = vadd.f32 %v366, %v540
        %v542 = vpop.f32.mrb[0].mxu0
        %v543 = vadd.f32 %v370, %v542
        %v544 = vpop.f32.mrb[0].mxu0
        %v545 = vpop.f32.mrb[0].mxu0
        %546 = vdwg.mxu0
        %547 = vmatprep.subr.bf16.mxu0 0
        %548 = vmatpush1.bf16.msra.mxu0 %v460
        %549 = vmatprep.subr.bf16.mxu0 0
        %550 = vmatpush1.bf16.msra.mxu0 %v463
        %551 = vmatprep.subr.bf16.mxu0 0
        %552 = vmatpush1.bf16.msra.mxu0 %v466
        %553 = vmatprep.subr.bf16.mxu0 0
        %554 = vmatpush1.bf16.msra.mxu0 %v469
        %555 = vmatprep.subr.bf16.mxu0 0
        %556 = vmatpush1.bf16.msra.mxu0 %v472
        %557 = vmatprep.subr.bf16.mxu0 0
        %558 = vmatpush1.bf16.msra.mxu0 %v475
        %559 = vmatprep.subr.bf16.mxu0 0
        %560 = vmatpush1.bf16.msra.mxu0 %v478
        %561 = vmatprep.subr.bf16.mxu0 0
        %562 = vmatpush1.bf16.msra.mxu0 %v481
        %563 = vmatprep.subr.bf16.mxu0 0
        %564 = vmatpush1.bf16.msra.mxu0 0
        %565 = vmatprep.subr.bf16.mxu0 0
        %566 = vmatpush1.bf16.msra.mxu0 0
        %567 = vmatprep.subr.bf16.mxu0 0
        %568 = vmatpush1.bf16.msra.mxu0 0
        %569 = vmatprep.subr.bf16.mxu0 0
        %570 = vmatpush1.bf16.msra.mxu0 0
        %571 = vmatprep.subr.bf16.mxu0 0
        %572 = vmatpush1.bf16.msra.mxu0 0
        %573 = vmatprep.subr.bf16.mxu0 0
        %574 = vmatpush1.bf16.msra.mxu0 0
        %575 = vmatprep.subr.bf16.mxu0 0
        %576 = vmatpush1.bf16.msra.mxu0 0
        %577 = vmatprep.subr.bf16.mxu0 0
        %578 = vmatpush1.bf16.msra.mxu0 0
        %579 = vmatprep.mubr.bf16.mxu0 0
        %580 = vmatmul.mubr.bf16.gmra.mrb[0].mxu0 %v328
        %v581 = vpop.f32.mrb[0].mxu0
        %v582 = vadd.f32 %v374, %v581
        %v583 = vpop.f32.mrb[0].mxu0
        %v584 = vpop.f32.mrb[0].mxu0
        %v585 = vpop.f32.mrb[0].mxu0
        %586 = vdwg.mxu0
        %v587 = vmax.f32 %v541, 0.0
        %v588 = vmax.f32 %v543, 0.0
        %v589 = vmax.f32 %v582, 0.0
        %v590 = vpack.c.bf16 %v587, %v587
        %v591 = vpack.c.bf16 %v588, %v588
        %v592 = vpack.c.bf16 %v589, %v589
        %v593 = vld [vmem:[#allocation4] sm:$0xf]
        %v594 = vld [vmem:[#allocation4 + $0x4] sm:$0xf]
        %v595 = vld [vmem:[#allocation4 + $0x8] sm:$0xf]
        %v596 = vld [vmem:[#allocation4 + $0xc] sm:$0xf]
        %v597 = vld [vmem:[%s4] sm:$0x1]
        %v599 = vlaneseq
        %v600 = vshrl.u32 %v599, 7
        %v601 = vsub.s32 0, %v600
        %v602 = vrot.slane %v597, %v601
        %v608 = vunpack.c.l.b16 %v593
        %v609 = vunpack.c.l.b16 %v594
        %v610 = vunpack.c.l.b16 %v595
        %v611 = vunpack.c.l.b16 %v596
        %v612 = vpack.c.b16 %v609, %v608
        %v613 = vpack.c.b16 %v611, %v610
        %vm616 = vcmask 261120
        %v618 = vsel %vm616, %v590, 0
        %620 = vmatprep.subr.bf16.mxu0 0
        %621 = vmatpush1.bf16.msra.mxu0 %v612
        %622 = vmatprep.subr.bf16.mxu0 0
        %623 = vmatpush1.bf16.msra.mxu0 %v613
        %624 = vmatprep.subr.bf16.mxu0 0
        %625 = vmatpush1.bf16.msra.mxu0 0
        %626 = vmatprep.subr.bf16.mxu0 0
        %627 = vmatpush1.bf16.msra.mxu0 0
        %628 = vmatprep.subr.bf16.mxu0 0
        %629 = vmatpush1.bf16.msra.mxu0 0
        %630 = vmatprep.subr.bf16.mxu0 0
        %631 = vmatpush1.bf16.msra.mxu0 0
        %632 = vmatprep.subr.bf16.mxu0 0
        %633 = vmatpush1.bf16.msra.mxu0 0
        %634 = vmatprep.subr.bf16.mxu0 0
        %635 = vmatpush1.bf16.msra.mxu0 0
        %636 = vmatprep.subr.bf16.mxu0 0
        %637 = vmatpush1.bf16.msra.mxu0 0
        %638 = vmatprep.subr.bf16.mxu0 0
        %639 = vmatpush1.bf16.msra.mxu0 0
        %640 = vmatprep.subr.bf16.mxu0 0
        %641 = vmatpush1.bf16.msra.mxu0 0
        %642 = vmatprep.subr.bf16.mxu0 0
        %643 = vmatpush1.bf16.msra.mxu0 0
        %644 = vmatprep.subr.bf16.mxu0 0
        %645 = vmatpush1.bf16.msra.mxu0 0
        %646 = vmatprep.subr.bf16.mxu0 0
        %647 = vmatpush1.bf16.msra.mxu0 0
        %648 = vmatprep.subr.bf16.mxu0 0
        %649 = vmatpush1.bf16.msra.mxu0 0
        %650 = vmatprep.subr.bf16.mxu0 0
        %651 = vmatpush1.bf16.msra.mxu0 0
        %652 = vmatprep.mubr.bf16.mxu0 0
        %653 = vmatmul.mubr.bf16.gmra.mrb[0].mxu0 %v618
        %v654 = vpop.f32.mrb[0].mxu0
        %v655 = vadd.f32 %v602, %v654
        %v656 = vpop.f32.mrb[0].mxu0
        %v657 = vpop.f32.mrb[0].mxu0
        %v658 = vpop.f32.mrb[0].mxu0
        %659 = vdwg.mxu0
        %v660 = vmax.f32 %v655, 0.0
        %v661 = vpack.c.bf16 %v660, %v660
        %v662 = vld [vmem:[#allocation6] sm:$0xf]
        %v663 = vld [vmem:[#allocation6 + $0x4] sm:$0xf]
        %v664 = vld [vmem:[#allocation6 + $0x8] sm:$0xf]
        %v665 = vld [vmem:[#allocation6 + $0xc] sm:$0xf]
        %v666 = vld [vmem:[%s6] sm:$0x1]
        %v668 = vlaneseq
        %v669 = vshrl.u32 %v668, 7
        %v670 = vsub.s32 0, %v669
        %v671 = vrot.slane %v666, %v670
        %v677 = vunpack.c.l.b16 %v662
        %v678 = vunpack.c.l.b16 %v663
        %v679 = vunpack.c.l.b16 %v664
        %v680 = vunpack.c.l.b16 %v665
        %v681 = vpack.c.b16 %v678, %v677
        %v682 = vpack.c.b16 %v680, %v679
        %v686 = vsel %vm616, %v661, 0
        %688 = vmatprep.subr.bf16.mxu0 0
        %689 = vmatpush1.bf16.msra.mxu0 %v681
        %690 = vmatprep.subr.bf16.mxu0 0
        %691 = vmatpush1.bf16.msra.mxu0 %v682
        %692 = vmatprep.subr.bf16.mxu0 0
        %693 = vmatpush1.bf16.msra.mxu0 0
        %694 = vmatprep.subr.bf16.mxu0 0
        %695 = vmatpush1.bf16.msra.mxu0 0
        %696 = vmatprep.subr.bf16.mxu0 0
        %697 = vmatpush1.bf16.msra.mxu0 0
        %698 = vmatprep.subr.bf16.mxu0 0
        %699 = vmatpush1.bf16.msra.mxu0 0
        %700 = vmatprep.subr.bf16.mxu0 0
        %701 = vmatpush1.bf16.msra.mxu0 0
        %702 = vmatprep.subr.bf16.mxu0 0
        %703 = vmatpush1.bf16.msra.mxu0 0
        %704 = vmatprep.subr.bf16.mxu0 0
        %705 = vmatpush1.bf16.msra.mxu0 0
        %706 = vmatprep.subr.bf16.mxu0 0
        %707 = vmatpush1.bf16.msra.mxu0 0
        %708 = vmatprep.subr.bf16.mxu0 0
        %709 = vmatpush1.bf16.msra.mxu0 0
        %710 = vmatprep.subr.bf16.mxu0 0
        %711 = vmatpush1.bf16.msra.mxu0 0
        %712 = vmatprep.subr.bf16.mxu0 0
        %713 = vmatpush1.bf16.msra.mxu0 0
        %714 = vmatprep.subr.bf16.mxu0 0
        %715 = vmatpush1.bf16.msra.mxu0 0
        %716 = vmatprep.subr.bf16.mxu0 0
        %717 = vmatpush1.bf16.msra.mxu0 0
        %718 = vmatprep.subr.bf16.mxu0 0
        %719 = vmatpush1.bf16.msra.mxu0 0
        %720 = vmatprep.mubr.bf16.mxu0 0
        %721 = vmatmul.mubr.bf16.gmra.mrb[0].mxu0 %v686
        %v722 = vpop.f32.mrb[0].mxu0
        %v723 = vadd.f32 %v671, %v722
        %v724 = vpop.f32.mrb[0].mxu0
        %v725 = vpop.f32.mrb[0].mxu0
        %v726 = vpop.f32.mrb[0].mxu0
        %727 = vdwg.mxu0
        %728 = vst.msk [vmem:[%s325] sm:$0xff] %vm616, %v723
        %s729 = scalar_lea.vmem [#allocation4], 16
        %v730 = vld [vmem:[%s729] sm:$0xf]
        %v731 = vld [vmem:[%s729 + $0x4] sm:$0xf]
        %v732 = vld [vmem:[%s729 + $0x8] sm:$0xf]
        %v733 = vld [vmem:[%s729 + $0xc] sm:$0xf]
        %s734 = scalar_lea.vmem %s4, 1
        %v735 = vld [vmem:[%s734] sm:$0x1]
        %v737 = vlaneseq
        %v738 = vshrl.u32 %v737, 7
        %v739 = vsub.s32 0, %v738
        %v740 = vrot.slane %v735, %v739
        %743 = vrot.lane.b32.xlu0 %v590, 96
        %v744 = vpop.permute.xlu0 %743
        %v749 = vunpack.c.l.b16 %v730
        %v750 = vunpack.c.l.b16 %v731
        %v751 = vunpack.c.l.b16 %v732
        %v752 = vunpack.c.l.b16 %v733
        %v753 = vpack.c.b16 %v750, %v749
        %v754 = vpack.c.b16 %v752, %v751
        %v758 = vsel %vm616, %v744, 0
        %760 = vmatprep.subr.bf16.mxu0 0
        %761 = vmatpush1.bf16.msra.mxu0 %v753
        %762 = vmatprep.subr.bf16.mxu0 0
        %763 = vmatpush1.bf16.msra.mxu0 %v754
        %764 = vmatprep.subr.bf16.mxu0 0
        %765 = vmatpush1.bf16.msra.mxu0 0
        %766 = vmatprep.subr.bf16.mxu0 0
        %767 = vmatpush1.bf16.msra.mxu0 0
        %768 = vmatprep.subr.bf16.mxu0 0
        %769 = vmatpush1.bf16.msra.mxu0 0
        %770 = vmatprep.subr.bf16.mxu0 0
        %771 = vmatpush1.bf16.msra.mxu0 0
        %772 = vmatprep.subr.bf16.mxu0 0
        %773 = vmatpush1.bf16.msra.mxu0 0
        %774 = vmatprep.subr.bf16.mxu0 0
        %775 = vmatpush1.bf16.msra.mxu0 0
        %776 = vmatprep.subr.bf16.mxu0 0
        %777 = vmatpush1.bf16.msra.mxu0 0
        %778 = vmatprep.subr.bf16.mxu0 0
        %779 = vmatpush1.bf16.msra.mxu0 0
        %780 = vmatprep.subr.bf16.mxu0 0
        %781 = vmatpush1.bf16.msra.mxu0 0
        %782 = vmatprep.subr.bf16.mxu0 0
        %783 = vmatpush1.bf16.msra.mxu0 0
        %784 = vmatprep.subr.bf16.mxu0 0
        %785 = vmatpush1.bf16.msra.mxu0 0
        %786 = vmatprep.subr.bf16.mxu0 0
        %787 = vmatpush1.bf16.msra.mxu0 0
        %788 = vmatprep.subr.bf16.mxu0 0
        %789 = vmatpush1.bf16.msra.mxu0 0
        %790 = vmatprep.subr.bf16.mxu0 0
        %791 = vmatpush1.bf16.msra.mxu0 0
        %792 = vmatprep.mubr.bf16.mxu0 0
        %793 = vmatmul.mubr.bf16.gmra.mrb[0].mxu0 %v758
        %v794 = vpop.f32.mrb[0].mxu0
        %v795 = vadd.f32 %v740, %v794
        %v796 = vpop.f32.mrb[0].mxu0
        %v797 = vpop.f32.mrb[0].mxu0
        %v798 = vpop.f32.mrb[0].mxu0
        %799 = vdwg.mxu0
        %v800 = vmax.f32 %v795, 0.0
        %v801 = vpack.c.bf16 %v800, %v800
        %s802 = scalar_lea.vmem [#allocation6], 16
        %v803 = vld [vmem:[%s802] sm:$0xf]
        %v804 = vld [vmem:[%s802 + $0x4] sm:$0xf]
        %v805 = vld [vmem:[%s802 + $0x8] sm:$0xf]
        %v806 = vld [vmem:[%s802 + $0xc] sm:$0xf]
        %s807 = scalar_lea.vmem %s6, 1
        %v808 = vld [vmem:[%s807] sm:$0x1]
        %v810 = vlaneseq
        %v811 = vshrl.u32 %v810, 7
        %v812 = vsub.s32 0, %v811
        %v813 = vrot.slane %v808, %v812
        %v819 = vunpack.c.l.b16 %v803
        %v820 = vunpack.c.l.b16 %v804
        %v821 = vunpack.c.l.b16 %v805
        %v822 = vunpack.c.l.b16 %v806
        %v823 = vpack.c.b16 %v820, %v819
        %v824 = vpack.c.b16 %v822, %v821
        %v828 = vsel %vm616, %v801, 0
        %830 = vmatprep.subr.bf16.mxu0 0
        %831 = vmatpush1.bf16.msra.mxu0 %v823
        %832 = vmatprep.subr.bf16.mxu0 0
        %833 = vmatpush1.bf16.msra.mxu0 %v824
        %834 = vmatprep.subr.bf16.mxu0 0
        %835 = vmatpush1.bf16.msra.mxu0 0
        %836 = vmatprep.subr.bf16.mxu0 0
        %837 = vmatpush1.bf16.msra.mxu0 0
        %838 = vmatprep.subr.bf16.mxu0 0
        %839 = vmatpush1.bf16.msra.mxu0 0
        %840 = vmatprep.subr.bf16.mxu0 0
        %841 = vmatpush1.bf16.msra.mxu0 0
        %842 = vmatprep.subr.bf16.mxu0 0
        %843 = vmatpush1.bf16.msra.mxu0 0
        %844 = vmatprep.subr.bf16.mxu0 0
        %845 = vmatpush1.bf16.msra.mxu0 0
        %846 = vmatprep.subr.bf16.mxu0 0
        %847 = vmatpush1.bf16.msra.mxu0 0
        %848 = vmatprep.subr.bf16.mxu0 0
        %849 = vmatpush1.bf16.msra.mxu0 0
        %850 = vmatprep.subr.bf16.mxu0 0
        %851 = vmatpush1.bf16.msra.mxu0 0
        %852 = vmatprep.subr.bf16.mxu0 0
        %853 = vmatpush1.bf16.msra.mxu0 0
        %854 = vmatprep.subr.bf16.mxu0 0
        %855 = vmatpush1.bf16.msra.mxu0 0
        %856 = vmatprep.subr.bf16.mxu0 0
        %857 = vmatpush1.bf16.msra.mxu0 0
        %858 = vmatprep.subr.bf16.mxu0 0
        %859 = vmatpush1.bf16.msra.mxu0 0
        %860 = vmatprep.subr.bf16.mxu0 0
        %861 = vmatpush1.bf16.msra.mxu0 0
        %862 = vmatprep.mubr.bf16.mxu0 0
        %863 = vmatmul.mubr.bf16.gmra.mrb[0].mxu0 %v828
        %v864 = vpop.f32.mrb[0].mxu0
        %v865 = vadd.f32 %v813, %v864
        %v866 = vpop.f32.mrb[0].mxu0
        %v867 = vpop.f32.mrb[0].mxu0
        %v868 = vpop.f32.mrb[0].mxu0
        %869 = vdwg.mxu0
        %871 = vrot.lane.b32.xlu0 %v865, 32
        %v872 = vpop.permute.xlu0 %871
        %vm874 = vcmask 523520
        %875 = vst.msk [vmem:[%s325] sm:$0xff] %vm874, %v872
        %s876 = scalar_lea.vmem [#allocation4], 32
        %v877 = vld [vmem:[%s876] sm:$0xf]
        %v878 = vld [vmem:[%s876 + $0x4] sm:$0xf]
        %v879 = vld [vmem:[%s876 + $0x8] sm:$0xf]
        %v880 = vld [vmem:[%s876 + $0xc] sm:$0xf]
        %s881 = scalar_lea.vmem %s4, 2
        %v882 = vld [vmem:[%s881] sm:$0x1]
        %v884 = vlaneseq
        %v885 = vshrl.u32 %v884, 7
        %v886 = vsub.s32 0, %v885
        %v887 = vrot.slane %v882, %v886
        %889 = vrot.lane.b32.xlu0 %v590, 64
        %v890 = vpop.permute.xlu0 %889
        %v895 = vunpack.c.l.b16 %v877
        %v896 = vunpack.c.l.b16 %v878
        %v897 = vunpack.c.l.b16 %v879
        %v898 = vunpack.c.l.b16 %v880
        %v899 = vpack.c.b16 %v896, %v895
        %v900 = vpack.c.b16 %v898, %v897
        %v904 = vsel %vm616, %v890, 0
        %906 = vmatprep.subr.bf16.mxu0 0
        %907 = vmatpush1.bf16.msra.mxu0 %v899
        %908 = vmatprep.subr.bf16.mxu0 0
        %909 = vmatpush1.bf16.msra.mxu0 %v900
        %910 = vmatprep.subr.bf16.mxu0 0
        %911 = vmatpush1.bf16.msra.mxu0 0
        %912 = vmatprep.subr.bf16.mxu0 0
        %913 = vmatpush1.bf16.msra.mxu0 0
        %914 = vmatprep.subr.bf16.mxu0 0
        %915 = vmatpush1.bf16.msra.mxu0 0
        %916 = vmatprep.subr.bf16.mxu0 0
        %917 = vmatpush1.bf16.msra.mxu0 0
        %918 = vmatprep.subr.bf16.mxu0 0
        %919 = vmatpush1.bf16.msra.mxu0 0
        %920 = vmatprep.subr.bf16.mxu0 0
        %921 = vmatpush1.bf16.msra.mxu0 0
        %922 = vmatprep.subr.bf16.mxu0 0
        %923 = vmatpush1.bf16.msra.mxu0 0
        %924 = vmatprep.subr.bf16.mxu0 0
        %925 = vmatpush1.bf16.msra.mxu0 0
        %926 = vmatprep.subr.bf16.mxu0 0
        %927 = vmatpush1.bf16.msra.mxu0 0
        %928 = vmatprep.subr.bf16.mxu0 0
        %929 = vmatpush1.bf16.msra.mxu0 0
        %930 = vmatprep.subr.bf16.mxu0 0
        %931 = vmatpush1.bf16.msra.mxu0 0
        %932 = vmatprep.subr.bf16.mxu0 0
        %933 = vmatpush1.bf16.msra.mxu0 0
        %934 = vmatprep.subr.bf16.mxu0 0
        %935 = vmatpush1.bf16.msra.mxu0 0
        %936 = vmatprep.subr.bf16.mxu0 0
        %937 = vmatpush1.bf16.msra.mxu0 0
        %938 = vmatprep.mubr.bf16.mxu0 0
        %939 = vmatmul.mubr.bf16.gmra.mrb[0].mxu0 %v904
        %v940 = vpop.f32.mrb[0].mxu0
        %v941 = vadd.f32 %v887, %v940
        %v942 = vpop.f32.mrb[0].mxu0
        %v943 = vpop.f32.mrb[0].mxu0
        %v944 = vpop.f32.mrb[0].mxu0
        %945 = vdwg.mxu0
        %v946 = vmax.f32 %v941, 0.0
        %v947 = vpack.c.bf16 %v946, %v946
        %s948 = scalar_lea.vmem [#allocation6], 32
        %v949 = vld [vmem:[%s948] sm:$0xf]
        %v950 = vld [vmem:[%s948 + $0x4] sm:$0xf]
        %v951 = vld [vmem:[%s948 + $0x8] sm:$0xf]
        %v952 = vld [vmem:[%s948 + $0xc] sm:$0xf]
        %s953 = scalar_lea.vmem %s6, 2
        %v954 = vld [vmem:[%s953] sm:$0x1]
        %v956 = vlaneseq
        %v957 = vshrl.u32 %v956, 7
        %v958 = vsub.s32 0, %v957
        %v959 = vrot.slane %v954, %v958
        %v965 = vunpack.c.l.b16 %v949
        %v966 = vunpack.c.l.b16 %v950
        %v967 = vunpack.c.l.b16 %v951
        %v968 = vunpack.c.l.b16 %v952
        %v969 = vpack.c.b16 %v966, %v965
        %v970 = vpack.c.b16 %v968, %v967
        %v974 = vsel %vm616, %v947, 0
        %976 = vmatprep.subr.bf16.mxu0 0
        %977 = vmatpush1.bf16.msra.mxu0 %v969
        %978 = vmatprep.subr.bf16.mxu0 0
        %979 = vmatpush1.bf16.msra.mxu0 %v970
        %980 = vmatprep.subr.bf16.mxu0 0
        %981 = vmatpush1.bf16.msra.mxu0 0
        %982 = vmatprep.subr.bf16.mxu0 0
        %983 = vmatpush1.bf16.msra.mxu0 0
        %984 = vmatprep.subr.bf16.mxu0 0
        %985 = vmatpush1.bf16.msra.mxu0 0
        %986 = vmatprep.subr.bf16.mxu0 0
        %987 = vmatpush1.bf16.msra.mxu0 0
        %988 = vmatprep.subr.bf16.mxu0 0
        %989 = vmatpush1.bf16.msra.mxu0 0
        %990 = vmatprep.subr.bf16.mxu0 0
        %991 = vmatpush1.bf16.msra.mxu0 0
        %992 = vmatprep.subr.bf16.mxu0 0
        %993 = vmatpush1.bf16.msra.mxu0 0
        %994 = vmatprep.subr.bf16.mxu0 0
        %995 = vmatpush1.bf16.msra.mxu0 0
        %996 = vmatprep.subr.bf16.mxu0 0
        %997 = vmatpush1.bf16.msra.mxu0 0
        %998 = vmatprep.subr.bf16.mxu0 0
        %999 = vmatpush1.bf16.msra.mxu0 0
        %1000 = vmatprep.subr.bf16.mxu0 0
        %1001 = vmatpush1.bf16.msra.mxu0 0
        %1002 = vmatprep.subr.bf16.mxu0 0
        %1003 = vmatpush1.bf16.msra.mxu0 0
        %1004 = vmatprep.subr.bf16.mxu0 0
        %1005 = vmatpush1.bf16.msra.mxu0 0
        %1006 = vmatprep.subr.bf16.mxu0 0
        %1007 = vmatpush1.bf16.msra.mxu0 0
        %1008 = vmatprep.mubr.bf16.mxu0 0
        %1009 = vmatmul.mubr.bf16.gmra.mrb[0].mxu0 %v974
        %v1010 = vpop.f32.mrb[0].mxu0
        %v1011 = vadd.f32 %v959, %v1010
        %v1012 = vpop.f32.mrb[0].mxu0
        %v1013 = vpop.f32.mrb[0].mxu0
        %v1014 = vpop.f32.mrb[0].mxu0
        %1015 = vdwg.mxu0
        %1017 = vrot.lane.b32.xlu0 %v1011, 64
        %v1018 = vpop.permute.xlu0 %1017
        %vm1020 = vcmask 785920
        %1021 = vst.msk [vmem:[%s325] sm:$0xff] %vm1020, %v1018
        %s1022 = scalar_lea.vmem [#allocation4], 48
        %v1023 = vld [vmem:[%s1022] sm:$0xf]
        %v1024 = vld [vmem:[%s1022 + $0x4] sm:$0xf]
        %v1025 = vld [vmem:[%s1022 + $0x8] sm:$0xf]
        %v1026 = vld [vmem:[%s1022 + $0xc] sm:$0xf]
        %s1027 = scalar_lea.vmem %s4, 3
        %v1028 = vld [vmem:[%s1027] sm:$0x1]
        %v1030 = vlaneseq
        %v1031 = vshrl.u32 %v1030, 7
        %v1032 = vsub.s32 0, %v1031
        %v1033 = vrot.slane %v1028, %v1032
        %1035 = vrot.lane.b32.xlu0 %v590, 32
        %v1036 = vpop.permute.xlu0 %1035
        %v1041 = vunpack.c.l.b16 %v1023
        %v1042 = vunpack.c.l.b16 %v1024
        %v1043 = vunpack.c.l.b16 %v1025
        %v1044 = vunpack.c.l.b16 %v1026
        %v1045 = vpack.c.b16 %v1042, %v1041
        %v1046 = vpack.c.b16 %v1044, %v1043
        %v1050 = vsel %vm616, %v1036, 0
        %1052 = vmatprep.subr.bf16.mxu0 0
        %1053 = vmatpush1.bf16.msra.mxu0 %v1045
        %1054 = vmatprep.subr.bf16.mxu0 0
        %1055 = vmatpush1.bf16.msra.mxu0 %v1046
        %1056 = vmatprep.subr.bf16.mxu0 0
        %1057 = vmatpush1.bf16.msra.mxu0 0
        %1058 = vmatprep.subr.bf16.mxu0 0
        %1059 = vmatpush1.bf16.msra.mxu0 0
        %1060 = vmatprep.subr.bf16.mxu0 0
        %1061 = vmatpush1.bf16.msra.mxu0 0
        %1062 = vmatprep.subr.bf16.mxu0 0
        %1063 = vmatpush1.bf16.msra.mxu0 0
        %1064 = vmatprep.subr.bf16.mxu0 0
        %1065 = vmatpush1.bf16.msra.mxu0 0
        %1066 = vmatprep.subr.bf16.mxu0 0
        %1067 = vmatpush1.bf16.msra.mxu0 0
        %1068 = vmatprep.subr.bf16.mxu0 0
        %1069 = vmatpush1.bf16.msra.mxu0 0
        %1070 = vmatprep.subr.bf16.mxu0 0
        %1071 = vmatpush1.bf16.msra.mxu0 0
        %1072 = vmatprep.subr.bf16.mxu0 0
        %1073 = vmatpush1.bf16.msra.mxu0 0
        %1074 = vmatprep.subr.bf16.mxu0 0
        %1075 = vmatpush1.bf16.msra.mxu0 0
        %1076 = vmatprep.subr.bf16.mxu0 0
        %1077 = vmatpush1.bf16.msra.mxu0 0
        %1078 = vmatprep.subr.bf16.mxu0 0
        %1079 = vmatpush1.bf16.msra.mxu0 0
        %1080 = vmatprep.subr.bf16.mxu0 0
        %1081 = vmatpush1.bf16.msra.mxu0 0
        %1082 = vmatprep.subr.bf16.mxu0 0
        %1083 = vmatpush1.bf16.msra.mxu0 0
        %1084 = vmatprep.mubr.bf16.mxu0 0
        %1085 = vmatmul.mubr.bf16.gmra.mrb[0].mxu0 %v1050
        %v1086 = vpop.f32.mrb[0].mxu0
        %v1087 = vadd.f32 %v1033, %v1086
        %v1088 = vpop.f32.mrb[0].mxu0
        %v1089 = vpop.f32.mrb[0].mxu0
        %v1090 = vpop.f32.mrb[0].mxu0
        %1091 = vdwg.mxu0
        %v1092 = vmax.f32 %v1087, 0.0
        %v1093 = vpack.c.bf16 %v1092, %v1092
        %s1094 = scalar_lea.vmem [#allocation6], 48
        %v1095 = vld [vmem:[%s1094] sm:$0xf]
        %v1096 = vld [vmem:[%s1094 + $0x4] sm:$0xf]
        %v1097 = vld [vmem:[%s1094 + $0x8] sm:$0xf]
        %v1098 = vld [vmem:[%s1094 + $0xc] sm:$0xf]
        %s1099 = scalar_lea.vmem %s6, 3
        %v1100 = vld [vmem:[%s1099] sm:$0x1]
        %v1102 = vlaneseq
        %v1103 = vshrl.u32 %v1102, 7
        %v1104 = vsub.s32 0, %v1103
        %v1105 = vrot.slane %v1100, %v1104
        %v1111 = vunpack.c.l.b16 %v1095
        %v1112 = vunpack.c.l.b16 %v1096
        %v1113 = vunpack.c.l.b16 %v1097
        %v1114 = vunpack.c.l.b16 %v1098
        %v1115 = vpack.c.b16 %v1112, %v1111
        %v1116 = vpack.c.b16 %v1114, %v1113
        %v1120 = vsel %vm616, %v1093, 0
        %1122 = vmatprep.subr.bf16.mxu0 0
        %1123 = vmatpush1.bf16.msra.mxu0 %v1115
        %1124 = vmatprep.subr.bf16.mxu0 0
        %1125 = vmatpush1.bf16.msra.mxu0 %v1116
        %1126 = vmatprep.subr.bf16.mxu0 0
        %1127 = vmatpush1.bf16.msra.mxu0 0
        %1128 = vmatprep.subr.bf16.mxu0 0
        %1129 = vmatpush1.bf16.msra.mxu0 0
        %1130 = vmatprep.subr.bf16.mxu0 0
        %1131 = vmatpush1.bf16.msra.mxu0 0
        %1132 = vmatprep.subr.bf16.mxu0 0
        %1133 = vmatpush1.bf16.msra.mxu0 0
        %1134 = vmatprep.subr.bf16.mxu0 0
        %1135 = vmatpush1.bf16.msra.mxu0 0
        %1136 = vmatprep.subr.bf16.mxu0 0
        %1137 = vmatpush1.bf16.msra.mxu0 0
        %1138 = vmatprep.subr.bf16.mxu0 0
        %1139 = vmatpush1.bf16.msra.mxu0 0
        %1140 = vmatprep.subr.bf16.mxu0 0
        %1141 = vmatpush1.bf16.msra.mxu0 0
        %1142 = vmatprep.subr.bf16.mxu0 0
        %1143 = vmatpush1.bf16.msra.mxu0 0
        %1144 = vmatprep.subr.bf16.mxu0 0
        %1145 = vmatpush1.bf16.msra.mxu0 0
        %1146 = vmatprep.subr.bf16.mxu0 0
        %1147 = vmatpush1.bf16.msra.mxu0 0
        %1148 = vmatprep.subr.bf16.mxu0 0
        %1149 = vmatpush1.bf16.msra.mxu0 0
        %1150 = vmatprep.subr.bf16.mxu0 0
        %1151 = vmatpush1.bf16.msra.mxu0 0
        %1152 = vmatprep.subr.bf16.mxu0 0
        %1153 = vmatpush1.bf16.msra.mxu0 0
        %1154 = vmatprep.mubr.bf16.mxu0 0
        %1155 = vmatmul.mubr.bf16.gmra.mrb[0].mxu0 %v1120
        %v1156 = vpop.f32.mrb[0].mxu0
        %v1157 = vadd.f32 %v1105, %v1156
        %v1158 = vpop.f32.mrb[0].mxu0
        %v1159 = vpop.f32.mrb[0].mxu0
        %v1160 = vpop.f32.mrb[0].mxu0
        %1161 = vdwg.mxu0
        %1163 = vrot.lane.b32.xlu0 %v1157, 96
        %v1164 = vpop.permute.xlu0 %1163
        %vm1166 = vcmask 1048320
        %1167 = vst.msk [vmem:[%s325] sm:$0xff] %vm1166, %v1164
        %s1168 = scalar_lea.vmem [#allocation4], 64
        %v1169 = vld [vmem:[%s1168] sm:$0xf]
        %v1170 = vld [vmem:[%s1168 + $0x4] sm:$0xf]
        %v1171 = vld [vmem:[%s1168 + $0x8] sm:$0xf]
        %v1172 = vld [vmem:[%s1168 + $0xc] sm:$0xf]
        %s1173 = scalar_lea.vmem %s4, 4
        %v1174 = vld [vmem:[%s1173] sm:$0x1]
        %v1176 = vlaneseq
        %v1177 = vshrl.u32 %v1176, 7
        %v1178 = vsub.s32 0, %v1177
        %v1179 = vrot.slane %v1174, %v1178
        %v1185 = vunpack.c.l.b16 %v1169
        %v1186 = vunpack.c.l.b16 %v1170
        %v1187 = vunpack.c.l.b16 %v1171
        %v1188 = vunpack.c.l.b16 %v1172
        %v1189 = vpack.c.b16 %v1186, %v1185
        %v1190 = vpack.c.b16 %v1188, %v1187
        %v1194 = vsel %vm616, %v591, 0
        %1196 = vmatprep.subr.bf16.mxu0 0
        %1197 = vmatpush1.bf16.msra.mxu0 %v1189
        %1198 = vmatprep.subr.bf16.mxu0 0
        %1199 = vmatpush1.bf16.msra.mxu0 %v1190
        %1200 = vmatprep.subr.bf16.mxu0 0
        %1201 = vmatpush1.bf16.msra.mxu0 0
        %1202 = vmatprep.subr.bf16.mxu0 0
        %1203 = vmatpush1.bf16.msra.mxu0 0
        %1204 = vmatprep.subr.bf16.mxu0 0
        %1205 = vmatpush1.bf16.msra.mxu0 0
        %1206 = vmatprep.subr.bf16.mxu0 0
        %1207 = vmatpush1.bf16.msra.mxu0 0
        %1208 = vmatprep.subr.bf16.mxu0 0
        %1209 = vmatpush1.bf16.msra.mxu0 0
        %1210 = vmatprep.subr.bf16.mxu0 0
        %1211 = vmatpush1.bf16.msra.mxu0 0
        %1212 = vmatprep.subr.bf16.mxu0 0
        %1213 = vmatpush1.bf16.msra.mxu0 0
        %1214 = vmatprep.subr.bf16.mxu0 0
        %1215 = vmatpush1.bf16.msra.mxu0 0
        %1216 = vmatprep.subr.bf16.mxu0 0
        %1217 = vmatpush1.bf16.msra.mxu0 0
        %1218 = vmatprep.subr.bf16.mxu0 0
        %1219 = vmatpush1.bf16.msra.mxu0 0
        %1220 = vmatprep.subr.bf16.mxu0 0
        %1221 = vmatpush1.bf16.msra.mxu0 0
        %1222 = vmatprep.subr.bf16.mxu0 0
        %1223 = vmatpush1.bf16.msra.mxu0 0
        %1224 = vmatprep.subr.bf16.mxu0 0
        %1225 = vmatpush1.bf16.msra.mxu0 0
        %1226 = vmatprep.subr.bf16.mxu0 0
        %1227 = vmatpush1.bf16.msra.mxu0 0
        %1228 = vmatprep.mubr.bf16.mxu0 0
        %1229 = vmatmul.mubr.bf16.gmra.mrb[0].mxu0 %v1194
        %v1230 = vpop.f32.mrb[0].mxu0
        %v1231 = vadd.f32 %v1179, %v1230
        %v1232 = vpop.f32.mrb[0].mxu0
        %v1233 = vpop.f32.mrb[0].mxu0
        %v1234 = vpop.f32.mrb[0].mxu0
        %1235 = vdwg.mxu0
        %v1236 = vmax.f32 %v1231, 0.0
        %v1237 = vpack.c.bf16 %v1236, %v1236
        %s1238 = scalar_lea.vmem [#allocation6], 64
        %v1239 = vld [vmem:[%s1238] sm:$0xf]
        %v1240 = vld [vmem:[%s1238 + $0x4] sm:$0xf]
        %v1241 = vld [vmem:[%s1238 + $0x8] sm:$0xf]
        %v1242 = vld [vmem:[%s1238 + $0xc] sm:$0xf]
        %s1243 = scalar_lea.vmem %s6, 4
        %v1244 = vld [vmem:[%s1243] sm:$0x1]
        %v1246 = vlaneseq
        %v1247 = vshrl.u32 %v1246, 7
        %v1248 = vsub.s32 0, %v1247
        %v1249 = vrot.slane %v1244, %v1248
        %v1255 = vunpack.c.l.b16 %v1239
        %v1256 = vunpack.c.l.b16 %v1240
        %v1257 = vunpack.c.l.b16 %v1241
        %v1258 = vunpack.c.l.b16 %v1242
        %v1259 = vpack.c.b16 %v1256, %v1255
        %v1260 = vpack.c.b16 %v1258, %v1257
        %v1264 = vsel %vm616, %v1237, 0
        %1266 = vmatprep.subr.bf16.mxu0 0
        %1267 = vmatpush1.bf16.msra.mxu0 %v1259
        %1268 = vmatprep.subr.bf16.mxu0 0
        %1269 = vmatpush1.bf16.msra.mxu0 %v1260
        %1270 = vmatprep.subr.bf16.mxu0 0
        %1271 = vmatpush1.bf16.msra.mxu0 0
        %1272 = vmatprep.subr.bf16.mxu0 0
        %1273 = vmatpush1.bf16.msra.mxu0 0
        %1274 = vmatprep.subr.bf16.mxu0 0
        %1275 = vmatpush1.bf16.msra.mxu0 0
        %1276 = vmatprep.subr.bf16.mxu0 0
        %1277 = vmatpush1.bf16.msra.mxu0 0
        %1278 = vmatprep.subr.bf16.mxu0 0
        %1279 = vmatpush1.bf16.msra.mxu0 0
        %1280 = vmatprep.subr.bf16.mxu0 0
        %1281 = vmatpush1.bf16.msra.mxu0 0
        %1282 = vmatprep.subr.bf16.mxu0 0
        %1283 = vmatpush1.bf16.msra.mxu0 0
        %1284 = vmatprep.subr.bf16.mxu0 0
        %1285 = vmatpush1.bf16.msra.mxu0 0
        %1286 = vmatprep.subr.bf16.mxu0 0
        %1287 = vmatpush1.bf16.msra.mxu0 0
        %1288 = vmatprep.subr.bf16.mxu0 0
        %1289 = vmatpush1.bf16.msra.mxu0 0
        %1290 = vmatprep.subr.bf16.mxu0 0
        %1291 = vmatpush1.bf16.msra.mxu0 0
        %1292 = vmatprep.subr.bf16.mxu0 0
        %1293 = vmatpush1.bf16.msra.mxu0 0
        %1294 = vmatprep.subr.bf16.mxu0 0
        %1295 = vmatpush1.bf16.msra.mxu0 0
        %1296 = vmatprep.subr.bf16.mxu0 0
        %1297 = vmatpush1.bf16.msra.mxu0 0
        %1298 = vmatprep.mubr.bf16.mxu0 0
        %1299 = vmatmul.mubr.bf16.gmra.mrb[0].mxu0 %v1264
        %v1300 = vpop.f32.mrb[0].mxu0
        %v1301 = vadd.f32 %v1249, %v1300
        %v1302 = vpop.f32.mrb[0].mxu0
        %v1303 = vpop.f32.mrb[0].mxu0
        %v1304 = vpop.f32.mrb[0].mxu0
        %1305 = vdwg.mxu0
        %1306 = vst.msk [vmem:[%s325 + $0x8] sm:$0xff] %vm616, %v1301
        %s1307 = scalar_lea.vmem [#allocation4], 80
        %v1308 = vld [vmem:[%s1307] sm:$0xf]
        %v1309 = vld [vmem:[%s1307 + $0x4] sm:$0xf]
        %v1310 = vld [vmem:[%s1307 + $0x8] sm:$0xf]
        %v1311 = vld [vmem:[%s1307 + $0xc] sm:$0xf]
        %s1312 = scalar_lea.vmem %s4, 5
        %v1313 = vld [vmem:[%s1312] sm:$0x1]
        %v1315 = vlaneseq
        %v1316 = vshrl.u32 %v1315, 7
        %v1317 = vsub.s32 0, %v1316
        %v1318 = vrot.slane %v1313, %v1317
        %1321 = vrot.lane.b32.xlu0 %v591, 96
        %v1322 = vpop.permute.xlu0 %1321
        %v1327 = vunpack.c.l.b16 %v1308
        %v1328 = vunpack.c.l.b16 %v1309
        %v1329 = vunpack.c.l.b16 %v1310
        %v1330 = vunpack.c.l.b16 %v1311
        %v1331 = vpack.c.b16 %v1328, %v1327
        %v1332 = vpack.c.b16 %v1330, %v1329
        %v1336 = vsel %vm616, %v1322, 0
        %1338 = vmatprep.subr.bf16.mxu0 0
        %1339 = vmatpush1.bf16.msra.mxu0 %v1331
        %1340 = vmatprep.subr.bf16.mxu0 0
        %1341 = vmatpush1.bf16.msra.mxu0 %v1332
        %1342 = vmatprep.subr.bf16.mxu0 0
        %1343 = vmatpush1.bf16.msra.mxu0 0
        %1344 = vmatprep.subr.bf16.mxu0 0
        %1345 = vmatpush1.bf16.msra.mxu0 0
        %1346 = vmatprep.subr.bf16.mxu0 0
        %1347 = vmatpush1.bf16.msra.mxu0 0
        %1348 = vmatprep.subr.bf16.mxu0 0
        %1349 = vmatpush1.bf16.msra.mxu0 0
        %1350 = vmatprep.subr.bf16.mxu0 0
        %1351 = vmatpush1.bf16.msra.mxu0 0
        %1352 = vmatprep.subr.bf16.mxu0 0
        %1353 = vmatpush1.bf16.msra.mxu0 0
        %1354 = vmatprep.subr.bf16.mxu0 0
        %1355 = vmatpush1.bf16.msra.mxu0 0
        %1356 = vmatprep.subr.bf16.mxu0 0
        %1357 = vmatpush1.bf16.msra.mxu0 0
        %1358 = vmatprep.subr.bf16.mxu0 0
        %1359 = vmatpush1.bf16.msra.mxu0 0
        %1360 = vmatprep.subr.bf16.mxu0 0
        %1361 = vmatpush1.bf16.msra.mxu0 0
        %1362 = vmatprep.subr.bf16.mxu0 0
        %1363 = vmatpush1.bf16.msra.mxu0 0
        %1364 = vmatprep.subr.bf16.mxu0 0
        %1365 = vmatpush1.bf16.msra.mxu0 0
        %1366 = vmatprep.subr.bf16.mxu0 0
        %1367 = vmatpush1.bf16.msra.mxu0 0
        %1368 = vmatprep.subr.bf16.mxu0 0
        %1369 = vmatpush1.bf16.msra.mxu0 0
        %1370 = vmatprep.mubr.bf16.mxu0 0
        %1371 = vmatmul.mubr.bf16.gmra.mrb[0].mxu0 %v1336
        %v1372 = vpop.f32.mrb[0].mxu0
        %v1373 = vadd.f32 %v1318, %v1372
        %v1374 = vpop.f32.mrb[0].mxu0
        %v1375 = vpop.f32.mrb[0].mxu0
        %v1376 = vpop.f32.mrb[0].mxu0
        %1377 = vdwg.mxu0
        %v1378 = vmax.f32 %v1373, 0.0
        %v1379 = vpack.c.bf16 %v1378, %v1378
        %s1380 = scalar_lea.vmem [#allocation6], 80
        %v1381 = vld [vmem:[%s1380] sm:$0xf]
        %v1382 = vld [vmem:[%s1380 + $0x4] sm:$0xf]
        %v1383 = vld [vmem:[%s1380 + $0x8] sm:$0xf]
        %v1384 = vld [vmem:[%s1380 + $0xc] sm:$0xf]
        %s1385 = scalar_lea.vmem %s6, 5
        %v1386 = vld [vmem:[%s1385] sm:$0x1]
        %v1388 = vlaneseq
        %v1389 = vshrl.u32 %v1388, 7
        %v1390 = vsub.s32 0, %v1389
        %v1391 = vrot.slane %v1386, %v1390
        %v1397 = vunpack.c.l.b16 %v1381
        %v1398 = vunpack.c.l.b16 %v1382
        %v1399 = vunpack.c.l.b16 %v1383
        %v1400 = vunpack.c.l.b16 %v1384
        %v1401 = vpack.c.b16 %v1398, %v1397
        %v1402 = vpack.c.b16 %v1400, %v1399
        %v1406 = vsel %vm616, %v1379, 0
        %1408 = vmatprep.subr.bf16.mxu0 0
        %1409 = vmatpush1.bf16.msra.mxu0 %v1401
        %1410 = vmatprep.subr.bf16.mxu0 0
        %1411 = vmatpush1.bf16.msra.mxu0 %v1402
        %1412 = vmatprep.subr.bf16.mxu0 0
        %1413 = vmatpush1.bf16.msra.mxu0 0
        %1414 = vmatprep.subr.bf16.mxu0 0
        %1415 = vmatpush1.bf16.msra.mxu0 0
        %1416 = vmatprep.subr.bf16.mxu0 0
        %1417 = vmatpush1.bf16.msra.mxu0 0
        %1418 = vmatprep.subr.bf16.mxu0 0
        %1419 = vmatpush1.bf16.msra.mxu0 0
        %1420 = vmatprep.subr.bf16.mxu0 0
        %1421 = vmatpush1.bf16.msra.mxu0 0
        %1422 = vmatprep.subr.bf16.mxu0 0
        %1423 = vmatpush1.bf16.msra.mxu0 0
        %1424 = vmatprep.subr.bf16.mxu0 0
        %1425 = vmatpush1.bf16.msra.mxu0 0
        %1426 = vmatprep.subr.bf16.mxu0 0
        %1427 = vmatpush1.bf16.msra.mxu0 0
        %1428 = vmatprep.subr.bf16.mxu0 0
        %1429 = vmatpush1.bf16.msra.mxu0 0
        %1430 = vmatprep.subr.bf16.mxu0 0
        %1431 = vmatpush1.bf16.msra.mxu0 0
        %1432 = vmatprep.subr.bf16.mxu0 0
        %1433 = vmatpush1.bf16.msra.mxu0 0
        %1434 = vmatprep.subr.bf16.mxu0 0
        %1435 = vmatpush1.bf16.msra.mxu0 0
        %1436 = vmatprep.subr.bf16.mxu0 0
        %1437 = vmatpush1.bf16.msra.mxu0 0
        %1438 = vmatprep.subr.bf16.mxu0 0
        %1439 = vmatpush1.bf16.msra.mxu0 0
        %1440 = vmatprep.mubr.bf16.mxu0 0
        %1441 = vmatmul.mubr.bf16.gmra.mrb[0].mxu0 %v1406
        %v1442 = vpop.f32.mrb[0].mxu0
        %v1443 = vadd.f32 %v1391, %v1442
        %v1444 = vpop.f32.mrb[0].mxu0
        %v1445 = vpop.f32.mrb[0].mxu0
        %v1446 = vpop.f32.mrb[0].mxu0
        %1447 = vdwg.mxu0
        %1449 = vrot.lane.b32.xlu0 %v1443, 32
        %v1450 = vpop.permute.xlu0 %1449
        %1452 = vst.msk [vmem:[%s325 + $0x8] sm:$0xff] %vm874, %v1450
        %s1453 = scalar_lea.vmem [#allocation4], 96
        %v1454 = vld [vmem:[%s1453] sm:$0xf]
        %v1455 = vld [vmem:[%s1453 + $0x4] sm:$0xf]
        %v1456 = vld [vmem:[%s1453 + $0x8] sm:$0xf]
        %v1457 = vld [vmem:[%s1453 + $0xc] sm:$0xf]
        %s1458 = scalar_lea.vmem %s4, 6
        %v1459 = vld [vmem:[%s1458] sm:$0x1]
        %v1461 = vlaneseq
        %v1462 = vshrl.u32 %v1461, 7
        %v1463 = vsub.s32 0, %v1462
        %v1464 = vrot.slane %v1459, %v1463
        %1466 = vrot.lane.b32.xlu0 %v591, 64
        %v1467 = vpop.permute.xlu0 %1466
        %v1472 = vunpack.c.l.b16 %v1454
        %v1473 = vunpack.c.l.b16 %v1455
        %v1474 = vunpack.c.l.b16 %v1456
        %v1475 = vunpack.c.l.b16 %v1457
        %v1476 = vpack.c.b16 %v1473, %v1472
        %v1477 = vpack.c.b16 %v1475, %v1474
        %v1481 = vsel %vm616, %v1467, 0
        %1483 = vmatprep.subr.bf16.mxu0 0
        %1484 = vmatpush1.bf16.msra.mxu0 %v1476
        %1485 = vmatprep.subr.bf16.mxu0 0
        %1486 = vmatpush1.bf16.msra.mxu0 %v1477
        %1487 = vmatprep.subr.bf16.mxu0 0
        %1488 = vmatpush1.bf16.msra.mxu0 0
        %1489 = vmatprep.subr.bf16.mxu0 0
        %1490 = vmatpush1.bf16.msra.mxu0 0
        %1491 = vmatprep.subr.bf16.mxu0 0
        %1492 = vmatpush1.bf16.msra.mxu0 0
        %1493 = vmatprep.subr.bf16.mxu0 0
        %1494 = vmatpush1.bf16.msra.mxu0 0
        %1495 = vmatprep.subr.bf16.mxu0 0
        %1496 = vmatpush1.bf16.msra.mxu0 0
        %1497 = vmatprep.subr.bf16.mxu0 0
        %1498 = vmatpush1.bf16.msra.mxu0 0
        %1499 = vmatprep.subr.bf16.mxu0 0
        %1500 = vmatpush1.bf16.msra.mxu0 0
        %1501 = vmatprep.subr.bf16.mxu0 0
        %1502 = vmatpush1.bf16.msra.mxu0 0
        %1503 = vmatprep.subr.bf16.mxu0 0
        %1504 = vmatpush1.bf16.msra.mxu0 0
        %1505 = vmatprep.subr.bf16.mxu0 0
        %1506 = vmatpush1.bf16.msra.mxu0 0
        %1507 = vmatprep.subr.bf16.mxu0 0
        %1508 = vmatpush1.bf16.msra.mxu0 0
        %1509 = vmatprep.subr.bf16.mxu0 0
        %1510 = vmatpush1.bf16.msra.mxu0 0
        %1511 = vmatprep.subr.bf16.mxu0 0
        %1512 = vmatpush1.bf16.msra.mxu0 0
        %1513 = vmatprep.subr.bf16.mxu0 0
        %1514 = vmatpush1.bf16.msra.mxu0 0
        %1515 = vmatprep.mubr.bf16.mxu0 0
        %1516 = vmatmul.mubr.bf16.gmra.mrb[0].mxu0 %v1481
        %v1517 = vpop.f32.mrb[0].mxu0
        %v1518 = vadd.f32 %v1464, %v1517
        %v1519 = vpop.f32.mrb[0].mxu0
        %v1520 = vpop.f32.mrb[0].mxu0
        %v1521 = vpop.f32.mrb[0].mxu0
        %1522 = vdwg.mxu0
        %v1523 = vmax.f32 %v1518, 0.0
        %v1524 = vpack.c.bf16 %v1523, %v1523
        %s1525 = scalar_lea.vmem [#allocation6], 96
        %v1526 = vld [vmem:[%s1525] sm:$0xf]
        %v1527 = vld [vmem:[%s1525 + $0x4] sm:$0xf]
        %v1528 = vld [vmem:[%s1525 + $0x8] sm:$0xf]
        %v1529 = vld [vmem:[%s1525 + $0xc] sm:$0xf]
        %s1530 = scalar_lea.vmem %s6, 6
        %v1531 = vld [vmem:[%s1530] sm:$0x1]
        %v1533 = vlaneseq
        %v1534 = vshrl.u32 %v1533, 7
        %v1535 = vsub.s32 0, %v1534
        %v1536 = vrot.slane %v1531, %v1535
        %v1542 = vunpack.c.l.b16 %v1526
        %v1543 = vunpack.c.l.b16 %v1527
        %v1544 = vunpack.c.l.b16 %v1528
        %v1545 = vunpack.c.l.b16 %v1529
        %v1546 = vpack.c.b16 %v1543, %v1542
        %v1547 = vpack.c.b16 %v1545, %v1544
        %v1551 = vsel %vm616, %v1524, 0
        %1553 = vmatprep.subr.bf16.mxu0 0
        %1554 = vmatpush1.bf16.msra.mxu0 %v1546
        %1555 = vmatprep.subr.bf16.mxu0 0
        %1556 = vmatpush1.bf16.msra.mxu0 %v1547
        %1557 = vmatprep.subr.bf16.mxu0 0
        %1558 = vmatpush1.bf16.msra.mxu0 0
        %1559 = vmatprep.subr.bf16.mxu0 0
        %1560 = vmatpush1.bf16.msra.mxu0 0
        %1561 = vmatprep.subr.bf16.mxu0 0
        %1562 = vmatpush1.bf16.msra.mxu0 0
        %1563 = vmatprep.subr.bf16.mxu0 0
        %1564 = vmatpush1.bf16.msra.mxu0 0
        %1565 = vmatprep.subr.bf16.mxu0 0
        %1566 = vmatpush1.bf16.msra.mxu0 0
        %1567 = vmatprep.subr.bf16.mxu0 0
        %1568 = vmatpush1.bf16.msra.mxu0 0
        %1569 = vmatprep.subr.bf16.mxu0 0
        %1570 = vmatpush1.bf16.msra.mxu0 0
        %1571 = vmatprep.subr.bf16.mxu0 0
        %1572 = vmatpush1.bf16.msra.mxu0 0
        %1573 = vmatprep.subr.bf16.mxu0 0
        %1574 = vmatpush1.bf16.msra.mxu0 0
        %1575 = vmatprep.subr.bf16.mxu0 0
        %1576 = vmatpush1.bf16.msra.mxu0 0
        %1577 = vmatprep.subr.bf16.mxu0 0
        %1578 = vmatpush1.bf16.msra.mxu0 0
        %1579 = vmatprep.subr.bf16.mxu0 0
        %1580 = vmatpush1.bf16.msra.mxu0 0
        %1581 = vmatprep.subr.bf16.mxu0 0
        %1582 = vmatpush1.bf16.msra.mxu0 0
        %1583 = vmatprep.subr.bf16.mxu0 0
        %1584 = vmatpush1.bf16.msra.mxu0 0
        %1585 = vmatprep.mubr.bf16.mxu0 0
        %1586 = vmatmul.mubr.bf16.gmra.mrb[0].mxu0 %v1551
        %v1587 = vpop.f32.mrb[0].mxu0
        %v1588 = vadd.f32 %v1536, %v1587
        %v1589 = vpop.f32.mrb[0].mxu0
        %v1590 = vpop.f32.mrb[0].mxu0
        %v1591 = vpop.f32.mrb[0].mxu0
        %1592 = vdwg.mxu0
        %1594 = vrot.lane.b32.xlu0 %v1588, 64
        %v1595 = vpop.permute.xlu0 %1594
        %1597 = vst.msk [vmem:[%s325 + $0x8] sm:$0xff] %vm1020, %v1595
        %s1598 = scalar_lea.vmem [#allocation4], 112
        %v1599 = vld [vmem:[%s1598] sm:$0xf]
        %v1600 = vld [vmem:[%s1598 + $0x4] sm:$0xf]
        %v1601 = vld [vmem:[%s1598 + $0x8] sm:$0xf]
        %v1602 = vld [vmem:[%s1598 + $0xc] sm:$0xf]
        %s1603 = scalar_lea.vmem %s4, 7
        %v1604 = vld [vmem:[%s1603] sm:$0x1]
        %v1606 = vlaneseq
        %v1607 = vshrl.u32 %v1606, 7
        %v1608 = vsub.s32 0, %v1607
        %v1609 = vrot.slane %v1604, %v1608
        %1611 = vrot.lane.b32.xlu0 %v591, 32
        %v1612 = vpop.permute.xlu0 %1611
        %v1617 = vunpack.c.l.b16 %v1599
        %v1618 = vunpack.c.l.b16 %v1600
        %v1619 = vunpack.c.l.b16 %v1601
        %v1620 = vunpack.c.l.b16 %v1602
        %v1621 = vpack.c.b16 %v1618, %v1617
        %v1622 = vpack.c.b16 %v1620, %v1619
        %v1626 = vsel %vm616, %v1612, 0
        %1628 = vmatprep.subr.bf16.mxu0 0
        %1629 = vmatpush1.bf16.msra.mxu0 %v1621
        %1630 = vmatprep.subr.bf16.mxu0 0
        %1631 = vmatpush1.bf16.msra.mxu0 %v1622
        %1632 = vmatprep.subr.bf16.mxu0 0
        %1633 = vmatpush1.bf16.msra.mxu0 0
        %1634 = vmatprep.subr.bf16.mxu0 0
        %1635 = vmatpush1.bf16.msra.mxu0 0
        %1636 = vmatprep.subr.bf16.mxu0 0
        %1637 = vmatpush1.bf16.msra.mxu0 0
        %1638 = vmatprep.subr.bf16.mxu0 0
        %1639 = vmatpush1.bf16.msra.mxu0 0
        %1640 = vmatprep.subr.bf16.mxu0 0
        %1641 = vmatpush1.bf16.msra.mxu0 0
        %1642 = vmatprep.subr.bf16.mxu0 0
        %1643 = vmatpush1.bf16.msra.mxu0 0
        %1644 = vmatprep.subr.bf16.mxu0 0
        %1645 = vmatpush1.bf16.msra.mxu0 0
        %1646 = vmatprep.subr.bf16.mxu0 0
        %1647 = vmatpush1.bf16.msra.mxu0 0
        %1648 = vmatprep.subr.bf16.mxu0 0
        %1649 = vmatpush1.bf16.msra.mxu0 0
        %1650 = vmatprep.subr.bf16.mxu0 0
        %1651 = vmatpush1.bf16.msra.mxu0 0
        %1652 = vmatprep.subr.bf16.mxu0 0
        %1653 = vmatpush1.bf16.msra.mxu0 0
        %1654 = vmatprep.subr.bf16.mxu0 0
        %1655 = vmatpush1.bf16.msra.mxu0 0
        %1656 = vmatprep.subr.bf16.mxu0 0
        %1657 = vmatpush1.bf16.msra.mxu0 0
        %1658 = vmatprep.subr.bf16.mxu0 0
        %1659 = vmatpush1.bf16.msra.mxu0 0
        %1660 = vmatprep.mubr.bf16.mxu0 0
        %1661 = vmatmul.mubr.bf16.gmra.mrb[0].mxu0 %v1626
        %v1662 = vpop.f32.mrb[0].mxu0
        %v1663 = vadd.f32 %v1609, %v1662
        %v1664 = vpop.f32.mrb[0].mxu0
        %v1665 = vpop.f32.mrb[0].mxu0
        %v1666 = vpop.f32.mrb[0].mxu0
        %1667 = vdwg.mxu0
        %v1668 = vmax.f32 %v1663, 0.0
        %v1669 = vpack.c.bf16 %v1668, %v1668
        %s1670 = scalar_lea.vmem [#allocation6], 112
        %v1671 = vld [vmem:[%s1670] sm:$0xf]
        %v1672 = vld [vmem:[%s1670 + $0x4] sm:$0xf]
        %v1673 = vld [vmem:[%s1670 + $0x8] sm:$0xf]
        %v1674 = vld [vmem:[%s1670 + $0xc] sm:$0xf]
        %s1675 = scalar_lea.vmem %s6, 7
        %v1676 = vld [vmem:[%s1675] sm:$0x1]
        %v1678 = vlaneseq
        %v1679 = vshrl.u32 %v1678, 7
        %v1680 = vsub.s32 0, %v1679
        %v1681 = vrot.slane %v1676, %v1680
        %v1687 = vunpack.c.l.b16 %v1671
        %v1688 = vunpack.c.l.b16 %v1672
        %v1689 = vunpack.c.l.b16 %v1673
        %v1690 = vunpack.c.l.b16 %v1674
        %v1691 = vpack.c.b16 %v1688, %v1687
        %v1692 = vpack.c.b16 %v1690, %v1689
        %v1696 = vsel %vm616, %v1669, 0
        %1698 = vmatprep.subr.bf16.mxu0 0
        %1699 = vmatpush1.bf16.msra.mxu0 %v1691
        %1700 = vmatprep.subr.bf16.mxu0 0
        %1701 = vmatpush1.bf16.msra.mxu0 %v1692
        %1702 = vmatprep.subr.bf16.mxu0 0
        %1703 = vmatpush1.bf16.msra.mxu0 0
        %1704 = vmatprep.subr.bf16.mxu0 0
        %1705 = vmatpush1.bf16.msra.mxu0 0
        %1706 = vmatprep.subr.bf16.mxu0 0
        %1707 = vmatpush1.bf16.msra.mxu0 0
        %1708 = vmatprep.subr.bf16.mxu0 0
        %1709 = vmatpush1.bf16.msra.mxu0 0
        %1710 = vmatprep.subr.bf16.mxu0 0
        %1711 = vmatpush1.bf16.msra.mxu0 0
        %1712 = vmatprep.subr.bf16.mxu0 0
        %1713 = vmatpush1.bf16.msra.mxu0 0
        %1714 = vmatprep.subr.bf16.mxu0 0
        %1715 = vmatpush1.bf16.msra.mxu0 0
        %1716 = vmatprep.subr.bf16.mxu0 0
        %1717 = vmatpush1.bf16.msra.mxu0 0
        %1718 = vmatprep.subr.bf16.mxu0 0
        %1719 = vmatpush1.bf16.msra.mxu0 0
        %1720 = vmatprep.subr.bf16.mxu0 0
        %1721 = vmatpush1.bf16.msra.mxu0 0
        %1722 = vmatprep.subr.bf16.mxu0 0
        %1723 = vmatpush1.bf16.msra.mxu0 0
        %1724 = vmatprep.subr.bf16.mxu0 0
        %1725 = vmatpush1.bf16.msra.mxu0 0
        %1726 = vmatprep.subr.bf16.mxu0 0
        %1727 = vmatpush1.bf16.msra.mxu0 0
        %1728 = vmatprep.subr.bf16.mxu0 0
        %1729 = vmatpush1.bf16.msra.mxu0 0
        %1730 = vmatprep.mubr.bf16.mxu0 0
        %1731 = vmatmul.mubr.bf16.gmra.mrb[0].mxu0 %v1696
        %v1732 = vpop.f32.mrb[0].mxu0
        %v1733 = vadd.f32 %v1681, %v1732
        %v1734 = vpop.f32.mrb[0].mxu0
        %v1735 = vpop.f32.mrb[0].mxu0
        %v1736 = vpop.f32.mrb[0].mxu0
        %1737 = vdwg.mxu0
        %1739 = vrot.lane.b32.xlu0 %v1733, 96
        %v1740 = vpop.permute.xlu0 %1739
        %1742 = vst.msk [vmem:[%s325 + $0x8] sm:$0xff] %vm1166, %v1740
        %s1743 = scalar_lea.vmem [#allocation4], 128
        %v1744 = vld [vmem:[%s1743] sm:$0xf]
        %v1745 = vld [vmem:[%s1743 + $0x4] sm:$0xf]
        %v1746 = vld [vmem:[%s1743 + $0x8] sm:$0xf]
        %v1747 = vld [vmem:[%s1743 + $0xc] sm:$0xf]
        %s1748 = scalar_lea.vmem %s4, 8
        %v1749 = vld [vmem:[%s1748] sm:$0x1]
        %v1751 = vlaneseq
        %v1752 = vshrl.u32 %v1751, 7
        %v1753 = vsub.s32 0, %v1752
        %v1754 = vrot.slane %v1749, %v1753
        %v1760 = vunpack.c.l.b16 %v1744
        %v1761 = vunpack.c.l.b16 %v1745
        %v1762 = vunpack.c.l.b16 %v1746
        %v1763 = vunpack.c.l.b16 %v1747
        %v1764 = vpack.c.b16 %v1761, %v1760
        %v1765 = vpack.c.b16 %v1763, %v1762
        %v1769 = vsel %vm616, %v592, 0
        %1771 = vmatprep.subr.bf16.mxu0 0
        %1772 = vmatpush1.bf16.msra.mxu0 %v1764
        %1773 = vmatprep.subr.bf16.mxu0 0
        %1774 = vmatpush1.bf16.msra.mxu0 %v1765
        %1775 = vmatprep.subr.bf16.mxu0 0
        %1776 = vmatpush1.bf16.msra.mxu0 0
        %1777 = vmatprep.subr.bf16.mxu0 0
        %1778 = vmatpush1.bf16.msra.mxu0 0
        %1779 = vmatprep.subr.bf16.mxu0 0
        %1780 = vmatpush1.bf16.msra.mxu0 0
        %1781 = vmatprep.subr.bf16.mxu0 0
        %1782 = vmatpush1.bf16.msra.mxu0 0
        %1783 = vmatprep.subr.bf16.mxu0 0
        %1784 = vmatpush1.bf16.msra.mxu0 0
        %1785 = vmatprep.subr.bf16.mxu0 0
        %1786 = vmatpush1.bf16.msra.mxu0 0
        %1787 = vmatprep.subr.bf16.mxu0 0
        %1788 = vmatpush1.bf16.msra.mxu0 0
        %1789 = vmatprep.subr.bf16.mxu0 0
        %1790 = vmatpush1.bf16.msra.mxu0 0
        %1791 = vmatprep.subr.bf16.mxu0 0
        %1792 = vmatpush1.bf16.msra.mxu0 0
        %1793 = vmatprep.subr.bf16.mxu0 0
        %1794 = vmatpush1.bf16.msra.mxu0 0
        %1795 = vmatprep.subr.bf16.mxu0 0
        %1796 = vmatpush1.bf16.msra.mxu0 0
        %1797 = vmatprep.subr.bf16.mxu0 0
        %1798 = vmatpush1.bf16.msra.mxu0 0
        %1799 = vmatprep.subr.bf16.mxu0 0
        %1800 = vmatpush1.bf16.msra.mxu0 0
        %1801 = vmatprep.subr.bf16.mxu0 0
        %1802 = vmatpush1.bf16.msra.mxu0 0
        %1803 = vmatprep.mubr.bf16.mxu0 0
        %1804 = vmatmul.mubr.bf16.gmra.mrb[0].mxu0 %v1769
        %v1805 = vpop.f32.mrb[0].mxu0
        %v1806 = vadd.f32 %v1754, %v1805
        %v1807 = vpop.f32.mrb[0].mxu0
        %v1808 = vpop.f32.mrb[0].mxu0
        %v1809 = vpop.f32.mrb[0].mxu0
        %1810 = vdwg.mxu0
        %v1811 = vmax.f32 %v1806, 0.0
        %v1812 = vpack.c.bf16 %v1811, %v1811
        %s1813 = scalar_lea.vmem [#allocation6], 128
        %v1814 = vld [vmem:[%s1813] sm:$0xf]
        %v1815 = vld [vmem:[%s1813 + $0x4] sm:$0xf]
        %v1816 = vld [vmem:[%s1813 + $0x8] sm:$0xf]
        %v1817 = vld [vmem:[%s1813 + $0xc] sm:$0xf]
        %s1818 = scalar_lea.vmem %s6, 8
        %v1819 = vld [vmem:[%s1818] sm:$0x1]
        %v1821 = vlaneseq
        %v1822 = vshrl.u32 %v1821, 7
        %v1823 = vsub.s32 0, %v1822
        %v1824 = vrot.slane %v1819, %v1823
        %v1830 = vunpack.c.l.b16 %v1814
        %v1831 = vunpack.c.l.b16 %v1815
        %v1832 = vunpack.c.l.b16 %v1816
        %v1833 = vunpack.c.l.b16 %v1817
        %v1834 = vpack.c.b16 %v1831, %v1830
        %v1835 = vpack.c.b16 %v1833, %v1832
        %v1839 = vsel %vm616, %v1812, 0
        %1841 = vmatprep.subr.bf16.mxu0 0
        %1842 = vmatpush1.bf16.msra.mxu0 %v1834
        %1843 = vmatprep.subr.bf16.mxu0 0
        %1844 = vmatpush1.bf16.msra.mxu0 %v1835
        %1845 = vmatprep.subr.bf16.mxu0 0
        %1846 = vmatpush1.bf16.msra.mxu0 0
        %1847 = vmatprep.subr.bf16.mxu0 0
        %1848 = vmatpush1.bf16.msra.mxu0 0
        %1849 = vmatprep.subr.bf16.mxu0 0
        %1850 = vmatpush1.bf16.msra.mxu0 0
        %1851 = vmatprep.subr.bf16.mxu0 0
        %1852 = vmatpush1.bf16.msra.mxu0 0
        %1853 = vmatprep.subr.bf16.mxu0 0
        %1854 = vmatpush1.bf16.msra.mxu0 0
        %1855 = vmatprep.subr.bf16.mxu0 0
        %1856 = vmatpush1.bf16.msra.mxu0 0
        %1857 = vmatprep.subr.bf16.mxu0 0
        %1858 = vmatpush1.bf16.msra.mxu0 0
        %1859 = vmatprep.subr.bf16.mxu0 0
        %1860 = vmatpush1.bf16.msra.mxu0 0
        %1861 = vmatprep.subr.bf16.mxu0 0
        %1862 = vmatpush1.bf16.msra.mxu0 0
        %1863 = vmatprep.subr.bf16.mxu0 0
        %1864 = vmatpush1.bf16.msra.mxu0 0
        %1865 = vmatprep.subr.bf16.mxu0 0
        %1866 = vmatpush1.bf16.msra.mxu0 0
        %1867 = vmatprep.subr.bf16.mxu0 0
        %1868 = vmatpush1.bf16.msra.mxu0 0
        %1869 = vmatprep.subr.bf16.mxu0 0
        %1870 = vmatpush1.bf16.msra.mxu0 0
        %1871 = vmatprep.subr.bf16.mxu0 0
        %1872 = vmatpush1.bf16.msra.mxu0 0
        %1873 = vmatprep.mubr.bf16.mxu0 0
        %1874 = vmatmul.mubr.bf16.gmra.mrb[0].mxu0 %v1839
        %v1875 = vpop.f32.mrb[0].mxu0
        %v1876 = vadd.f32 %v1824, %v1875
        %v1877 = vpop.f32.mrb[0].mxu0
        %v1878 = vpop.f32.mrb[0].mxu0
        %v1879 = vpop.f32.mrb[0].mxu0
        %1880 = vdwg.mxu0
        %1881 = vst.msk [vmem:[%s325 + $0x10] sm:$0xff] %vm616, %v1876
        %s1882 = scalar_lea.vmem [#allocation4], 144
        %v1883 = vld [vmem:[%s1882] sm:$0xf]
        %v1884 = vld [vmem:[%s1882 + $0x4] sm:$0xf]
        %v1885 = vld [vmem:[%s1882 + $0x8] sm:$0xf]
        %v1886 = vld [vmem:[%s1882 + $0xc] sm:$0xf]
        %s1887 = scalar_lea.vmem %s4, 9
        %v1888 = vld [vmem:[%s1887] sm:$0x1]
        %v1890 = vlaneseq
        %v1891 = vshrl.u32 %v1890, 7
        %v1892 = vsub.s32 0, %v1891
        %v1893 = vrot.slane %v1888, %v1892
        %1896 = vrot.lane.b32.xlu0 %v592, 96
        %v1897 = vpop.permute.xlu0 %1896
        %v1902 = vunpack.c.l.b16 %v1883
        %v1903 = vunpack.c.l.b16 %v1884
        %v1904 = vunpack.c.l.b16 %v1885
        %v1905 = vunpack.c.l.b16 %v1886
        %v1906 = vpack.c.b16 %v1903, %v1902
        %v1907 = vpack.c.b16 %v1905, %v1904
        %v1911 = vsel %vm616, %v1897, 0
        %1913 = vmatprep.subr.bf16.mxu0 0
        %1914 = vmatpush1.bf16.msra.mxu0 %v1906
        %1915 = vmatprep.subr.bf16.mxu0 0
        %1916 = vmatpush1.bf16.msra.mxu0 %v1907
        %1917 = vmatprep.subr.bf16.mxu0 0
        %1918 = vmatpush1.bf16.msra.mxu0 0
        %1919 = vmatprep.subr.bf16.mxu0 0
        %1920 = vmatpush1.bf16.msra.mxu0 0
        %1921 = vmatprep.subr.bf16.mxu0 0
        %1922 = vmatpush1.bf16.msra.mxu0 0
        %1923 = vmatprep.subr.bf16.mxu0 0
        %1924 = vmatpush1.bf16.msra.mxu0 0
        %1925 = vmatprep.subr.bf16.mxu0 0
        %1926 = vmatpush1.bf16.msra.mxu0 0
        %1927 = vmatprep.subr.bf16.mxu0 0
        %1928 = vmatpush1.bf16.msra.mxu0 0
        %1929 = vmatprep.subr.bf16.mxu0 0
        %1930 = vmatpush1.bf16.msra.mxu0 0
        %1931 = vmatprep.subr.bf16.mxu0 0
        %1932 = vmatpush1.bf16.msra.mxu0 0
        %1933 = vmatprep.subr.bf16.mxu0 0
        %1934 = vmatpush1.bf16.msra.mxu0 0
        %1935 = vmatprep.subr.bf16.mxu0 0
        %1936 = vmatpush1.bf16.msra.mxu0 0
        %1937 = vmatprep.subr.bf16.mxu0 0
        %1938 = vmatpush1.bf16.msra.mxu0 0
        %1939 = vmatprep.subr.bf16.mxu0 0
        %1940 = vmatpush1.bf16.msra.mxu0 0
        %1941 = vmatprep.subr.bf16.mxu0 0
        %1942 = vmatpush1.bf16.msra.mxu0 0
        %1943 = vmatprep.subr.bf16.mxu0 0
        %1944 = vmatpush1.bf16.msra.mxu0 0
        %1945 = vmatprep.mubr.bf16.mxu0 0
        %1946 = vmatmul.mubr.bf16.gmra.mrb[0].mxu0 %v1911
        %v1947 = vpop.f32.mrb[0].mxu0
        %v1948 = vadd.f32 %v1893, %v1947
        %v1949 = vpop.f32.mrb[0].mxu0
        %v1950 = vpop.f32.mrb[0].mxu0
        %v1951 = vpop.f32.mrb[0].mxu0
        %1952 = vdwg.mxu0
        %v1953 = vmax.f32 %v1948, 0.0
        %v1954 = vpack.c.bf16 %v1953, %v1953
        %s1955 = scalar_lea.vmem [#allocation6], 144
        %v1956 = vld [vmem:[%s1955] sm:$0xf]
        %v1957 = vld [vmem:[%s1955 + $0x4] sm:$0xf]
        %v1958 = vld [vmem:[%s1955 + $0x8] sm:$0xf]
        %v1959 = vld [vmem:[%s1955 + $0xc] sm:$0xf]
        %s1960 = scalar_lea.vmem %s6, 9
        %v1961 = vld [vmem:[%s1960] sm:$0x1]
        %v1963 = vlaneseq
        %v1964 = vshrl.u32 %v1963, 7
        %v1965 = vsub.s32 0, %v1964
        %v1966 = vrot.slane %v1961, %v1965
        %v1972 = vunpack.c.l.b16 %v1956
        %v1973 = vunpack.c.l.b16 %v1957
        %v1974 = vunpack.c.l.b16 %v1958
        %v1975 = vunpack.c.l.b16 %v1959
        %v1976 = vpack.c.b16 %v1973, %v1972
        %v1977 = vpack.c.b16 %v1975, %v1974
        %v1981 = vsel %vm616, %v1954, 0
        %1983 = vmatprep.subr.bf16.mxu0 0
        %1984 = vmatpush1.bf16.msra.mxu0 %v1976
        %1985 = vmatprep.subr.bf16.mxu0 0
        %1986 = vmatpush1.bf16.msra.mxu0 %v1977
        %1987 = vmatprep.subr.bf16.mxu0 0
        %1988 = vmatpush1.bf16.msra.mxu0 0
        %1989 = vmatprep.subr.bf16.mxu0 0
        %1990 = vmatpush1.bf16.msra.mxu0 0
        %1991 = vmatprep.subr.bf16.mxu0 0
        %1992 = vmatpush1.bf16.msra.mxu0 0
        %1993 = vmatprep.subr.bf16.mxu0 0
        %1994 = vmatpush1.bf16.msra.mxu0 0
        %1995 = vmatprep.subr.bf16.mxu0 0
        %1996 = vmatpush1.bf16.msra.mxu0 0
        %1997 = vmatprep.subr.bf16.mxu0 0
        %1998 = vmatpush1.bf16.msra.mxu0 0
        %1999 = vmatprep.subr.bf16.mxu0 0
        %2000 = vmatpush1.bf16.msra.mxu0 0
        %2001 = vmatprep.subr.bf16.mxu0 0
        %2002 = vmatpush1.bf16.msra.mxu0 0
        %2003 = vmatprep.subr.bf16.mxu0 0
        %2004 = vmatpush1.bf16.msra.mxu0 0
        %2005 = vmatprep.subr.bf16.mxu0 0
        %2006 = vmatpush1.bf16.msra.mxu0 0
        %2007 = vmatprep.subr.bf16.mxu0 0
        %2008 = vmatpush1.bf16.msra.mxu0 0
        %2009 = vmatprep.subr.bf16.mxu0 0
        %2010 = vmatpush1.bf16.msra.mxu0 0
        %2011 = vmatprep.subr.bf16.mxu0 0
        %2012 = vmatpush1.bf16.msra.mxu0 0
        %2013 = vmatprep.subr.bf16.mxu0 0
        %2014 = vmatpush1.bf16.msra.mxu0 0
        %2015 = vmatprep.mubr.bf16.mxu0 0
        %2016 = vmatmul.mubr.bf16.gmra.mrb[0].mxu0 %v1981
        %v2017 = vpop.f32.mrb[0].mxu0
        %v2018 = vadd.f32 %v1966, %v2017
        %v2019 = vpop.f32.mrb[0].mxu0
        %v2020 = vpop.f32.mrb[0].mxu0
        %v2021 = vpop.f32.mrb[0].mxu0
        %2022 = vdwg.mxu0
        %2024 = vrot.lane.b32.xlu0 %v2018, 32
        %v2025 = vpop.permute.xlu0 %2024
        %2027 = vst.msk [vmem:[%s325 + $0x10] sm:$0xff] %vm874, %v2025
        %s2028 = scalar_lea.vmem [#allocation4], 160
        %v2029 = vld [vmem:[%s2028] sm:$0xf]
        %v2030 = vld [vmem:[%s2028 + $0x4] sm:$0xf]
        %v2031 = vld [vmem:[%s2028 + $0x8] sm:$0xf]
        %v2032 = vld [vmem:[%s2028 + $0xc] sm:$0xf]
        %s2033 = scalar_lea.vmem %s4, 10
        %v2034 = vld [vmem:[%s2033] sm:$0x1]
        %v2036 = vlaneseq
        %v2037 = vshrl.u32 %v2036, 7
        %v2038 = vsub.s32 0, %v2037
        %v2039 = vrot.slane %v2034, %v2038
        %2041 = vrot.lane.b32.xlu0 %v592, 64
        %v2042 = vpop.permute.xlu0 %2041
        %v2047 = vunpack.c.l.b16 %v2029
        %v2048 = vunpack.c.l.b16 %v2030
        %v2049 = vunpack.c.l.b16 %v2031
        %v2050 = vunpack.c.l.b16 %v2032
        %v2051 = vpack.c.b16 %v2048, %v2047
        %v2052 = vpack.c.b16 %v2050, %v2049
        %v2056 = vsel %vm616, %v2042, 0
        %2058 = vmatprep.subr.bf16.mxu0 0
        %2059 = vmatpush1.bf16.msra.mxu0 %v2051
        %2060 = vmatprep.subr.bf16.mxu0 0
        %2061 = vmatpush1.bf16.msra.mxu0 %v2052
        %2062 = vmatprep.subr.bf16.mxu0 0
        %2063 = vmatpush1.bf16.msra.mxu0 0
        %2064 = vmatprep.subr.bf16.mxu0 0
        %2065 = vmatpush1.bf16.msra.mxu0 0
        %2066 = vmatprep.subr.bf16.mxu0 0
        %2067 = vmatpush1.bf16.msra.mxu0 0
        %2068 = vmatprep.subr.bf16.mxu0 0
        %2069 = vmatpush1.bf16.msra.mxu0 0
        %2070 = vmatprep.subr.bf16.mxu0 0
        %2071 = vmatpush1.bf16.msra.mxu0 0
        %2072 = vmatprep.subr.bf16.mxu0 0
        %2073 = vmatpush1.bf16.msra.mxu0 0
        %2074 = vmatprep.subr.bf16.mxu0 0
        %2075 = vmatpush1.bf16.msra.mxu0 0
        %2076 = vmatprep.subr.bf16.mxu0 0
        %2077 = vmatpush1.bf16.msra.mxu0 0
        %2078 = vmatprep.subr.bf16.mxu0 0
        %2079 = vmatpush1.bf16.msra.mxu0 0
        %2080 = vmatprep.subr.bf16.mxu0 0
        %2081 = vmatpush1.bf16.msra.mxu0 0
        %2082 = vmatprep.subr.bf16.mxu0 0
        %2083 = vmatpush1.bf16.msra.mxu0 0
        %2084 = vmatprep.subr.bf16.mxu0 0
        %2085 = vmatpush1.bf16.msra.mxu0 0
        %2086 = vmatprep.subr.bf16.mxu0 0
        %2087 = vmatpush1.bf16.msra.mxu0 0
        %2088 = vmatprep.subr.bf16.mxu0 0
        %2089 = vmatpush1.bf16.msra.mxu0 0
        %2090 = vmatprep.mubr.bf16.mxu0 0
        %2091 = vmatmul.mubr.bf16.gmra.mrb[0].mxu0 %v2056
        %v2092 = vpop.f32.mrb[0].mxu0
        %v2093 = vadd.f32 %v2039, %v2092
        %v2094 = vpop.f32.mrb[0].mxu0
        %v2095 = vpop.f32.mrb[0].mxu0
        %v2096 = vpop.f32.mrb[0].mxu0
        %2097 = vdwg.mxu0
        %v2098 = vmax.f32 %v2093, 0.0
        %v2099 = vpack.c.bf16 %v2098, %v2098
        %s2100 = scalar_lea.vmem [#allocation6], 160
        %v2101 = vld [vmem:[%s2100] sm:$0xf]
        %v2102 = vld [vmem:[%s2100 + $0x4] sm:$0xf]
        %v2103 = vld [vmem:[%s2100 + $0x8] sm:$0xf]
        %v2104 = vld [vmem:[%s2100 + $0xc] sm:$0xf]
        %s2105 = scalar_lea.vmem %s6, 10
        %v2106 = vld [vmem:[%s2105] sm:$0x1]
        %v2108 = vlaneseq
        %v2109 = vshrl.u32 %v2108, 7
        %v2110 = vsub.s32 0, %v2109
        %v2111 = vrot.slane %v2106, %v2110
        %v2117 = vunpack.c.l.b16 %v2101
        %v2118 = vunpack.c.l.b16 %v2102
        %v2119 = vunpack.c.l.b16 %v2103
        %v2120 = vunpack.c.l.b16 %v2104
        %v2121 = vpack.c.b16 %v2118, %v2117
        %v2122 = vpack.c.b16 %v2120, %v2119
        %v2126 = vsel %vm616, %v2099, 0
        %2128 = vmatprep.subr.bf16.mxu0 0
        %2129 = vmatpush1.bf16.msra.mxu0 %v2121
        %2130 = vmatprep.subr.bf16.mxu0 0
        %2131 = vmatpush1.bf16.msra.mxu0 %v2122
        %2132 = vmatprep.subr.bf16.mxu0 0
        %2133 = vmatpush1.bf16.msra.mxu0 0
        %2134 = vmatprep.subr.bf16.mxu0 0
        %2135 = vmatpush1.bf16.msra.mxu0 0
        %2136 = vmatprep.subr.bf16.mxu0 0
        %2137 = vmatpush1.bf16.msra.mxu0 0
        %2138 = vmatprep.subr.bf16.mxu0 0
        %2139 = vmatpush1.bf16.msra.mxu0 0
        %2140 = vmatprep.subr.bf16.mxu0 0
        %2141 = vmatpush1.bf16.msra.mxu0 0
        %2142 = vmatprep.subr.bf16.mxu0 0
        %2143 = vmatpush1.bf16.msra.mxu0 0
        %2144 = vmatprep.subr.bf16.mxu0 0
        %2145 = vmatpush1.bf16.msra.mxu0 0
        %2146 = vmatprep.subr.bf16.mxu0 0
        %2147 = vmatpush1.bf16.msra.mxu0 0
        %2148 = vmatprep.subr.bf16.mxu0 0
        %2149 = vmatpush1.bf16.msra.mxu0 0
        %2150 = vmatprep.subr.bf16.mxu0 0
        %2151 = vmatpush1.bf16.msra.mxu0 0
        %2152 = vmatprep.subr.bf16.mxu0 0
        %2153 = vmatpush1.bf16.msra.mxu0 0
        %2154 = vmatprep.subr.bf16.mxu0 0
        %2155 = vmatpush1.bf16.msra.mxu0 0
        %2156 = vmatprep.subr.bf16.mxu0 0
        %2157 = vmatpush1.bf16.msra.mxu0 0
        %2158 = vmatprep.subr.bf16.mxu0 0
        %2159 = vmatpush1.bf16.msra.mxu0 0
        %2160 = vmatprep.mubr.bf16.mxu0 0
        %2161 = vmatmul.mubr.bf16.gmra.mrb[0].mxu0 %v2126
        %v2162 = vpop.f32.mrb[0].mxu0
        %v2163 = vadd.f32 %v2111, %v2162
        %v2164 = vpop.f32.mrb[0].mxu0
        %v2165 = vpop.f32.mrb[0].mxu0
        %v2166 = vpop.f32.mrb[0].mxu0
        %2167 = vdwg.mxu0
        %2169 = vrot.lane.b32.xlu0 %v2163, 64
        %v2170 = vpop.permute.xlu0 %2169
        %2172 = vst.msk [vmem:[%s325 + $0x10] sm:$0xff] %vm1020, %v2170
        %s2173 = scalar_lea.vmem [#allocation4], 176
        %v2174 = vld [vmem:[%s2173] sm:$0xf]
        %v2175 = vld [vmem:[%s2173 + $0x4] sm:$0xf]
        %v2176 = vld [vmem:[%s2173 + $0x8] sm:$0xf]
        %v2177 = vld [vmem:[%s2173 + $0xc] sm:$0xf]
        %s2178 = scalar_lea.vmem %s4, 11
        %v2179 = vld [vmem:[%s2178] sm:$0x1]
        %v2181 = vlaneseq
        %v2182 = vshrl.u32 %v2181, 7
        %v2183 = vsub.s32 0, %v2182
        %v2184 = vrot.slane %v2179, %v2183
        %2186 = vrot.lane.b32.xlu0 %v592, 32
        %v2187 = vpop.permute.xlu0 %2186
        %v2192 = vunpack.c.l.b16 %v2174
        %v2193 = vunpack.c.l.b16 %v2175
        %v2194 = vunpack.c.l.b16 %v2176
        %v2195 = vunpack.c.l.b16 %v2177
        %v2196 = vpack.c.b16 %v2193, %v2192
        %v2197 = vpack.c.b16 %v2195, %v2194
        %v2201 = vsel %vm616, %v2187, 0
        %2203 = vmatprep.subr.bf16.mxu0 0
        %2204 = vmatpush1.bf16.msra.mxu0 %v2196
        %2205 = vmatprep.subr.bf16.mxu0 0
        %2206 = vmatpush1.bf16.msra.mxu0 %v2197
        %2207 = vmatprep.subr.bf16.mxu0 0
        %2208 = vmatpush1.bf16.msra.mxu0 0
        %2209 = vmatprep.subr.bf16.mxu0 0
        %2210 = vmatpush1.bf16.msra.mxu0 0
        %2211 = vmatprep.subr.bf16.mxu0 0
        %2212 = vmatpush1.bf16.msra.mxu0 0
        %2213 = vmatprep.subr.bf16.mxu0 0
        %2214 = vmatpush1.bf16.msra.mxu0 0
        %2215 = vmatprep.subr.bf16.mxu0 0
        %2216 = vmatpush1.bf16.msra.mxu0 0
        %2217 = vmatprep.subr.bf16.mxu0 0
        %2218 = vmatpush1.bf16.msra.mxu0 0
        %2219 = vmatprep.subr.bf16.mxu0 0
        %2220 = vmatpush1.bf16.msra.mxu0 0
        %2221 = vmatprep.subr.bf16.mxu0 0
        %2222 = vmatpush1.bf16.msra.mxu0 0
        %2223 = vmatprep.subr.bf16.mxu0 0
        %2224 = vmatpush1.bf16.msra.mxu0 0
        %2225 = vmatprep.subr.bf16.mxu0 0
        %2226 = vmatpush1.bf16.msra.mxu0 0
        %2227 = vmatprep.subr.bf16.mxu0 0
        %2228 = vmatpush1.bf16.msra.mxu0 0
        %2229 = vmatprep.subr.bf16.mxu0 0
        %2230 = vmatpush1.bf16.msra.mxu0 0
        %2231 = vmatprep.subr.bf16.mxu0 0
        %2232 = vmatpush1.bf16.msra.mxu0 0
        %2233 = vmatprep.subr.bf16.mxu0 0
        %2234 = vmatpush1.bf16.msra.mxu0 0
        %2235 = vmatprep.mubr.bf16.mxu0 0
        %2236 = vmatmul.mubr.bf16.gmra.mrb[0].mxu0 %v2201
        %v2237 = vpop.f32.mrb[0].mxu0
        %v2238 = vadd.f32 %v2184, %v2237
        %v2239 = vpop.f32.mrb[0].mxu0
        %v2240 = vpop.f32.mrb[0].mxu0
        %v2241 = vpop.f32.mrb[0].mxu0
        %2242 = vdwg.mxu0
        %v2243 = vmax.f32 %v2238, 0.0
        %v2244 = vpack.c.bf16 %v2243, %v2243
        %s2245 = scalar_lea.vmem [#allocation6], 176
        %v2246 = vld [vmem:[%s2245] sm:$0xf]
        %v2247 = vld [vmem:[%s2245 + $0x4] sm:$0xf]
        %v2248 = vld [vmem:[%s2245 + $0x8] sm:$0xf]
        %v2249 = vld [vmem:[%s2245 + $0xc] sm:$0xf]
        %s2250 = scalar_lea.vmem %s6, 11
        %v2251 = vld [vmem:[%s2250] sm:$0x1]
        %v2253 = vlaneseq
        %v2254 = vshrl.u32 %v2253, 7
        %v2255 = vsub.s32 0, %v2254
        %v2256 = vrot.slane %v2251, %v2255
        %v2262 = vunpack.c.l.b16 %v2246
        %v2263 = vunpack.c.l.b16 %v2247
        %v2264 = vunpack.c.l.b16 %v2248
        %v2265 = vunpack.c.l.b16 %v2249
        %v2266 = vpack.c.b16 %v2263, %v2262
        %v2267 = vpack.c.b16 %v2265, %v2264
        %v2271 = vsel %vm616, %v2244, 0
        %2273 = vmatprep.subr.bf16.mxu0 0
        %2274 = vmatpush1.bf16.msra.mxu0 %v2266
        %2275 = vmatprep.subr.bf16.mxu0 0
        %2276 = vmatpush1.bf16.msra.mxu0 %v2267
        %2277 = vmatprep.subr.bf16.mxu0 0
        %2278 = vmatpush1.bf16.msra.mxu0 0
        %2279 = vmatprep.subr.bf16.mxu0 0
        %2280 = vmatpush1.bf16.msra.mxu0 0
        %2281 = vmatprep.subr.bf16.mxu0 0
        %2282 = vmatpush1.bf16.msra.mxu0 0
        %2283 = vmatprep.subr.bf16.mxu0 0
        %2284 = vmatpush1.bf16.msra.mxu0 0
        %2285 = vmatprep.subr.bf16.mxu0 0
        %2286 = vmatpush1.bf16.msra.mxu0 0
        %2287 = vmatprep.subr.bf16.mxu0 0
        %2288 = vmatpush1.bf16.msra.mxu0 0
        %2289 = vmatprep.subr.bf16.mxu0 0
        %2290 = vmatpush1.bf16.msra.mxu0 0
        %2291 = vmatprep.subr.bf16.mxu0 0
        %2292 = vmatpush1.bf16.msra.mxu0 0
        %2293 = vmatprep.subr.bf16.mxu0 0
        %2294 = vmatpush1.bf16.msra.mxu0 0
        %2295 = vmatprep.subr.bf16.mxu0 0
        %2296 = vmatpush1.bf16.msra.mxu0 0
        %2297 = vmatprep.subr.bf16.mxu0 0
        %2298 = vmatpush1.bf16.msra.mxu0 0
        %2299 = vmatprep.subr.bf16.mxu0 0
        %2300 = vmatpush1.bf16.msra.mxu0 0
        %2301 = vmatprep.subr.bf16.mxu0 0
        %2302 = vmatpush1.bf16.msra.mxu0 0
        %2303 = vmatprep.subr.bf16.mxu0 0
        %2304 = vmatpush1.bf16.msra.mxu0 0
        %2305 = vmatprep.mubr.bf16.mxu0 0
        %2306 = vmatmul.mubr.bf16.gmra.mrb[0].mxu0 %v2271
        %v2307 = vpop.f32.mrb[0].mxu0
        %v2308 = vadd.f32 %v2256, %v2307
        %v2309 = vpop.f32.mrb[0].mxu0
        %v2310 = vpop.f32.mrb[0].mxu0
        %v2311 = vpop.f32.mrb[0].mxu0
        %2312 = vdwg.mxu0
        %2314 = vrot.lane.b32.xlu0 %v2308, 96
        %v2315 = vpop.permute.xlu0 %2314
        %2317 = vst.msk [vmem:[%s325 + $0x10] sm:$0xff] %vm1166, %v2315
        %p2318 = scmp.lt.s32.totalorder %s20, 1
        %s2319 = scalar_select %p2318, %s20, 1
        %s2320 = smul.addr %s2319, 3
        %s2321 = smul.addr %s2320, 8
        %s2322 = scalar_lea.vmem %s7, %s2321
        // Predicated region
        $region61: #{vima_action_decoder_forward.1} parent=47 // pred_check
          %p2323 = pneg %p190
        $region62: #{vima_action_decoder_forward.1} parent=47 // pred_check_branch
          %2325 = sbr.rel (%p2323) target = $region64
        $region63: #{vima_action_decoder_forward.1} parent=47 // pred_region
          _
        $region64: #{vima_action_decoder_forward.1} parent=47 // pred_fallthru
          _
      $region48: #{vima_action_decoder_forward.1} parent=5 // pred_fallthru
        _
      %p2326 = scmp.le.s32.totalorder 2, %s15
      // Predicated region
      $region65: #{vima_action_decoder_forward.1} parent=5 // pred_check
        %p2327 = pneg %p2326
      $region66: #{vima_action_decoder_forward.1} parent=5 // pred_check_branch
        %2329 = sbr.rel (%p2327) target = $region68
      $region67: #{vima_action_decoder_forward.1} parent=5 // pred_region
        %s2330 = ssub.s32 %s15, 2
        // Predicated region
        $region69: #{vima_action_decoder_forward.1} parent=67 // pred_check
          %p2331 = pneg %p196
        $region70: #{vima_action_decoder_forward.1} parent=67 // pred_check_branch
          %2333 = sbr.rel (%p2331) target = $region72
        $region71: #{vima_action_decoder_forward.1} parent=67 // pred_region
          %p2334 = scmp.lt.s32.totalorder %s21, 1
          %s2335 = scalar_select %p2334, %s21, 1
          %s2336 = smul.addr %s2335, 3
          %s2337 = smul.addr %s2336, 8
          %s2338 = scalar_lea.vmem %s7, %s2337
        $region72: #{vima_action_decoder_forward.1} parent=67 // pred_fallthru
          _
      $region68: #{vima_action_decoder_forward.1} parent=5 // pred_fallthru
        _
    $region6: #{vima_action_decoder_forward.1} parent=1 // loop_footer
      %s19 = sadd.s32 1, %s15
    $region7: #{vima_action_decoder_forward.1} parent=1 // loop_footer_branch
      %14 = sbr.rel target = $region3
    $region8: #{vima_action_decoder_forward.1} parent=1 // loop_exit
      _
    %2339 = vsyncpa [#allocation3], 1
    %s2340 = scalar_lea.sflag [#allocation3], 1
    %2341 = vsyncpa %s2340, 1
    %2342 = vsyncpa [#allocation5], 1

// kernel: vima_action_decoder_forward.1
$region0: #{vima_action_decoder_forward.1}
  #allocation0 [shape = 'u32[]', space=smem, size = 0x4, offset = 0x4, fixed_abs, tag = 'smem constant byte address 0x4 - core index']
  #allocation1 [shape = 'u32[144,128]{1,0:T(1,128)}', space=vmem, size = 0x12000, scoped, tag = 'internal scratch']
  %s0 = inlined_call_operand.vmem [shape: f32[16,640], index: 0, kind: input, shape index: {}]
  %s1 = inlined_call_operand.hbm [shape: bf16[128,384], index: 1, kind: input, shape index: {}]
  %s2 = inlined_call_operand.vmem [shape: f32[1,384], index: 2, kind: input, shape index: {}]
  %s3 = inlined_call_operand.hbm [shape: bf16[12,32,32], index: 3, kind: input, shape index: {}]
  %s4 = inlined_call_operand.vmem [shape: f32[12,1,32], index: 4, kind: input, shape index: {}]
  %s5 = inlined_call_operand.hbm [shape: bf16[12,32,32], index: 5, kind: input, shape index: {}]
  %s6 = inlined_call_operand.vmem [shape: f32[12,1,32], index: 6, kind: input, shape index: {}]
  %s7 = inlined_call_operand.vmem [shape: f32[16,384], index: 7, kind: output, shape index: {}]
  %s8 = sld [smem:[#allocation0]]
  $region73: #{vima_action_decoder_forward.1} parent=0
    _
  %s10 = ssub.s32 1, %s8
  %s11 = scalar_select 0, %s10, %s8
  $region1: #{vima_action_decoder_forward.1} parent=0
    #allocation2 [shape = 'u8[98304]{0}', space=vmem, size = 0x18000, scoped, tag = 'input window, operand 1, single buffered']
    #allocation3 [shape = 's32[2]{0}', space=sflag, size = 0x8, scoped, tag = 'scoped memory for vima_action_decoder_forward.1']
    #allocation4 [shape = 'u8[98304]{0}', space=vmem, size = 0x18000, scoped, tag = 'input window, operand 3, single buffered']
    #allocation5 [shape = 's32[1]{0}', space=sflag, size = 0x4, scoped, tag = 'scoped memory for vima_action_decoder_forward.1']
    #allocation6 [shape = 'u8[98304]{0}', space=vmem, size = 0x18000, scoped, tag = 'input window, operand 5, single buffered']
    %12 = vsyncpa [#allocation3], 0
    %13 = vsyncpa [#allocation5], 0
    loop: start=0, step=1, limit=4
    $region2: #{vima_action_decoder_forward.1} parent=1 // loop_pre_header
      _
    $region3: #{vima_action_decoder_forward.1} parent=1 // loop_header
      %s15 = sphi 0, %s19
      %p16 = scmp.ge.s32.totalorder %s15, 4
      %s25 = sphi 0, %s27
      %s28 = sphi 0, %s25
      %s29 = sphi 0, %s28
      %s45 = sphi 0, %s29
      %s49 = sphi 0, %s49
      %s51 = sphi 0, %s49
      %s52 = sphi 0, %s51
      %s66 = sphi 0, %s52
      %s70 = sphi 0, %s70
      %s72 = sphi 0, %s70
      %s73 = sphi 0, %s72
      %s87 = sphi 0, %s73
      %s91 = sphi 0, %s91
      %s93 = sphi 0, %s91
      %s94 = sphi 0, %s93
      %s108 = sphi 0, %s94
      %s112 = sphi 0, %s112
      %s114 = sphi 0, %s112
      %s115 = sphi 0, %s114
      %s129 = sphi 0, %s115
      %s133 = sphi 0, %s133
      %s135 = sphi 0, %s133
      %s136 = sphi 0, %s135
      %s150 = sphi 0, %s136
      %s154 = sphi 0, %s154
      %s156 = sphi 0, %s154
      %s157 = sphi 0, %s156
      %s171 = sphi 0, %s157
      %s177 = sphi 0, %s179
      %s180 = sphi 0, %s177
      %s181 = sphi 0, %s180
      %s197 = sphi 0, %s181
    $region4: #{vima_action_decoder_forward.1} parent=1 // loop_header_branch
      %18 = sbr.rel (%p16) target = $region8
    $region5: #{vima_action_decoder_forward.1} parent=1 // loop_body
      %s20 = ssub.s32 %s15, 1
      %s21 = ssub.s32 %s15, 2
      %s22 = sadd.s32 %s15, 1
      %s23 = ssub.s32 %s15, %s22
      %p24 = scmp.eq.s32.totalorder %s23, 0
      %s26 = sadd.s32 %s25, 1
      %s27 = scalar_select %p24, %s25, %s26
      %p30 = pneg %p24
      %p31 = scmp.eq.s32.totalorder %s15, 1
      %p32 = por %p30, %p31
      %p33 = scmp.ne.s32.totalorder %s25, %s28
      %p34 = scmp.eq.s32.totalorder %s15, 0
      %p35 = por %p33, %p34
      %p36 = scmp.ne.s32.totalorder %s25, %s28
      %p37 = scmp.eq.s32.totalorder %s20, 1
      %p38 = por %p36, %p37
      %p39 = scmp.ne.s32.totalorder %s28, %s29
      %p40 = scmp.eq.s32.totalorder %s20, 0
      %p41 = por %p39, %p40
      %p42 = scmp.ne.s32.totalorder %s28, %s29
      %p43 = scmp.eq.s32.totalorder %s21, 1
      %p44 = por %p42, %p43
      %p46 = scmp.ne.s32.totalorder %s29, %s45
      %p47 = scmp.eq.s32.totalorder %s21, 0
      %p48 = por %p46, %p47
      %s50 = sadd.s32 %s49, 1
      %p53 = scmp.eq.s32.totalorder %s15, 1
      %p54 = scmp.ne.s32.totalorder %s49, %s51
      %p55 = scmp.eq.s32.totalorder %s15, 0
      %p56 = por %p54, %p55
      %p57 = scmp.ne.s32.totalorder %s49, %s51
      %p58 = scmp.eq.s32.totalorder %s20, 1
      %p59 = por %p57, %p58
      %p60 = scmp.ne.s32.totalorder %s51, %s52
      %p61 = scmp.eq.s32.totalorder %s20, 0
      %p62 = por %p60, %p61
      %p63 = scmp.ne.s32.totalorder %s51, %s52
      %p64 = scmp.eq.s32.totalorder %s21, 1
      %p65 = por %p63, %p64
      %p67 = scmp.ne.s32.totalorder %s52, %s66
      %p68 = scmp.eq.s32.totalorder %s21, 0
      %p69 = por %p67, %p68
      %s71 = sadd.s32 %s70, 1
      %p74 = scmp.eq.s32.totalorder %s15, 1
      %p75 = scmp.ne.s32.totalorder %s70, %s72
      %p76 = scmp.eq.s32.totalorder %s15, 0
      %p77 = por %p75, %p76
      %p78 = scmp.ne.s32.totalorder %s70, %s72
      %p79 = scmp.eq.s32.totalorder %s20, 1
      %p80 = por %p78, %p79
      %p81 = scmp.ne.s32.totalorder %s72, %s73
      %p82 = scmp.eq.s32.totalorder %s20, 0
      %p83 = por %p81, %p82
      %p84 = scmp.ne.s32.totalorder %s72, %s73
      %p85 = scmp.eq.s32.totalorder %s21, 1
      %p86 = por %p84, %p85
      %p88 = scmp.ne.s32.totalorder %s73, %s87
      %p89 = scmp.eq.s32.totalorder %s21, 0
      %p90 = por %p88, %p89
      %s92 = sadd.s32 %s91, 1
      %p95 = scmp.eq.s32.totalorder %s15, 1
      %p96 = scmp.ne.s32.totalorder %s91, %s93
      %p97 = scmp.eq.s32.totalorder %s15, 0
      %p98 = por %p96, %p97
      %p99 = scmp.ne.s32.totalorder %s91, %s93
      %p100 = scmp.eq.s32.totalorder %s20, 1
      %p101 = por %p99, %p100
      %p102 = scmp.ne.s32.totalorder %s93, %s94
      %p103 = scmp.eq.s32.totalorder %s20, 0
      %p104 = por %p102, %p103
      %p105 = scmp.ne.s32.totalorder %s93, %s94
      %p106 = scmp.eq.s32.totalorder %s21, 1
      %p107 = por %p105, %p106
      %p109 = scmp.ne.s32.totalorder %s94, %s108
      %p110 = scmp.eq.s32.totalorder %s21, 0
      %p111 = por %p109, %p110
      %s113 = sadd.s32 %s112, 1
      %p116 = scmp.eq.s32.totalorder %s15, 1
      %p117 = scmp.ne.s32.totalorder %s112, %s114
      %p118 = scmp.eq.s32.totalorder %s15, 0
      %p119 = por %p117, %p118
      %p120 = scmp.ne.s32.totalorder %s112, %s114
      %p121 = scmp.eq.s32.totalorder %s20, 1
      %p122 = por %p120, %p121
      %p123 = scmp.ne.s32.totalorder %s114, %s115
      %p124 = scmp.eq.s32.totalorder %s20, 0
      %p125 = por %p123, %p124
      %p126 = scmp.ne.s32.totalorder %s114, %s115
      %p127 = scmp.eq.s32.totalorder %s21, 1
      %p128 = por %p126, %p127
      %p130 = scmp.ne.s32.totalorder %s115, %s129
      %p131 = scmp.eq.s32.totalorder %s21, 0
      %p132 = por %p130, %p131
      %s134 = sadd.s32 %s133, 1
      %p137 = scmp.eq.s32.totalorder %s15, 1
      %p138 = scmp.ne.s32.totalorder %s133, %s135
      %p139 = scmp.eq.s32.totalorder %s15, 0
      %p140 = por %p138, %p139
      %p141 = scmp.ne.s32.totalorder %s133, %s135
      %p142 = scmp.eq.s32.totalorder %s20, 1
      %p143 = por %p141, %p142
      %p144 = scmp.ne.s32.totalorder %s135, %s136
      %p145 = scmp.eq.s32.totalorder %s20, 0
      %p146 = por %p144, %p145
      %p147 = scmp.ne.s32.totalorder %s135, %s136
      %p148 = scmp.eq.s32.totalorder %s21, 1
      %p149 = por %p147, %p148
      %p151 = scmp.ne.s32.totalorder %s136, %s150
      %p152 = scmp.eq.s32.totalorder %s21, 0
      %p153 = por %p151, %p152
      %s155 = sadd.s32 %s154, 1
      %p158 = scmp.eq.s32.totalorder %s15, 1
      %p159 = scmp.ne.s32.totalorder %s154, %s156
      %p160 = scmp.eq.s32.totalorder %s15, 0
      %p161 = por %p159, %p160
      %p162 = scmp.ne.s32.totalorder %s154, %s156
      %p163 = scmp.eq.s32.totalorder %s20, 1
      %p164 = por %p162, %p163
      %p165 = scmp.ne.s32.totalorder %s156, %s157
      %p166 = scmp.eq.s32.totalorder %s20, 0
      %p167 = por %p165, %p166
      %p168 = scmp.ne.s32.totalorder %s156, %s157
      %p169 = scmp.eq.s32.totalorder %s21, 1
      %p170 = por %p168, %p169
      %p172 = scmp.ne.s32.totalorder %s157, %s171
      %p173 = scmp.eq.s32.totalorder %s21, 0
      %p174 = por %p172, %p173
      %s175 = ssub.s32 %s15, %s22
      %p176 = scmp.eq.s32.totalorder %s175, 0
      %s178 = sadd.s32 %s177, 1
      %s179 = scalar_select %p176, %s177, %s178
      %p182 = pneg %p176
      %p183 = scmp.eq.s32.totalorder %s15, 1
      %p184 = por %p182, %p183
      %p185 = scmp.ne.s32.totalorder %s177, %s180
      %p186 = scmp.eq.s32.totalorder %s15, 0
      %p187 = por %p185, %p186
      %p188 = scmp.ne.s32.totalorder %s177, %s180
      %p189 = scmp.eq.s32.totalorder %s20, 1
      %p190 = por %p188, %p189
      %p191 = scmp.ne.s32.totalorder %s180, %s181
      %p192 = scmp.eq.s32.totalorder %s20, 0
      %p193 = por %p191, %p192
      %p194 = scmp.ne.s32.totalorder %s180, %s181
      %p195 = scmp.eq.s32.totalorder %s21, 1
      %p196 = por %p194, %p195
      %p198 = scmp.ne.s32.totalorder %s181, %s197
      %p199 = scmp.eq.s32.totalorder %s21, 0
      %p200 = por %p198, %p199
      %p201 = scmp.le.s32.totalorder 1, %s15
      %p202 = scmp.lt.s32.totalorder %s15, 3
      %p203 = pnand %p201, %p202
      %p204 = pneg %p203
      // Predicated region
      $region9: #{vima_action_decoder_forward.1} parent=5 // pred_check
        _
      $region10: #{vima_action_decoder_forward.1} parent=5 // pred_check_branch
        %206 = sbr.rel (%p203) target = $region12
      $region11: #{vima_action_decoder_forward.1} parent=5 // pred_region
        %s207 = ssub.s32 %s15, 1
        // Predicated region
        $region13: #{vima_action_decoder_forward.1} parent=11 // pred_check
          %p208 = pneg %p62
        $region14: #{vima_action_decoder_forward.1} parent=11 // pred_check_branch
          %210 = sbr.rel (%p208) target = $region16
        $region15: #{vima_action_decoder_forward.1} parent=11 // pred_region
          %s212 = ssub.s32 3072, 3072
          %213 = vsyncadd [#allocation3], %s212
          %s214 = sshll.u32 [#allocation2], 4
          %s215 = int_to_ptr.vmem [resolvable:$true] %s214
          %220 = dma.hbm_to_vmem [thread:$0]  %s1, 3072, %s215, [#allocation3], 192, 192, 12
        $region16: #{vima_action_decoder_forward.1} parent=11 // pred_fallthru
          _
        // Predicated region
        $region17: #{vima_action_decoder_forward.1} parent=11 // pred_check
          %p221 = pneg %p83
        $region18: #{vima_action_decoder_forward.1} parent=11 // pred_check_branch
          %223 = sbr.rel (%p221) target = $region20
        $region19: #{vima_action_decoder_forward.1} parent=11 // pred_region
          _
        $region20: #{vima_action_decoder_forward.1} parent=11 // pred_fallthru
          _
        // Predicated region
        $region21: #{vima_action_decoder_forward.1} parent=11 // pred_check
          %p224 = pneg %p104
        $region22: #{vima_action_decoder_forward.1} parent=11 // pred_check_branch
          %226 = sbr.rel (%p224) target = $region24
        $region23: #{vima_action_decoder_forward.1} parent=11 // pred_region
          %s228 = ssub.s32 3072, 3072
          %229 = vsyncadd [#allocation5], %s228
          %s230 = sshll.u32 [#allocation4], 4
          %s231 = int_to_ptr.vmem [resolvable:$true] %s230
          %236 = dma.hbm_to_vmem [thread:$0]  %s3, 3072, %s231, [#allocation5], 64, 64, 4
        $region24: #{vima_action_decoder_forward.1} parent=11 // pred_fallthru
          _
        // Predicated region
        $region25: #{vima_action_decoder_forward.1} parent=11 // pred_check
          %p237 = pneg %p125
        $region26: #{vima_action_decoder_forward.1} parent=11 // pred_check_branch
          %239 = sbr.rel (%p237) target = $region28
        $region27: #{vima_action_decoder_forward.1} parent=11 // pred_region
          _
        $region28: #{vima_action_decoder_forward.1} parent=11 // pred_fallthru
          _
        // Predicated region
        $region29: #{vima_action_decoder_forward.1} parent=11 // pred_check
          %p240 = pneg %p146
        $region30: #{vima_action_decoder_forward.1} parent=11 // pred_check_branch
          %242 = sbr.rel (%p240) target = $region32
        $region31: #{vima_action_decoder_forward.1} parent=11 // pred_region
          %s244 = ssub.s32 3072, 3072
          %245 = vsyncadd [#allocation5], %s244
          %s246 = sshll.u32 [#allocation6], 4
          %s247 = int_to_ptr.vmem [resolvable:$true] %s246
          %252 = dma.hbm_to_vmem [thread:$0]  %s5, 3072, %s247, [#allocation5], 64, 64, 4
        $region32: #{vima_action_decoder_forward.1} parent=11 // pred_fallthru
          _
        // Predicated region
        $region33: #{vima_action_decoder_forward.1} parent=11 // pred_check
          %p253 = pneg %p167
        $region34: #{vima_action_decoder_forward.1} parent=11 // pred_check_branch
          %255 = sbr.rel (%p253) target = $region36
        $region35: #{vima_action_decoder_forward.1} parent=11 // pred_region
          _
        $region36: #{vima_action_decoder_forward.1} parent=11 // pred_fallthru
          _
      $region12: #{vima_action_decoder_forward.1} parent=5 // pred_fallthru
        _
      %p256 = scmp.lt.s32.totalorder %s15, 2
      // Predicated region
      $region37: #{vima_action_decoder_forward.1} parent=5 // pred_check
        %p257 = pneg %p256
      $region38: #{vima_action_decoder_forward.1} parent=5 // pred_check_branch
        %259 = sbr.rel (%p257) target = $region40
      $region39: #{vima_action_decoder_forward.1} parent=5 // pred_region
        // Predicated region
        $region41: #{vima_action_decoder_forward.1} parent=39 // pred_check
          %p260 = pneg %p35
        $region42: #{vima_action_decoder_forward.1} parent=39 // pred_check_branch
          %262 = sbr.rel (%p260) target = $region44
        $region43: #{vima_action_decoder_forward.1} parent=39 // pred_region
          %p263 = scmp.lt.s32.totalorder %s15, 1
          %s264 = scalar_select %p263, %s15, 1
          %s265 = smul.addr %s264, 5
          %s266 = sadd.s32 3, %s265
          %s267 = smul.addr %s266, 8
          %s268 = scalar_lea.vmem %s0, %s267
        $region44: #{vima_action_decoder_forward.1} parent=39 // pred_fallthru
          _
      $region40: #{vima_action_decoder_forward.1} parent=5 // pred_fallthru
        _
      %p269 = scmp.le.s32.totalorder 1, %s15
      %p270 = scmp.lt.s32.totalorder %s15, 3
      %p271 = pnand %p269, %p270
      %p272 = pneg %p271
      // Predicated region
      $region45: #{vima_action_decoder_forward.1} parent=5 // pred_check
        _
      $region46: #{vima_action_decoder_forward.1} parent=5 // pred_check_branch
        %274 = sbr.rel (%p271) target = $region48
      $region47: #{vima_action_decoder_forward.1} parent=5 // pred_region
        %s275 = ssub.s32 %s15, 1
        // Predicated region
        $region49: #{vima_action_decoder_forward.1} parent=47 // pred_check
          %p276 = pneg %p62
        $region50: #{vima_action_decoder_forward.1} parent=47 // pred_check_branch
          %278 = sbr.rel (%p276) target = $region52
        $region51: #{vima_action_decoder_forward.1} parent=47 // pred_region
          %279 = dma.done [#allocation3], 3072
        $region52: #{vima_action_decoder_forward.1} parent=47 // pred_fallthru
          _
        // Predicated region
        $region53: #{vima_action_decoder_forward.1} parent=47 // pred_check
          %p280 = pneg %p104
        $region54: #{vima_action_decoder_forward.1} parent=47 // pred_check_branch
          %282 = sbr.rel (%p280) target = $region56
        $region55: #{vima_action_decoder_forward.1} parent=47 // pred_region
          %283 = dma.done [#allocation5], 3072
        $region56: #{vima_action_decoder_forward.1} parent=47 // pred_fallthru
          _
        // Predicated region
        $region57: #{vima_action_decoder_forward.1} parent=47 // pred_check
          %p284 = pneg %p146
        $region58: #{vima_action_decoder_forward.1} parent=47 // pred_check_branch
          %286 = sbr.rel (%p284) target = $region60
        $region59: #{vima_action_decoder_forward.1} parent=47 // pred_region
          %287 = dma.done [#allocation5], 3072
        $region60: #{vima_action_decoder_forward.1} parent=47 // pred_fallthru
          _
        %p288 = scmp.lt.s32.totalorder %s20, 1
        %s289 = scalar_select %p288, %s20, 1
        %s290 = smul.addr %s289, 5
        %s291 = sadd.s32 3, %s290
        %s292 = smul.addr %s291, 8
        %s293 = scalar_lea.vmem %s0, %s292
        %p294 = pneg %p41
        %p295 = pneg %p38
        %p296 = pneg %p62
        %p297 = pneg %p59
        %p298 = pneg %p83
        %p299 = pneg %p80
        %p300 = pneg %p104
        %p301 = pneg %p101
        %p302 = pneg %p125
        %p303 = pneg %p122
        %p304 = pneg %p146
        %p305 = pneg %p143
        %p306 = pneg %p167
        %p307 = pneg %p164
        %p308 = pneg %p193
        %p309 = pneg %p190
        %p310 = scmp.lt.s32.totalorder %s20, 1
        %s311 = scalar_select %p310, %s20, 1
        %s312 = smul.addr %s311, 3
        %s313 = smul.addr %s312, 8
        %s314 = scalar_lea.vmem %s7, %s313
        %p315 = scmp.lt.s32.totalorder %s20, 1
        %s316 = scalar_select %p315, %s20, 1
        %s317 = smul.addr %s316, 5
        %s318 = sadd.s32 3, %s317
        %s319 = smul.addr %s318, 8
        %s320 = scalar_lea.vmem %s0, %s319
        %p321 = scmp.lt.s32.totalorder %s20, 1
        %s322 = scalar_select %p321, %s20, 1
        %s323 = smul.addr %s322, 3
        %s324 = smul.addr %s323, 8
        %s325 = scalar_lea.vmem %s7, %s324
        %v327 = vld [vmem:[%s320] sm:$0xff]
        %v328 = vpack.c.bf16 %v327, %v327
        %v329 = vld [vmem:[#allocation2] sm:$0xff]
        %v330 = vld [vmem:[#allocation2 + $0x8] sm:$0xf]
        %v331 = vld [vmem:[#allocation2 + $0xc] sm:$0xff]
        %v332 = vld [vmem:[#allocation2 + $0x14] sm:$0xf]
        %v333 = vld [vmem:[#allocation2 + $0x18] sm:$0xff]
        %v334 = vld [vmem:[#allocation2 + $0x20] sm:$0xf]
        %v335 = vld [vmem:[#allocation2 + $0x24] sm:$0xff]
        %v336 = vld [vmem:[#allocation2 + $0x2c] sm:$0xf]
        %v337 = vld [vmem:[#allocation2 + $0x30] sm:$0xff]
        %v338 = vld [vmem:[#allocation2 + $0x38] sm:$0xf]
        %v339 = vld [vmem:[#allocation2 + $0x3c] sm:$0xff]
        %v340 = vld [vmem:[#allocation2 + $0x44] sm:$0xf]
        %v341 = vld [vmem:[#allocation2 + $0x48] sm:$0xff]
        %v342 = vld [vmem:[#allocation2 + $0x50] sm:$0xf]
        %v343 = vld [vmem:[#allocation2 + $0x54] sm:$0xff]
        %v344 = vld [vmem:[#allocation2 + $0x5c] sm:$0xf]
        %v345 = vld [vmem:[#allocation2 + $0x60] sm:$0xff]
        %v346 = vld [vmem:[#allocation2 + $0x68] sm:$0xf]
        %v347 = vld [vmem:[#allocation2 + $0x6c] sm:$0xff]
        %v348 = vld [vmem:[#allocation2 + $0x74] sm:$0xf]
        %v349 = vld [vmem:[#allocation2 + $0x78] sm:$0xff]
        %v350 = vld [vmem:[#allocation2 + $0x80] sm:$0xf]
        %v351 = vld [vmem:[#allocation2 + $0x84] sm:$0xff]
        %v352 = vld [vmem:[#allocation2 + $0x8c] sm:$0xf]
        %v353 = vld [vmem:[#allocation2 + $0x90] sm:$0xff]
        %v354 = vld [vmem:[#allocation2 + $0x98] sm:$0xf]
        %v355 = vld [vmem:[#allocation2 + $0x9c] sm:$0xff]
        %v356 = vld [vmem:[#allocation2 + $0xa4] sm:$0xf]
        %v357 = vld [vmem:[#allocation2 + $0xa8] sm:$0xff]
        %v358 = vld [vmem:[#allocation2 + $0xb0] sm:$0xf]
        %v359 = vld [vmem:[#allocation2 + $0xb4] sm:$0xff]
        %v360 = vld [vmem:[#allocation2 + $0xbc] sm:$0xf]
        %v361 = vld [vmem:[%s2] sm:$0x7]
        %v363 = vlaneseq
        %v364 = vshrl.u32 %v363, 7
        %v365 = vsub.s32 0, %v364
        %v366 = vrot.slane %v361, %v365
        %v367 = vlaneseq
        %v368 = vshrl.u32 %v367, 7
        %v369 = vsub.s32 1, %v368
        %v370 = vrot.slane %v361, %v369
        %v371 = vlaneseq
        %v372 = vshrl.u32 %v371, 7
        %v373 = vsub.s32 2, %v372
        %v374 = vrot.slane %v361, %v373
        %v410 = vunpack.c.l.b16 %v329
        %v411 = vunpack.c.h.b16 %v329
        %v412 = vunpack.c.l.b16 %v330
        %v413 = vunpack.c.l.b16 %v331
        %v414 = vunpack.c.h.b16 %v331
        %v415 = vunpack.c.l.b16 %v332
        %v416 = vunpack.c.l.b16 %v333
        %v417 = vunpack.c.h.b16 %v333
        %v418 = vunpack.c.l.b16 %v334
        %v419 = vunpack.c.l.b16 %v335
        %v420 = vunpack.c.h.b16 %v335
        %v421 = vunpack.c.l.b16 %v336
        %v422 = vunpack.c.l.b16 %v337
        %v423 = vunpack.c.h.b16 %v337
        %v424 = vunpack.c.l.b16 %v338
        %v425 = vunpack.c.l.b16 %v339
        %v426 = vunpack.c.h.b16 %v339
        %v427 = vunpack.c.l.b16 %v340
        %v428 = vunpack.c.l.b16 %v341
        %v429 = vunpack.c.h.b16 %v341
        %v430 = vunpack.c.l.b16 %v342
        %v431 = vunpack.c.l.b16 %v343
        %v432 = vunpack.c.h.b16 %v343
        %v433 = vunpack.c.l.b16 %v344
        %v434 = vunpack.c.l.b16 %v345
        %v435 = vunpack.c.h.b16 %v345
        %v436 = vunpack.c.l.b16 %v346
        %v437 = vunpack.c.l.b16 %v347
        %v438 = vunpack.c.h.b16 %v347
        %v439 = vunpack.c.l.b16 %v348
        %v440 = vunpack.c.l.b16 %v349
        %v441 = vunpack.c.h.b16 %v349
        %v442 = vunpack.c.l.b16 %v350
        %v443 = vunpack.c.l.b16 %v351
        %v444 = vunpack.c.h.b16 %v351
        %v445 = vunpack.c.l.b16 %v352
        %v446 = vunpack.c.l.b16 %v353
        %v447 = vunpack.c.h.b16 %v353
        %v448 = vunpack.c.l.b16 %v354
        %v449 = vunpack.c.l.b16 %v355
        %v450 = vunpack.c.h.b16 %v355
        %v451 = vunpack.c.l.b16 %v356
        %v452 = vunpack.c.l.b16 %v357
        %v453 = vunpack.c.h.b16 %v357
        %v454 = vunpack.c.l.b16 %v358
        %v455 = vunpack.c.l.b16 %v359
        %v456 = vunpack.c.h.b16 %v359
        %v457 = vunpack.c.l.b16 %v360
        %v458 = vpack.c.b16 %v413, %v410
        %v459 = vpack.c.b16 %v414, %v411
        %v460 = vpack.c.b16 %v415, %v412
        %v461 = vpack.c.b16 %v419, %v416
        %v462 = vpack.c.b16 %v420, %v417
        %v463 = vpack.c.b16 %v421, %v418
        %v464 = vpack.c.b16 %v425, %v422
        %v465 = vpack.c.b16 %v426, %v423
        %v466 = vpack.c.b16 %v427, %v424
        %v467 = vpack.c.b16 %v431, %v428
        %v468 = vpack.c.b16 %v432, %v429
        %v469 = vpack.c.b16 %v433, %v430
        %v470 = vpack.c.b16 %v437, %v434
        %v471 = vpack.c.b16 %v438, %v435
        %v472 = vpack.c.b16 %v439, %v436
        %v473 = vpack.c.b16 %v443, %v440
        %v474 = vpack.c.b16 %v444, %v441
        %v475 = vpack.c.b16 %v445, %v442
        %v476 = vpack.c.b16 %v449, %v446
        %v477 = vpack.c.b16 %v450, %v447
        %v478 = vpack.c.b16 %v451, %v448
        %v479 = vpack.c.b16 %v455, %v452
        %v480 = vpack.c.b16 %v456, %v453
        %v481 = vpack.c.b16 %v457, %v454
        %506 = vmatprep.subr.bf16.mxu0 %v459
        %507 = vmatpush1.bf16.msra.mxu0 %v458
        %508 = vmatprep.subr.bf16.mxu0 %v462
        %509 = vmatpush1.bf16.msra.mxu0 %v461
        %510 = vmatprep.subr.bf16.mxu0 %v465
        %511 = vmatpush1.bf16.msra.mxu0 %v464
        %512 = vmatprep.subr.bf16.mxu0 %v468
        %513 = vmatpush1.bf16.msra.mxu0 %v467
        %514 = vmatprep.subr.bf16.mxu0 %v471
        %515 = vmatpush1.bf16.msra.mxu0 %v470
        %516 = vmatprep.subr.bf16.mxu0 %v474
        %517 = vmatpush1.bf16.msra.mxu0 %v473
        %518 = vmatprep.subr.bf16.mxu0 %v477
        %519 = vmatpush1.bf16.msra.mxu0 %v476
        %520 = vmatprep.subr.bf16.mxu0 %v480
        %521 = vmatpush1.bf16.msra.mxu0 %v479
        %522 = vmatprep.subr.bf16.mxu0 0
        %523 = vmatpush1.bf16.msra.mxu0 0
        %524 = vmatprep.subr.bf16.mxu0 0
        %525 = vmatpush1.bf16.msra.mxu0 0
        %526 = vmatprep.subr.bf16.mxu0 0
        %527 = vmatpush1.bf16.msra.mxu0 0
        %528 = vmatprep.subr.bf16.mxu0 0
        %529 = vmatpush1.bf16.msra.mxu0 0
        %530 = vmatprep.subr.bf16.mxu0 0
        %531 = vmatpush1.bf16.msra.mxu0 0
        %532 = vmatprep.subr.bf16.mxu0 0
        %533 = vmatpush1.bf16.msra.mxu0 0
        %534 = vmatprep.subr.bf16.mxu0 0
        %535 = vmatpush1.bf16.msra.mxu0 0
        %536 = vmatprep.subr.bf16.mxu0 0
        %537 = vmatpush1.bf16.msra.mxu0 0
        %538 = vmatprep.mubr.bf16.mxu0 0
        %539 = vmatmul.mubr.bf16.gmra.mrb[0].mxu0 %v328
        %v540 = vpop.f32.mrb[0].mxu0
        %v541 = vadd.f32 %v366, %v540
        %v542 = vpop.f32.mrb[0].mxu0
        %v543 = vadd.f32 %v370, %v542
        %v544 = vpop.f32.mrb[0].mxu0
        %v545 = vpop.f32.mrb[0].mxu0
        %546 = vdwg.mxu0
        %547 = vmatprep.subr.bf16.mxu0 0
        %548 = vmatpush1.bf16.msra.mxu0 %v460
        %549 = vmatprep.subr.bf16.mxu0 0
        %550 = vmatpush1.bf16.msra.mxu0 %v463
        %551 = vmatprep.subr.bf16.mxu0 0
        %552 = vmatpush1.bf16.msra.mxu0 %v466
        %553 = vmatprep.subr.bf16.mxu0 0
        %554 = vmatpush1.bf16.msra.mxu0 %v469
        %555 = vmatprep.subr.bf16.mxu0 0
        %556 = vmatpush1.bf16.msra.mxu0 %v472
        %557 = vmatprep.subr.bf16.mxu0 0
        %558 = vmatpush1.bf16.msra.mxu0 %v475
        %559 = vmatprep.subr.bf16.mxu0 0
        %560 = vmatpush1.bf16.msra.mxu0 %v478
        %561 = vmatprep.subr.bf16.mxu0 0
        %562 = vmatpush1.bf16.msra.mxu0 %v481
        %563 = vmatprep.subr.bf16.mxu0 0
        %564 = vmatpush1.bf16.msra.mxu0 0
        %565 = vmatprep.subr.bf16.mxu0 0
        %566 = vmatpush1.bf16.msra.mxu0 0
        %567 = vmatprep.subr.bf16.mxu0 0
        %568 = vmatpush1.bf16.msra.mxu0 0
        %569 = vmatprep.subr.bf16.mxu0 0
        %570 = vmatpush1.bf16.msra.mxu0 0
        %571 = vmatprep.subr.bf16.mxu0 0
        %572 = vmatpush1.bf16.msra.mxu0 0
        %573 = vmatprep.subr.bf16.mxu0 0
        %574 = vmatpush1.bf16.msra.mxu0 0
        %575 = vmatprep.subr.bf16.mxu0 0
        %576 = vmatpush1.bf16.msra.mxu0 0
        %577 = vmatprep.subr.bf16.mxu0 0
        %578 = vmatpush1.bf16.msra.mxu0 0
        %579 = vmatprep.mubr.bf16.mxu0 0
        %580 = vmatmul.mubr.bf16.gmra.mrb[0].mxu0 %v328
        %v581 = vpop.f32.mrb[0].mxu0
        %v582 = vadd.f32 %v374, %v581
        %v583 = vpop.f32.mrb[0].mxu0
        %v584 = vpop.f32.mrb[0].mxu0
        %v585 = vpop.f32.mrb[0].mxu0
        %586 = vdwg.mxu0
        %v587 = vmax.f32 %v541, 0.0
        %v588 = vmax.f32 %v543, 0.0
        %v589 = vmax.f32 %v582, 0.0
        %v590 = vpack.c.bf16 %v587, %v587
        %v591 = vpack.c.bf16 %v588, %v588
        %v592 = vpack.c.bf16 %v589, %v589
        %v593 = vld [vmem:[#allocation4] sm:$0xf]
        %v594 = vld [vmem:[#allocation4 + $0x4] sm:$0xf]
        %v595 = vld [vmem:[#allocation4 + $0x8] sm:$0xf]
        %v596 = vld [vmem:[#allocation4 + $0xc] sm:$0xf]
        %v597 = vld [vmem:[%s4] sm:$0x1]
        %v599 = vlaneseq
        %v600 = vshrl.u32 %v599, 7
        %v601 = vsub.s32 0, %v600
        %v602 = vrot.slane %v597, %v601
        %v608 = vunpack.c.l.b16 %v593
        %v609 = vunpack.c.l.b16 %v594
        %v610 = vunpack.c.l.b16 %v595
        %v611 = vunpack.c.l.b16 %v596
        %v612 = vpack.c.b16 %v609, %v608
        %v613 = vpack.c.b16 %v611, %v610
        %vm616 = vcmask 261120
        %v618 = vsel %vm616, %v590, 0
        %620 = vmatprep.subr.bf16.mxu0 0
        %621 = vmatpush1.bf16.msra.mxu0 %v612
        %622 = vmatprep.subr.bf16.mxu0 0
        %623 = vmatpush1.bf16.msra.mxu0 %v613
        %624 = vmatprep.subr.bf16.mxu0 0
        %625 = vmatpush1.bf16.msra.mxu0 0
        %626 = vmatprep.subr.bf16.mxu0 0
        %627 = vmatpush1.bf16.msra.mxu0 0
        %628 = vmatprep.subr.bf16.mxu0 0
        %629 = vmatpush1.bf16.msra.mxu0 0
        %630 = vmatprep.subr.bf16.mxu0 0
        %631 = vmatpush1.bf16.msra.mxu0 0
        %632 = vmatprep.subr.bf16.mxu0 0
        %633 = vmatpush1.bf16.msra.mxu0 0
        %634 = vmatprep.subr.bf16.mxu0 0
        %635 = vmatpush1.bf16.msra.mxu0 0
        %636 = vmatprep.subr.bf16.mxu0 0
        %637 = vmatpush1.bf16.msra.mxu0 0
        %638 = vmatprep.subr.bf16.mxu0 0
        %639 = vmatpush1.bf16.msra.mxu0 0
        %640 = vmatprep.subr.bf16.mxu0 0
        %641 = vmatpush1.bf16.msra.mxu0 0
        %642 = vmatprep.subr.bf16.mxu0 0
        %643 = vmatpush1.bf16.msra.mxu0 0
        %644 = vmatprep.subr.bf16.mxu0 0
        %645 = vmatpush1.bf16.msra.mxu0 0
        %646 = vmatprep.subr.bf16.mxu0 0
        %647 = vmatpush1.bf16.msra.mxu0 0
        %648 = vmatprep.subr.bf16.mxu0 0
        %649 = vmatpush1.bf16.msra.mxu0 0
        %650 = vmatprep.subr.bf16.mxu0 0
        %651 = vmatpush1.bf16.msra.mxu0 0
        %652 = vmatprep.mubr.bf16.mxu0 0
        %653 = vmatmul.mubr.bf16.gmra.mrb[0].mxu0 %v618
        %v654 = vpop.f32.mrb[0].mxu0
        %v655 = vadd.f32 %v602, %v654
        %v656 = vpop.f32.mrb[0].mxu0
        %v657 = vpop.f32.mrb[0].mxu0
        %v658 = vpop.f32.mrb[0].mxu0
        %659 = vdwg.mxu0
        %v660 = vmax.f32 %v655, 0.0
        %v661 = vpack.c.bf16 %v660, %v660
        %v662 = vld [vmem:[#allocation6] sm:$0xf]
        %v663 = vld [vmem:[#allocation6 + $0x4] sm:$0xf]
        %v664 = vld [vmem:[#allocation6 + $0x8] sm:$0xf]
        %v665 = vld [vmem:[#allocation6 + $0xc] sm:$0xf]
        %v666 = vld [vmem:[%s6] sm:$0x1]
        %v668 = vlaneseq
        %v669 = vshrl.u32 %v668, 7
        %v670 = vsub.s32 0, %v669
        %v671 = vrot.slane %v666, %v670
        %v677 = vunpack.c.l.b16 %v662
        %v678 = vunpack.c.l.b16 %v663
        %v679 = vunpack.c.l.b16 %v664
        %v680 = vunpack.c.l.b16 %v665
        %v681 = vpack.c.b16 %v678, %v677
        %v682 = vpack.c.b16 %v680, %v679
        %v686 = vsel %vm616, %v661, 0
        %688 = vmatprep.subr.bf16.mxu0 0
        %689 = vmatpush1.bf16.msra.mxu0 %v681
        %690 = vmatprep.subr.bf16.mxu0 0
        %691 = vmatpush1.bf16.msra.mxu0 %v682
        %692 = vmatprep.subr.bf16.mxu0 0
        %693 = vmatpush1.bf16.msra.mxu0 0
        %694 = vmatprep.subr.bf16.mxu0 0
        %695 = vmatpush1.bf16.msra.mxu0 0
        %696 = vmatprep.subr.bf16.mxu0 0
        %697 = vmatpush1.bf16.msra.mxu0 0
        %698 = vmatprep.subr.bf16.mxu0 0
        %699 = vmatpush1.bf16.msra.mxu0 0
        %700 = vmatprep.subr.bf16.mxu0 0
        %701 = vmatpush1.bf16.msra.mxu0 0
        %702 = vmatprep.subr.bf16.mxu0 0
        %703 = vmatpush1.bf16.msra.mxu0 0
        %704 = vmatprep.subr.bf16.mxu0 0
        %705 = vmatpush1.bf16.msra.mxu0 0
        %706 = vmatprep.subr.bf16.mxu0 0
        %707 = vmatpush1.bf16.msra.mxu0 0
        %708 = vmatprep.subr.bf16.mxu0 0
        %709 = vmatpush1.bf16.msra.mxu0 0
        %710 = vmatprep.subr.bf16.mxu0 0
        %711 = vmatpush1.bf16.msra.mxu0 0
        %712 = vmatprep.subr.bf16.mxu0 0
        %713 = vmatpush1.bf16.msra.mxu0 0
        %714 = vmatprep.subr.bf16.mxu0 0
        %715 = vmatpush1.bf16.msra.mxu0 0
        %716 = vmatprep.subr.bf16.mxu0 0
        %717 = vmatpush1.bf16.msra.mxu0 0
        %718 = vmatprep.subr.bf16.mxu0 0
        %719 = vmatpush1.bf16.msra.mxu0 0
        %720 = vmatprep.mubr.bf16.mxu0 0
        %721 = vmatmul.mubr.bf16.gmra.mrb[0].mxu0 %v686
        %v722 = vpop.f32.mrb[0].mxu0
        %v723 = vadd.f32 %v671, %v722
        %v724 = vpop.f32.mrb[0].mxu0
        %v725 = vpop.f32.mrb[0].mxu0
        %v726 = vpop.f32.mrb[0].mxu0
        %727 = vdwg.mxu0
        %728 = vst.msk [vmem:[%s325] sm:$0xff] %vm616, %v723
        %s729 = scalar_lea.vmem [#allocation4], 16
        %v730 = vld [vmem:[%s729] sm:$0xf]
        %v731 = vld [vmem:[%s729 + $0x4] sm:$0xf]
        %v732 = vld [vmem:[%s729 + $0x8] sm:$0xf]
        %v733 = vld [vmem:[%s729 + $0xc] sm:$0xf]
        %s734 = scalar_lea.vmem %s4, 1
        %v735 = vld [vmem:[%s734] sm:$0x1]
        %v737 = vlaneseq
        %v738 = vshrl.u32 %v737, 7
        %v739 = vsub.s32 0, %v738
        %v740 = vrot.slane %v735, %v739
        %743 = vrot.lane.b32.xlu0 %v590, 96
        %v744 = vpop.permute.xlu0 %743
        %v749 = vunpack.c.l.b16 %v730
        %v750 = vunpack.c.l.b16 %v731
        %v751 = vunpack.c.l.b16 %v732
        %v752 = vunpack.c.l.b16 %v733
        %v753 = vpack.c.b16 %v750, %v749
        %v754 = vpack.c.b16 %v752, %v751
        %v758 = vsel %vm616, %v744, 0
        %760 = vmatprep.subr.bf16.mxu0 0
        %761 = vmatpush1.bf16.msra.mxu0 %v753
        %762 = vmatprep.subr.bf16.mxu0 0
        %763 = vmatpush1.bf16.msra.mxu0 %v754
        %764 = vmatprep.subr.bf16.mxu0 0
        %765 = vmatpush1.bf16.msra.mxu0 0
        %766 = vmatprep.subr.bf16.mxu0 0
        %767 = vmatpush1.bf16.msra.mxu0 0
        %768 = vmatprep.subr.bf16.mxu0 0
        %769 = vmatpush1.bf16.msra.mxu0 0
        %770 = vmatprep.subr.bf16.mxu0 0
        %771 = vmatpush1.bf16.msra.mxu0 0
        %772 = vmatprep.subr.bf16.mxu0 0
        %773 = vmatpush1.bf16.msra.mxu0 0
        %774 = vmatprep.subr.bf16.mxu0 0
        %775 = vmatpush1.bf16.msra.mxu0 0
        %776 = vmatprep.subr.bf16.mxu0 0
        %777 = vmatpush1.bf16.msra.mxu0 0
        %778 = vmatprep.subr.bf16.mxu0 0
        %779 = vmatpush1.bf16.msra.mxu0 0
        %780 = vmatprep.subr.bf16.mxu0 0
        %781 = vmatpush1.bf16.msra.mxu0 0
        %782 = vmatprep.subr.bf16.mxu0 0
        %783 = vmatpush1.bf16.msra.mxu0 0
        %784 = vmatprep.subr.bf16.mxu0 0
        %785 = vmatpush1.bf16.msra.mxu0 0
        %786 = vmatprep.subr.bf16.mxu0 0
        %787 = vmatpush1.bf16.msra.mxu0 0
        %788 = vmatprep.subr.bf16.mxu0 0
        %789 = vmatpush1.bf16.msra.mxu0 0
        %790 = vmatprep.subr.bf16.mxu0 0
        %791 = vmatpush1.bf16.msra.mxu0 0
        %792 = vmatprep.mubr.bf16.mxu0 0
        %793 = vmatmul.mubr.bf16.gmra.mrb[0].mxu0 %v758
        %v794 = vpop.f32.mrb[0].mxu0
        %v795 = vadd.f32 %v740, %v794
        %v796 = vpop.f32.mrb[0].mxu0
        %v797 = vpop.f32.mrb[0].mxu0
        %v798 = vpop.f32.mrb[0].mxu0
        %799 = vdwg.mxu0
        %v800 = vmax.f32 %v795, 0.0
        %v801 = vpack.c.bf16 %v800, %v800
        %s802 = scalar_lea.vmem [#allocation6], 16
        %v803 = vld [vmem:[%s802] sm:$0xf]
        %v804 = vld [vmem:[%s802 + $0x4] sm:$0xf]
        %v805 = vld [vmem:[%s802 + $0x8] sm:$0xf]
        %v806 = vld [vmem:[%s802 + $0xc] sm:$0xf]
        %s807 = scalar_lea.vmem %s6, 1
        %v808 = vld [vmem:[%s807] sm:$0x1]
        %v810 = vlaneseq
        %v811 = vshrl.u32 %v810, 7
        %v812 = vsub.s32 0, %v811
        %v813 = vrot.slane %v808, %v812
        %v819 = vunpack.c.l.b16 %v803
        %v820 = vunpack.c.l.b16 %v804
        %v821 = vunpack.c.l.b16 %v805
        %v822 = vunpack.c.l.b16 %v806
        %v823 = vpack.c.b16 %v820, %v819
        %v824 = vpack.c.b16 %v822, %v821
        %v828 = vsel %vm616, %v801, 0
        %830 = vmatprep.subr.bf16.mxu0 0
        %831 = vmatpush1.bf16.msra.mxu0 %v823
        %832 = vmatprep.subr.bf16.mxu0 0
        %833 = vmatpush1.bf16.msra.mxu0 %v824
        %834 = vmatprep.subr.bf16.mxu0 0
        %835 = vmatpush1.bf16.msra.mxu0 0
        %836 = vmatprep.subr.bf16.mxu0 0
        %837 = vmatpush1.bf16.msra.mxu0 0
        %838 = vmatprep.subr.bf16.mxu0 0
        %839 = vmatpush1.bf16.msra.mxu0 0
        %840 = vmatprep.subr.bf16.mxu0 0
        %841 = vmatpush1.bf16.msra.mxu0 0
        %842 = vmatprep.subr.bf16.mxu0 0
        %843 = vmatpush1.bf16.msra.mxu0 0
        %844 = vmatprep.subr.bf16.mxu0 0
        %845 = vmatpush1.bf16.msra.mxu0 0
        %846 = vmatprep.subr.bf16.mxu0 0
        %847 = vmatpush1.bf16.msra.mxu0 0
        %848 = vmatprep.subr.bf16.mxu0 0
        %849 = vmatpush1.bf16.msra.mxu0 0
        %850 = vmatprep.subr.bf16.mxu0 0
        %851 = vmatpush1.bf16.msra.mxu0 0
        %852 = vmatprep.subr.bf16.mxu0 0
        %853 = vmatpush1.bf16.msra.mxu0 0
        %854 = vmatprep.subr.bf16.mxu0 0
        %855 = vmatpush1.bf16.msra.mxu0 0
        %856 = vmatprep.subr.bf16.mxu0 0
        %857 = vmatpush1.bf16.msra.mxu0 0
        %858 = vmatprep.subr.bf16.mxu0 0
        %859 = vmatpush1.bf16.msra.mxu0 0
        %860 = vmatprep.subr.bf16.mxu0 0
        %861 = vmatpush1.bf16.msra.mxu0 0
        %862 = vmatprep.mubr.bf16.mxu0 0
        %863 = vmatmul.mubr.bf16.gmra.mrb[0].mxu0 %v828
        %v864 = vpop.f32.mrb[0].mxu0
        %v865 = vadd.f32 %v813, %v864
        %v866 = vpop.f32.mrb[0].mxu0
        %v867 = vpop.f32.mrb[0].mxu0
        %v868 = vpop.f32.mrb[0].mxu0
        %869 = vdwg.mxu0
        %871 = vrot.lane.b32.xlu0 %v865, 32
        %v872 = vpop.permute.xlu0 %871
        %vm874 = vcmask 523520
        %875 = vst.msk [vmem:[%s325] sm:$0xff] %vm874, %v872
        %s876 = scalar_lea.vmem [#allocation4], 32
        %v877 = vld [vmem:[%s876] sm:$0xf]
        %v878 = vld [vmem:[%s876 + $0x4] sm:$0xf]
        %v879 = vld [vmem:[%s876 + $0x8] sm:$0xf]
        %v880 = vld [vmem:[%s876 + $0xc] sm:$0xf]
        %s881 = scalar_lea.vmem %s4, 2
        %v882 = vld [vmem:[%s881] sm:$0x1]
        %v884 = vlaneseq
        %v885 = vshrl.u32 %v884, 7
        %v886 = vsub.s32 0, %v885
        %v887 = vrot.slane %v882, %v886
        %889 = vrot.lane.b32.xlu0 %v590, 64
        %v890 = vpop.permute.xlu0 %889
        %v895 = vunpack.c.l.b16 %v877
        %v896 = vunpack.c.l.b16 %v878
        %v897 = vunpack.c.l.b16 %v879
        %v898 = vunpack.c.l.b16 %v880
        %v899 = vpack.c.b16 %v896, %v895
        %v900 = vpack.c.b16 %v898, %v897
        %v904 = vsel %vm616, %v890, 0
        %906 = vmatprep.subr.bf16.mxu0 0
        %907 = vmatpush1.bf16.msra.mxu0 %v899
        %908 = vmatprep.subr.bf16.mxu0 0
        %909 = vmatpush1.bf16.msra.mxu0 %v900
        %910 = vmatprep.subr.bf16.mxu0 0
        %911 = vmatpush1.bf16.msra.mxu0 0
        %912 = vmatprep.subr.bf16.mxu0 0
        %913 = vmatpush1.bf16.msra.mxu0 0
        %914 = vmatprep.subr.bf16.mxu0 0
        %915 = vmatpush1.bf16.msra.mxu0 0
        %916 = vmatprep.subr.bf16.mxu0 0
        %917 = vmatpush1.bf16.msra.mxu0 0
        %918 = vmatprep.subr.bf16.mxu0 0
        %919 = vmatpush1.bf16.msra.mxu0 0
        %920 = vmatprep.subr.bf16.mxu0 0
        %921 = vmatpush1.bf16.msra.mxu0 0
        %922 = vmatprep.subr.bf16.mxu0 0
        %923 = vmatpush1.bf16.msra.mxu0 0
        %924 = vmatprep.subr.bf16.mxu0 0
        %925 = vmatpush1.bf16.msra.mxu0 0
        %926 = vmatprep.subr.bf16.mxu0 0
        %927 = vmatpush1.bf16.msra.mxu0 0
        %928 = vmatprep.subr.bf16.mxu0 0
        %929 = vmatpush1.bf16.msra.mxu0 0
        %930 = vmatprep.subr.bf16.mxu0 0
        %931 = vmatpush1.bf16.msra.mxu0 0
        %932 = vmatprep.subr.bf16.mxu0 0
        %933 = vmatpush1.bf16.msra.mxu0 0
        %934 = vmatprep.subr.bf16.mxu0 0
        %935 = vmatpush1.bf16.msra.mxu0 0
        %936 = vmatprep.subr.bf16.mxu0 0
        %937 = vmatpush1.bf16.msra.mxu0 0
        %938 = vmatprep.mubr.bf16.mxu0 0
        %939 = vmatmul.mubr.bf16.gmra.mrb[0].mxu0 %v904
        %v940 = vpop.f32.mrb[0].mxu0
        %v941 = vadd.f32 %v887, %v940
        %v942 = vpop.f32.mrb[0].mxu0
        %v943 = vpop.f32.mrb[0].mxu0
        %v944 = vpop.f32.mrb[0].mxu0
        %945 = vdwg.mxu0
        %v946 = vmax.f32 %v941, 0.0
        %v947 = vpack.c.bf16 %v946, %v946
        %s948 = scalar_lea.vmem [#allocation6], 32
        %v949 = vld [vmem:[%s948] sm:$0xf]
        %v950 = vld [vmem:[%s948 + $0x4] sm:$0xf]
        %v951 = vld [vmem:[%s948 + $0x8] sm:$0xf]
        %v952 = vld [vmem:[%s948 + $0xc] sm:$0xf]
        %s953 = scalar_lea.vmem %s6, 2
        %v954 = vld [vmem:[%s953] sm:$0x1]
        %v956 = vlaneseq
        %v957 = vshrl.u32 %v956, 7
        %v958 = vsub.s32 0, %v957
        %v959 = vrot.slane %v954, %v958
        %v965 = vunpack.c.l.b16 %v949
        %v966 = vunpack.c.l.b16 %v950
        %v967 = vunpack.c.l.b16 %v951
        %v968 = vunpack.c.l.b16 %v952
        %v969 = vpack.c.b16 %v966, %v965
        %v970 = vpack.c.b16 %v968, %v967
        %v974 = vsel %vm616, %v947, 0
        %976 = vmatprep.subr.bf16.mxu0 0
        %977 = vmatpush1.bf16.msra.mxu0 %v969
        %978 = vmatprep.subr.bf16.mxu0 0
        %979 = vmatpush1.bf16.msra.mxu0 %v970
        %980 = vmatprep.subr.bf16.mxu0 0
        %981 = vmatpush1.bf16.msra.mxu0 0
        %982 = vmatprep.subr.bf16.mxu0 0
        %983 = vmatpush1.bf16.msra.mxu0 0
        %984 = vmatprep.subr.bf16.mxu0 0
        %985 = vmatpush1.bf16.msra.mxu0 0
        %986 = vmatprep.subr.bf16.mxu0 0
        %987 = vmatpush1.bf16.msra.mxu0 0
        %988 = vmatprep.subr.bf16.mxu0 0
        %989 = vmatpush1.bf16.msra.mxu0 0
        %990 = vmatprep.subr.bf16.mxu0 0
        %991 = vmatpush1.bf16.msra.mxu0 0
        %992 = vmatprep.subr.bf16.mxu0 0
        %993 = vmatpush1.bf16.msra.mxu0 0
        %994 = vmatprep.subr.bf16.mxu0 0
        %995 = vmatpush1.bf16.msra.mxu0 0
        %996 = vmatprep.subr.bf16.mxu0 0
        %997 = vmatpush1.bf16.msra.mxu0 0
        %998 = vmatprep.subr.bf16.mxu0 0
        %999 = vmatpush1.bf16.msra.mxu0 0
        %1000 = vmatprep.subr.bf16.mxu0 0
        %1001 = vmatpush1.bf16.msra.mxu0 0
        %1002 = vmatprep.subr.bf16.mxu0 0
        %1003 = vmatpush1.bf16.msra.mxu0 0
        %1004 = vmatprep.subr.bf16.mxu0 0
        %1005 = vmatpush1.bf16.msra.mxu0 0
        %1006 = vmatprep.subr.bf16.mxu0 0
        %1007 = vmatpush1.bf16.msra.mxu0 0
        %1008 = vmatprep.mubr.bf16.mxu0 0
        %1009 = vmatmul.mubr.bf16.gmra.mrb[0].mxu0 %v974
        %v1010 = vpop.f32.mrb[0].mxu0
        %v1011 = vadd.f32 %v959, %v1010
        %v1012 = vpop.f32.mrb[0].mxu0
        %v1013 = vpop.f32.mrb[0].mxu0
        %v1014 = vpop.f32.mrb[0].mxu0
        %1015 = vdwg.mxu0
        %1017 = vrot.lane.b32.xlu0 %v1011, 64
        %v1018 = vpop.permute.xlu0 %1017
        %vm1020 = vcmask 785920
        %1021 = vst.msk [vmem:[%s325] sm:$0xff] %vm1020, %v1018
        %s1022 = scalar_lea.vmem [#allocation4], 48
        %v1023 = vld [vmem:[%s1022] sm:$0xf]
        %v1024 = vld [vmem:[%s1022 + $0x4] sm:$0xf]
        %v1025 = vld [vmem:[%s1022 + $0x8] sm:$0xf]
        %v1026 = vld [vmem:[%s1022 + $0xc] sm:$0xf]
        %s1027 = scalar_lea.vmem %s4, 3
        %v1028 = vld [vmem:[%s1027] sm:$0x1]
        %v1030 = vlaneseq
        %v1031 = vshrl.u32 %v1030, 7
        %v1032 = vsub.s32 0, %v1031
        %v1033 = vrot.slane %v1028, %v1032
        %1035 = vrot.lane.b32.xlu0 %v590, 32
        %v1036 = vpop.permute.xlu0 %1035
        %v1041 = vunpack.c.l.b16 %v1023
        %v1042 = vunpack.c.l.b16 %v1024
        %v1043 = vunpack.c.l.b16 %v1025
        %v1044 = vunpack.c.l.b16 %v1026
        %v1045 = vpack.c.b16 %v1042, %v1041
        %v1046 = vpack.c.b16 %v1044, %v1043
        %v1050 = vsel %vm616, %v1036, 0
        %1052 = vmatprep.subr.bf16.mxu0 0
        %1053 = vmatpush1.bf16.msra.mxu0 %v1045
        %1054 = vmatprep.subr.bf16.mxu0 0
        %1055 = vmatpush1.bf16.msra.mxu0 %v1046
        %1056 = vmatprep.subr.bf16.mxu0 0
        %1057 = vmatpush1.bf16.msra.mxu0 0
        %1058 = vmatprep.subr.bf16.mxu0 0
        %1059 = vmatpush1.bf16.msra.mxu0 0
        %1060 = vmatprep.subr.bf16.mxu0 0
        %1061 = vmatpush1.bf16.msra.mxu0 0
        %1062 = vmatprep.subr.bf16.mxu0 0
        %1063 = vmatpush1.bf16.msra.mxu0 0
        %1064 = vmatprep.subr.bf16.mxu0 0
        %1065 = vmatpush1.bf16.msra.mxu0 0
        %1066 = vmatprep.subr.bf16.mxu0 0
        %1067 = vmatpush1.bf16.msra.mxu0 0
        %1068 = vmatprep.subr.bf16.mxu0 0
        %1069 = vmatpush1.bf16.msra.mxu0 0
        %1070 = vmatprep.subr.bf16.mxu0 0
        %1071 = vmatpush1.bf16.msra.mxu0 0
        %1072 = vmatprep.subr.bf16.mxu0 0
        %1073 = vmatpush1.bf16.msra.mxu0 0
        %1074 = vmatprep.subr.bf16.mxu0 0
        %1075 = vmatpush1.bf16.msra.mxu0 0
        %1076 = vmatprep.subr.bf16.mxu0 0
        %1077 = vmatpush1.bf16.msra.mxu0 0
        %1078 = vmatprep.subr.bf16.mxu0 0
        %1079 = vmatpush1.bf16.msra.mxu0 0
        %1080 = vmatprep.subr.bf16.mxu0 0
        %1081 = vmatpush1.bf16.msra.mxu0 0
        %1082 = vmatprep.subr.bf16.mxu0 0
        %1083 = vmatpush1.bf16.msra.mxu0 0
        %1084 = vmatprep.mubr.bf16.mxu0 0
        %1085 = vmatmul.mubr.bf16.gmra.mrb[0].mxu0 %v1050
        %v1086 = vpop.f32.mrb[0].mxu0
        %v1087 = vadd.f32 %v1033, %v1086
        %v1088 = vpop.f32.mrb[0].mxu0
        %v1089 = vpop.f32.mrb[0].mxu0
        %v1090 = vpop.f32.mrb[0].mxu0
        %1091 = vdwg.mxu0
        %v1092 = vmax.f32 %v1087, 0.0
        %v1093 = vpack.c.bf16 %v1092, %v1092
        %s1094 = scalar_lea.vmem [#allocation6], 48
        %v1095 = vld [vmem:[%s1094] sm:$0xf]
        %v1096 = vld [vmem:[%s1094 + $0x4] sm:$0xf]
        %v1097 = vld [vmem:[%s1094 + $0x8] sm:$0xf]
        %v1098 = vld [vmem:[%s1094 + $0xc] sm:$0xf]
        %s1099 = scalar_lea.vmem %s6, 3
        %v1100 = vld [vmem:[%s1099] sm:$0x1]
        %v1102 = vlaneseq
        %v1103 = vshrl.u32 %v1102, 7
        %v1104 = vsub.s32 0, %v1103
        %v1105 = vrot.slane %v1100, %v1104
        %v1111 = vunpack.c.l.b16 %v1095
        %v1112 = vunpack.c.l.b16 %v1096
        %v1113 = vunpack.c.l.b16 %v1097
        %v1114 = vunpack.c.l.b16 %v1098
        %v1115 = vpack.c.b16 %v1112, %v1111
        %v1116 = vpack.c.b16 %v1114, %v1113
        %v1120 = vsel %vm616, %v1093, 0
        %1122 = vmatprep.subr.bf16.mxu0 0
        %1123 = vmatpush1.bf16.msra.mxu0 %v1115
        %1124 = vmatprep.subr.bf16.mxu0 0
        %1125 = vmatpush1.bf16.msra.mxu0 %v1116
        %1126 = vmatprep.subr.bf16.mxu0 0
        %1127 = vmatpush1.bf16.msra.mxu0 0
        %1128 = vmatprep.subr.bf16.mxu0 0
        %1129 = vmatpush1.bf16.msra.mxu0 0
        %1130 = vmatprep.subr.bf16.mxu0 0
        %1131 = vmatpush1.bf16.msra.mxu0 0
        %1132 = vmatprep.subr.bf16.mxu0 0
        %1133 = vmatpush1.bf16.msra.mxu0 0
        %1134 = vmatprep.subr.bf16.mxu0 0
        %1135 = vmatpush1.bf16.msra.mxu0 0
        %1136 = vmatprep.subr.bf16.mxu0 0
        %1137 = vmatpush1.bf16.msra.mxu0 0
        %1138 = vmatprep.subr.bf16.mxu0 0
        %1139 = vmatpush1.bf16.msra.mxu0 0
        %1140 = vmatprep.subr.bf16.mxu0 0
        %1141 = vmatpush1.bf16.msra.mxu0 0
        %1142 = vmatprep.subr.bf16.mxu0 0
        %1143 = vmatpush1.bf16.msra.mxu0 0
        %1144 = vmatprep.subr.bf16.mxu0 0
        %1145 = vmatpush1.bf16.msra.mxu0 0
        %1146 = vmatprep.subr.bf16.mxu0 0
        %1147 = vmatpush1.bf16.msra.mxu0 0
        %1148 = vmatprep.subr.bf16.mxu0 0
        %1149 = vmatpush1.bf16.msra.mxu0 0
        %1150 = vmatprep.subr.bf16.mxu0 0
        %1151 = vmatpush1.bf16.msra.mxu0 0
        %1152 = vmatprep.subr.bf16.mxu0 0
        %1153 = vmatpush1.bf16.msra.mxu0 0
        %1154 = vmatprep.mubr.bf16.mxu0 0
        %1155 = vmatmul.mubr.bf16.gmra.mrb[0].mxu0 %v1120
        %v1156 = vpop.f32.mrb[0].mxu0
        %v1157 = vadd.f32 %v1105, %v1156
        %v1158 = vpop.f32.mrb[0].mxu0
        %v1159 = vpop.f32.mrb[0].mxu0
        %v1160 = vpop.f32.mrb[0].mxu0
        %1161 = vdwg.mxu0
        %1163 = vrot.lane.b32.xlu0 %v1157, 96
        %v1164 = vpop.permute.xlu0 %1163
        %vm1166 = vcmask 1048320
        %1167 = vst.msk [vmem:[%s325] sm:$0xff] %vm1166, %v1164
        %s1168 = scalar_lea.vmem [#allocation4], 64
        %v1169 = vld [vmem:[%s1168] sm:$0xf]
        %v1170 = vld [vmem:[%s1168 + $0x4] sm:$0xf]
        %v1171 = vld [vmem:[%s1168 + $0x8] sm:$0xf]
        %v1172 = vld [vmem:[%s1168 + $0xc] sm:$0xf]
        %s1173 = scalar_lea.vmem %s4, 4
        %v1174 = vld [vmem:[%s1173] sm:$0x1]
        %v1176 = vlaneseq
        %v1177 = vshrl.u32 %v1176, 7
        %v1178 = vsub.s32 0, %v1177
        %v1179 = vrot.slane %v1174, %v1178
        %v1185 = vunpack.c.l.b16 %v1169
        %v1186 = vunpack.c.l.b16 %v1170
        %v1187 = vunpack.c.l.b16 %v1171
        %v1188 = vunpack.c.l.b16 %v1172
        %v1189 = vpack.c.b16 %v1186, %v1185
        %v1190 = vpack.c.b16 %v1188, %v1187
        %v1194 = vsel %vm616, %v591, 0
        %1196 = vmatprep.subr.bf16.mxu0 0
        %1197 = vmatpush1.bf16.msra.mxu0 %v1189
        %1198 = vmatprep.subr.bf16.mxu0 0
        %1199 = vmatpush1.bf16.msra.mxu0 %v1190
        %1200 = vmatprep.subr.bf16.mxu0 0
        %1201 = vmatpush1.bf16.msra.mxu0 0
        %1202 = vmatprep.subr.bf16.mxu0 0
        %1203 = vmatpush1.bf16.msra.mxu0 0
        %1204 = vmatprep.subr.bf16.mxu0 0
        %1205 = vmatpush1.bf16.msra.mxu0 0
        %1206 = vmatprep.subr.bf16.mxu0 0
        %1207 = vmatpush1.bf16.msra.mxu0 0
        %1208 = vmatprep.subr.bf16.mxu0 0
        %1209 = vmatpush1.bf16.msra.mxu0 0
        %1210 = vmatprep.subr.bf16.mxu0 0
        %1211 = vmatpush1.bf16.msra.mxu0 0
        %1212 = vmatprep.subr.bf16.mxu0 0
        %1213 = vmatpush1.bf16.msra.mxu0 0
        %1214 = vmatprep.subr.bf16.mxu0 0
        %1215 = vmatpush1.bf16.msra.mxu0 0
        %1216 = vmatprep.subr.bf16.mxu0 0
        %1217 = vmatpush1.bf16.msra.mxu0 0
        %1218 = vmatprep.subr.bf16.mxu0 0
        %1219 = vmatpush1.bf16.msra.mxu0 0
        %1220 = vmatprep.subr.bf16.mxu0 0
        %1221 = vmatpush1.bf16.msra.mxu0 0
        %1222 = vmatprep.subr.bf16.mxu0 0
        %1223 = vmatpush1.bf16.msra.mxu0 0
        %1224 = vmatprep.subr.bf16.mxu0 0
        %1225 = vmatpush1.bf16.msra.mxu0 0
        %1226 = vmatprep.subr.bf16.mxu0 0
        %1227 = vmatpush1.bf16.msra.mxu0 0
        %1228 = vmatprep.mubr.bf16.mxu0 0
        %1229 = vmatmul.mubr.bf16.gmra.mrb[0].mxu0 %v1194
        %v1230 = vpop.f32.mrb[0].mxu0
        %v1231 = vadd.f32 %v1179, %v1230
        %v1232 = vpop.f32.mrb[0].mxu0
        %v1233 = vpop.f32.mrb[0].mxu0
        %v1234 = vpop.f32.mrb[0].mxu0
        %1235 = vdwg.mxu0
        %v1236 = vmax.f32 %v1231, 0.0
        %v1237 = vpack.c.bf16 %v1236, %v1236
        %s1238 = scalar_lea.vmem [#allocation6], 64
        %v1239 = vld [vmem:[%s1238] sm:$0xf]
        %v1240 = vld [vmem:[%s1238 + $0x4] sm:$0xf]
        %v1241 = vld [vmem:[%s1238 + $0x8] sm:$0xf]
        %v1242 = vld [vmem:[%s1238 + $0xc] sm:$0xf]
        %s1243 = scalar_lea.vmem %s6, 4
        %v1244 = vld [vmem:[%s1243] sm:$0x1]
        %v1246 = vlaneseq
        %v1247 = vshrl.u32 %v1246, 7
        %v1248 = vsub.s32 0, %v1247
        %v1249 = vrot.slane %v1244, %v1248
        %v1255 = vunpack.c.l.b16 %v1239
        %v1256 = vunpack.c.l.b16 %v1240
        %v1257 = vunpack.c.l.b16 %v1241
        %v1258 = vunpack.c.l.b16 %v1242
        %v1259 = vpack.c.b16 %v1256, %v1255
        %v1260 = vpack.c.b16 %v1258, %v1257
        %v1264 = vsel %vm616, %v1237, 0
        %1266 = vmatprep.subr.bf16.mxu0 0
        %1267 = vmatpush1.bf16.msra.mxu0 %v1259
        %1268 = vmatprep.subr.bf16.mxu0 0
        %1269 = vmatpush1.bf16.msra.mxu0 %v1260
        %1270 = vmatprep.subr.bf16.mxu0 0
        %1271 = vmatpush1.bf16.msra.mxu0 0
        %1272 = vmatprep.subr.bf16.mxu0 0
        %1273 = vmatpush1.bf16.msra.mxu0 0
        %1274 = vmatprep.subr.bf16.mxu0 0
        %1275 = vmatpush1.bf16.msra.mxu0 0
        %1276 = vmatprep.subr.bf16.mxu0 0
        %1277 = vmatpush1.bf16.msra.mxu0 0
        %1278 = vmatprep.subr.bf16.mxu0 0
        %1279 = vmatpush1.bf16.msra.mxu0 0
        %1280 = vmatprep.subr.bf16.mxu0 0
        %1281 = vmatpush1.bf16.msra.mxu0 0
        %1282 = vmatprep.subr.bf16.mxu0 0
        %1283 = vmatpush1.bf16.msra.mxu0 0
        %1284 = vmatprep.subr.bf16.mxu0 0
        %1285 = vmatpush1.bf16.msra.mxu0 0
        %1286 = vmatprep.subr.bf16.mxu0 0
        %1287 = vmatpush1.bf16.msra.mxu0 0
        %1288 = vmatprep.subr.bf16.mxu0 0
        %1289 = vmatpush1.bf16.msra.mxu0 0
        %1290 = vmatprep.subr.bf16.mxu0 0
        %1291 = vmatpush1.bf16.msra.mxu0 0
        %1292 = vmatprep.subr.bf16.mxu0 0
        %1293 = vmatpush1.bf16.msra.mxu0 0
        %1294 = vmatprep.subr.bf16.mxu0 0
        %1295 = vmatpush1.bf16.msra.mxu0 0
        %1296 = vmatprep.subr.bf16.mxu0 0
        %1297 = vmatpush1.bf16.msra.mxu0 0
        %1298 = vmatprep.mubr.bf16.mxu0 0
        %1299 = vmatmul.mubr.bf16.gmra.mrb[0].mxu0 %v1264
        %v1300 = vpop.f32.mrb[0].mxu0
        %v1301 = vadd.f32 %v1249, %v1300
        %v1302 = vpop.f32.mrb[0].mxu0
        %v1303 = vpop.f32.mrb[0].mxu0
        %v1304 = vpop.f32.mrb[0].mxu0
        %1305 = vdwg.mxu0
        %1306 = vst.msk [vmem:[%s325 + $0x8] sm:$0xff] %vm616, %v1301
        %s1307 = scalar_lea.vmem [#allocation4], 80
        %v1308 = vld [vmem:[%s1307] sm:$0xf]
        %v1309 = vld [vmem:[%s1307 + $0x4] sm:$0xf]
        %v1310 = vld [vmem:[%s1307 + $0x8] sm:$0xf]
        %v1311 = vld [vmem:[%s1307 + $0xc] sm:$0xf]
        %s1312 = scalar_lea.vmem %s4, 5
        %v1313 = vld [vmem:[%s1312] sm:$0x1]
        %v1315 = vlaneseq
        %v1316 = vshrl.u32 %v1315, 7
        %v1317 = vsub.s32 0, %v1316
        %v1318 = vrot.slane %v1313, %v1317
        %1321 = vrot.lane.b32.xlu0 %v591, 96
        %v1322 = vpop.permute.xlu0 %1321
        %v1327 = vunpack.c.l.b16 %v1308
        %v1328 = vunpack.c.l.b16 %v1309
        %v1329 = vunpack.c.l.b16 %v1310
        %v1330 = vunpack.c.l.b16 %v1311
        %v1331 = vpack.c.b16 %v1328, %v1327
        %v1332 = vpack.c.b16 %v1330, %v1329
        %v1336 = vsel %vm616, %v1322, 0
        %1338 = vmatprep.subr.bf16.mxu0 0
        %1339 = vmatpush1.bf16.msra.mxu0 %v1331
        %1340 = vmatprep.subr.bf16.mxu0 0
        %1341 = vmatpush1.bf16.msra.mxu0 %v1332
        %1342 = vmatprep.subr.bf16.mxu0 0
        %1343 = vmatpush1.bf16.msra.mxu0 0
        %1344 = vmatprep.subr.bf16.mxu0 0
        %1345 = vmatpush1.bf16.msra.mxu0 0
        %1346 = vmatprep.subr.bf16.mxu0 0
        %1347 = vmatpush1.bf16.msra.mxu0 0
        %1348 = vmatprep.subr.bf16.mxu0 0
        %1349 = vmatpush1.bf16.msra.mxu0 0
        %1350 = vmatprep.subr.bf16.mxu0 0
        %1351 = vmatpush1.bf16.msra.mxu0 0
        %1352 = vmatprep.subr.bf16.mxu0 0
        %1353 = vmatpush1.bf16.msra.mxu0 0
        %1354 = vmatprep.subr.bf16.mxu0 0
        %1355 = vmatpush1.bf16.msra.mxu0 0
        %1356 = vmatprep.subr.bf16.mxu0 0
        %1357 = vmatpush1.bf16.msra.mxu0 0
        %1358 = vmatprep.subr.bf16.mxu0 0
        %1359 = vmatpush1.bf16.msra.mxu0 0
        %1360 = vmatprep.subr.bf16.mxu0 0
        %1361 = vmatpush1.bf16.msra.mxu0 0
        %1362 = vmatprep.subr.bf16.mxu0 0
        %1363 = vmatpush1.bf16.msra.mxu0 0
        %1364 = vmatprep.subr.bf16.mxu0 0
        %1365 = vmatpush1.bf16.msra.mxu0 0
        %1366 = vmatprep.subr.bf16.mxu0 0
        %1367 = vmatpush1.bf16.msra.mxu0 0
        %1368 = vmatprep.subr.bf16.mxu0 0
        %1369 = vmatpush1.bf16.msra.mxu0 0
        %1370 = vmatprep.mubr.bf16.mxu0 0
        %1371 = vmatmul.mubr.bf16.gmra.mrb[0].mxu0 %v1336
        %v1372 = vpop.f32.mrb[0].mxu0
        %v1373 = vadd.f32 %v1318, %v1372
        %v1374 = vpop.f32.mrb[0].mxu0
        %v1375 = vpop.f32.mrb[0].mxu0
        %v1376 = vpop.f32.mrb[0].mxu0
        %1377 = vdwg.mxu0
        %v1378 = vmax.f32 %v1373, 0.0
        %v1379 = vpack.c.bf16 %v1378, %v1378
        %s1380 = scalar_lea.vmem [#allocation6], 80
        %v1381 = vld [vmem:[%s1380] sm:$0xf]
        %v1382 = vld [vmem:[%s1380 + $0x4] sm:$0xf]
        %v1383 = vld [vmem:[%s1380 + $0x8] sm:$0xf]
        %v1384 = vld [vmem:[%s1380 + $0xc] sm:$0xf]
        %s1385 = scalar_lea.vmem %s6, 5
        %v1386 = vld [vmem:[%s1385] sm:$0x1]
        %v1388 = vlaneseq
        %v1389 = vshrl.u32 %v1388, 7
        %v1390 = vsub.s32 0, %v1389
        %v1391 = vrot.slane %v1386, %v1390
        %v1397 = vunpack.c.l.b16 %v1381
        %v1398 = vunpack.c.l.b16 %v1382
        %v1399 = vunpack.c.l.b16 %v1383
        %v1400 = vunpack.c.l.b16 %v1384
        %v1401 = vpack.c.b16 %v1398, %v1397
        %v1402 = vpack.c.b16 %v1400, %v1399
        %v1406 = vsel %vm616, %v1379, 0
        %1408 = vmatprep.subr.bf16.mxu0 0
        %1409 = vmatpush1.bf16.msra.mxu0 %v1401
        %1410 = vmatprep.subr.bf16.mxu0 0
        %1411 = vmatpush1.bf16.msra.mxu0 %v1402
        %1412 = vmatprep.subr.bf16.mxu0 0
        %1413 = vmatpush1.bf16.msra.mxu0 0
        %1414 = vmatprep.subr.bf16.mxu0 0
        %1415 = vmatpush1.bf16.msra.mxu0 0
        %1416 = vmatprep.subr.bf16.mxu0 0
        %1417 = vmatpush1.bf16.msra.mxu0 0
        %1418 = vmatprep.subr.bf16.mxu0 0
        %1419 = vmatpush1.bf16.msra.mxu0 0
        %1420 = vmatprep.subr.bf16.mxu0 0
        %1421 = vmatpush1.bf16.msra.mxu0 0
        %1422 = vmatprep.subr.bf16.mxu0 0
        %1423 = vmatpush1.bf16.msra.mxu0 0
        %1424 = vmatprep.subr.bf16.mxu0 0
        %1425 = vmatpush1.bf16.msra.mxu0 0
        %1426 = vmatprep.subr.bf16.mxu0 0
        %1427 = vmatpush1.bf16.msra.mxu0 0
        %1428 = vmatprep.subr.bf16.mxu0 0
        %1429 = vmatpush1.bf16.msra.mxu0 0
        %1430 = vmatprep.subr.bf16.mxu0 0
        %1431 = vmatpush1.bf16.msra.mxu0 0
        %1432 = vmatprep.subr.bf16.mxu0 0
        %1433 = vmatpush1.bf16.msra.mxu0 0
        %1434 = vmatprep.subr.bf16.mxu0 0
        %1435 = vmatpush1.bf16.msra.mxu0 0
        %1436 = vmatprep.subr.bf16.mxu0 0
        %1437 = vmatpush1.bf16.msra.mxu0 0
        %1438 = vmatprep.subr.bf16.mxu0 0
        %1439 = vmatpush1.bf16.msra.mxu0 0
        %1440 = vmatprep.mubr.bf16.mxu0 0
        %1441 = vmatmul.mubr.bf16.gmra.mrb[0].mxu0 %v1406
        %v1442 = vpop.f32.mrb[0].mxu0
        %v1443 = vadd.f32 %v1391, %v1442
        %v1444 = vpop.f32.mrb[0].mxu0
        %v1445 = vpop.f32.mrb[0].mxu0
        %v1446 = vpop.f32.mrb[0].mxu0
        %1447 = vdwg.mxu0
        %1449 = vrot.lane.b32.xlu0 %v1443, 32
        %v1450 = vpop.permute.xlu0 %1449
        %1452 = vst.msk [vmem:[%s325 + $0x8] sm:$0xff] %vm874, %v1450
        %s1453 = scalar_lea.vmem [#allocation4], 96
        %v1454 = vld [vmem:[%s1453] sm:$0xf]
        %v1455 = vld [vmem:[%s1453 + $0x4] sm:$0xf]
        %v1456 = vld [vmem:[%s1453 + $0x8] sm:$0xf]
        %v1457 = vld [vmem:[%s1453 + $0xc] sm:$0xf]
        %s1458 = scalar_lea.vmem %s4, 6
        %v1459 = vld [vmem:[%s1458] sm:$0x1]
        %v1461 = vlaneseq
        %v1462 = vshrl.u32 %v1461, 7
        %v1463 = vsub.s32 0, %v1462
        %v1464 = vrot.slane %v1459, %v1463
        %1466 = vrot.lane.b32.xlu0 %v591, 64
        %v1467 = vpop.permute.xlu0 %1466
        %v1472 = vunpack.c.l.b16 %v1454
        %v1473 = vunpack.c.l.b16 %v1455
        %v1474 = vunpack.c.l.b16 %v1456
        %v1475 = vunpack.c.l.b16 %v1457
        %v1476 = vpack.c.b16 %v1473, %v1472
        %v1477 = vpack.c.b16 %v1475, %v1474
        %v1481 = vsel %vm616, %v1467, 0
        %1483 = vmatprep.subr.bf16.mxu0 0
        %1484 = vmatpush1.bf16.msra.mxu0 %v1476
        %1485 = vmatprep.subr.bf16.mxu0 0
        %1486 = vmatpush1.bf16.msra.mxu0 %v1477
        %1487 = vmatprep.subr.bf16.mxu0 0
        %1488 = vmatpush1.bf16.msra.mxu0 0
        %1489 = vmatprep.subr.bf16.mxu0 0
        %1490 = vmatpush1.bf16.msra.mxu0 0
        %1491 = vmatprep.subr.bf16.mxu0 0
        %1492 = vmatpush1.bf16.msra.mxu0 0
        %1493 = vmatprep.subr.bf16.mxu0 0
        %1494 = vmatpush1.bf16.msra.mxu0 0
        %1495 = vmatprep.subr.bf16.mxu0 0
        %1496 = vmatpush1.bf16.msra.mxu0 0
        %1497 = vmatprep.subr.bf16.mxu0 0
        %1498 = vmatpush1.bf16.msra.mxu0 0
        %1499 = vmatprep.subr.bf16.mxu0 0
        %1500 = vmatpush1.bf16.msra.mxu0 0
        %1501 = vmatprep.subr.bf16.mxu0 0
        %1502 = vmatpush1.bf16.msra.mxu0 0
        %1503 = vmatprep.subr.bf16.mxu0 0
        %1504 = vmatpush1.bf16.msra.mxu0 0
        %1505 = vmatprep.subr.bf16.mxu0 0
        %1506 = vmatpush1.bf16.msra.mxu0 0
        %1507 = vmatprep.subr.bf16.mxu0 0
        %1508 = vmatpush1.bf16.msra.mxu0 0
        %1509 = vmatprep.subr.bf16.mxu0 0
        %1510 = vmatpush1.bf16.msra.mxu0 0
        %1511 = vmatprep.subr.bf16.mxu0 0
        %1512 = vmatpush1.bf16.msra.mxu0 0
        %1513 = vmatprep.subr.bf16.mxu0 0
        %1514 = vmatpush1.bf16.msra.mxu0 0
        %1515 = vmatprep.mubr.bf16.mxu0 0
        %1516 = vmatmul.mubr.bf16.gmra.mrb[0].mxu0 %v1481
        %v1517 = vpop.f32.mrb[0].mxu0
        %v1518 = vadd.f32 %v1464, %v1517
        %v1519 = vpop.f32.mrb[0].mxu0
        %v1520 = vpop.f32.mrb[0].mxu0
        %v1521 = vpop.f32.mrb[0].mxu0
        %1522 = vdwg.mxu0
        %v1523 = vmax.f32 %v1518, 0.0
        %v1524 = vpack.c.bf16 %v1523, %v1523
        %s1525 = scalar_lea.vmem [#allocation6], 96
        %v1526 = vld [vmem:[%s1525] sm:$0xf]
        %v1527 = vld [vmem:[%s1525 + $0x4] sm:$0xf]
        %v1528 = vld [vmem:[%s1525 + $0x8] sm:$0xf]
        %v1529 = vld [vmem:[%s1525 + $0xc] sm:$0xf]
        %s1530 = scalar_lea.vmem %s6, 6
        %v1531 = vld [vmem:[%s1530] sm:$0x1]
        %v1533 = vlaneseq
        %v1534 = vshrl.u32 %v1533, 7
        %v1535 = vsub.s32 0, %v1534
        %v1536 = vrot.slane %v1531, %v1535
        %v1542 = vunpack.c.l.b16 %v1526
        %v1543 = vunpack.c.l.b16 %v1527
        %v1544 = vunpack.c.l.b16 %v1528
        %v1545 = vunpack.c.l.b16 %v1529
        %v1546 = vpack.c.b16 %v1543, %v1542
        %v1547 = vpack.c.b16 %v1545, %v1544
        %v1551 = vsel %vm616, %v1524, 0
        %1553 = vmatprep.subr.bf16.mxu0 0
        %1554 = vmatpush1.bf16.msra.mxu0 %v1546
        %1555 = vmatprep.subr.bf16.mxu0 0
        %1556 = vmatpush1.bf16.msra.mxu0 %v1547
        %1557 = vmatprep.subr.bf16.mxu0 0
        %1558 = vmatpush1.bf16.msra.mxu0 0
        %1559 = vmatprep.subr.bf16.mxu0 0
        %1560 = vmatpush1.bf16.msra.mxu0 0
        %1561 = vmatprep.subr.bf16.mxu0 0
        %1562 = vmatpush1.bf16.msra.mxu0 0
        %1563 = vmatprep.subr.bf16.mxu0 0
        %1564 = vmatpush1.bf16.msra.mxu0 0
        %1565 = vmatprep.subr.bf16.mxu0 0
        %1566 = vmatpush1.bf16.msra.mxu0 0
        %1567 = vmatprep.subr.bf16.mxu0 0
        %1568 = vmatpush1.bf16.msra.mxu0 0
        %1569 = vmatprep.subr.bf16.mxu0 0
        %1570 = vmatpush1.bf16.msra.mxu0 0
        %1571 = vmatprep.subr.bf16.mxu0 0
        %1572 = vmatpush1.bf16.msra.mxu0 0
        %1573 = vmatprep.subr.bf16.mxu0 0
        %1574 = vmatpush1.bf16.msra.mxu0 0
        %1575 = vmatprep.subr.bf16.mxu0 0
        %1576 = vmatpush1.bf16.msra.mxu0 0
        %1577 = vmatprep.subr.bf16.mxu0 0
        %1578 = vmatpush1.bf16.msra.mxu0 0
        %1579 = vmatprep.subr.bf16.mxu0 0
        %1580 = vmatpush1.bf16.msra.mxu0 0
        %1581 = vmatprep.subr.bf16.mxu0 0
        %1582 = vmatpush1.bf16.msra.mxu0 0
        %1583 = vmatprep.subr.bf16.mxu0 0
        %1584 = vmatpush1.bf16.msra.mxu0 0
        %1585 = vmatprep.mubr.bf16.mxu0 0
        %1586 = vmatmul.mubr.bf16.gmra.mrb[0].mxu0 %v1551
        %v1587 = vpop.f32.mrb[0].mxu0
        %v1588 = vadd.f32 %v1536, %v1587
        %v1589 = vpop.f32.mrb[0].mxu0
        %v1590 = vpop.f32.mrb[0].mxu0
        %v1591 = vpop.f32.mrb[0].mxu0
        %1592 = vdwg.mxu0
        %1594 = vrot.lane.b32.xlu0 %v1588, 64
        %v1595 = vpop.permute.xlu0 %1594
        %1597 = vst.msk [vmem:[%s325 + $0x8] sm:$0xff] %vm1020, %v1595
        %s1598 = scalar_lea.vmem [#allocation4], 112
        %v1599 = vld [vmem:[%s1598] sm:$0xf]
        %v1600 = vld [vmem:[%s1598 + $0x4] sm:$0xf]
        %v1601 = vld [vmem:[%s1598 + $0x8] sm:$0xf]
        %v1602 = vld [vmem:[%s1598 + $0xc] sm:$0xf]
        %s1603 = scalar_lea.vmem %s4, 7
        %v1604 = vld [vmem:[%s1603] sm:$0x1]
        %v1606 = vlaneseq
        %v1607 = vshrl.u32 %v1606, 7
        %v1608 = vsub.s32 0, %v1607
        %v1609 = vrot.slane %v1604, %v1608
        %1611 = vrot.lane.b32.xlu0 %v591, 32
        %v1612 = vpop.permute.xlu0 %1611
        %v1617 = vunpack.c.l.b16 %v1599
        %v1618 = vunpack.c.l.b16 %v1600
        %v1619 = vunpack.c.l.b16 %v1601
        %v1620 = vunpack.c.l.b16 %v1602
        %v1621 = vpack.c.b16 %v1618, %v1617
        %v1622 = vpack.c.b16 %v1620, %v1619
        %v1626 = vsel %vm616, %v1612, 0
        %1628 = vmatprep.subr.bf16.mxu0 0
        %1629 = vmatpush1.bf16.msra.mxu0 %v1621
        %1630 = vmatprep.subr.bf16.mxu0 0
        %1631 = vmatpush1.bf16.msra.mxu0 %v1622
        %1632 = vmatprep.subr.bf16.mxu0 0
        %1633 = vmatpush1.bf16.msra.mxu0 0
        %1634 = vmatprep.subr.bf16.mxu0 0
        %1635 = vmatpush1.bf16.msra.mxu0 0
        %1636 = vmatprep.subr.bf16.mxu0 0
        %1637 = vmatpush1.bf16.msra.mxu0 0
        %1638 = vmatprep.subr.bf16.mxu0 0
        %1639 = vmatpush1.bf16.msra.mxu0 0
        %1640 = vmatprep.subr.bf16.mxu0 0
        %1641 = vmatpush1.bf16.msra.mxu0 0
        %1642 = vmatprep.subr.bf16.mxu0 0
        %1643 = vmatpush1.bf16.msra.mxu0 0
        %1644 = vmatprep.subr.bf16.mxu0 0
        %1645 = vmatpush1.bf16.msra.mxu0 0
        %1646 = vmatprep.subr.bf16.mxu0 0
        %1647 = vmatpush1.bf16.msra.mxu0 0
        %1648 = vmatprep.subr.bf16.mxu0 0
        %1649 = vmatpush1.bf16.msra.mxu0 0
        %1650 = vmatprep.subr.bf16.mxu0 0
        %1651 = vmatpush1.bf16.msra.mxu0 0
        %1652 = vmatprep.subr.bf16.mxu0 0
        %1653 = vmatpush1.bf16.msra.mxu0 0
        %1654 = vmatprep.subr.bf16.mxu0 0
        %1655 = vmatpush1.bf16.msra.mxu0 0
        %1656 = vmatprep.subr.bf16.mxu0 0
        %1657 = vmatpush1.bf16.msra.mxu0 0
        %1658 = vmatprep.subr.bf16.mxu0 0
        %1659 = vmatpush1.bf16.msra.mxu0 0
        %1660 = vmatprep.mubr.bf16.mxu0 0
        %1661 = vmatmul.mubr.bf16.gmra.mrb[0].mxu0 %v1626
        %v1662 = vpop.f32.mrb[0].mxu0
        %v1663 = vadd.f32 %v1609, %v1662
        %v1664 = vpop.f32.mrb[0].mxu0
        %v1665 = vpop.f32.mrb[0].mxu0
        %v1666 = vpop.f32.mrb[0].mxu0
        %1667 = vdwg.mxu0
        %v1668 = vmax.f32 %v1663, 0.0
        %v1669 = vpack.c.bf16 %v1668, %v1668
        %s1670 = scalar_lea.vmem [#allocation6], 112
        %v1671 = vld [vmem:[%s1670] sm:$0xf]
        %v1672 = vld [vmem:[%s1670 + $0x4] sm:$0xf]
        %v1673 = vld [vmem:[%s1670 + $0x8] sm:$0xf]
        %v1674 = vld [vmem:[%s1670 + $0xc] sm:$0xf]
        %s1675 = scalar_lea.vmem %s6, 7
        %v1676 = vld [vmem:[%s1675] sm:$0x1]
        %v1678 = vlaneseq
        %v1679 = vshrl.u32 %v1678, 7
        %v1680 = vsub.s32 0, %v1679
        %v1681 = vrot.slane %v1676, %v1680
        %v1687 = vunpack.c.l.b16 %v1671
        %v1688 = vunpack.c.l.b16 %v1672
        %v1689 = vunpack.c.l.b16 %v1673
        %v1690 = vunpack.c.l.b16 %v1674
        %v1691 = vpack.c.b16 %v1688, %v1687
        %v1692 = vpack.c.b16 %v1690, %v1689
        %v1696 = vsel %vm616, %v1669, 0
        %1698 = vmatprep.subr.bf16.mxu0 0
        %1699 = vmatpush1.bf16.msra.mxu0 %v1691
        %1700 = vmatprep.subr.bf16.mxu0 0
        %1701 = vmatpush1.bf16.msra.mxu0 %v1692
        %1702 = vmatprep.subr.bf16.mxu0 0
        %1703 = vmatpush1.bf16.msra.mxu0 0
        %1704 = vmatprep.subr.bf16.mxu0 0
        %1705 = vmatpush1.bf16.msra.mxu0 0
        %1706 = vmatprep.subr.bf16.mxu0 0
        %1707 = vmatpush1.bf16.msra.mxu0 0
        %1708 = vmatprep.subr.bf16.mxu0 0
        %1709 = vmatpush1.bf16.msra.mxu0 0
        %1710 = vmatprep.subr.bf16.mxu0 0
        %1711 = vmatpush1.bf16.msra.mxu0 0
        %1712 = vmatprep.subr.bf16.mxu0 0
        %1713 = vmatpush1.bf16.msra.mxu0 0
        %1714 = vmatprep.subr.bf16.mxu0 0
        %1715 = vmatpush1.bf16.msra.mxu0 0
        %1716 = vmatprep.subr.bf16.mxu0 0
        %1717 = vmatpush1.bf16.msra.mxu0 0
        %1718 = vmatprep.subr.bf16.mxu0 0
        %1719 = vmatpush1.bf16.msra.mxu0 0
        %1720 = vmatprep.subr.bf16.mxu0 0
        %1721 = vmatpush1.bf16.msra.mxu0 0
        %1722 = vmatprep.subr.bf16.mxu0 0
        %1723 = vmatpush1.bf16.msra.mxu0 0
        %1724 = vmatprep.subr.bf16.mxu0 0
        %1725 = vmatpush1.bf16.msra.mxu0 0
        %1726 = vmatprep.subr.bf16.mxu0 0
        %1727 = vmatpush1.bf16.msra.mxu0 0
        %1728 = vmatprep.subr.bf16.mxu0 0
        %1729 = vmatpush1.bf16.msra.mxu0 0
        %1730 = vmatprep.mubr.bf16.mxu0 0
        %1731 = vmatmul.mubr.bf16.gmra.mrb[0].mxu0 %v1696
        %v1732 = vpop.f32.mrb[0].mxu0
        %v1733 = vadd.f32 %v1681, %v1732
        %v1734 = vpop.f32.mrb[0].mxu0
        %v1735 = vpop.f32.mrb[0].mxu0
        %v1736 = vpop.f32.mrb[0].mxu0
        %1737 = vdwg.mxu0
        %1739 = vrot.lane.b32.xlu0 %v1733, 96
        %v1740 = vpop.permute.xlu0 %1739
        %1742 = vst.msk [vmem:[%s325 + $0x8] sm:$0xff] %vm1166, %v1740
        %s1743 = scalar_lea.vmem [#allocation4], 128
        %v1744 = vld [vmem:[%s1743] sm:$0xf]
        %v1745 = vld [vmem:[%s1743 + $0x4] sm:$0xf]
        %v1746 = vld [vmem:[%s1743 + $0x8] sm:$0xf]
        %v1747 = vld [vmem:[%s1743 + $0xc] sm:$0xf]
        %s1748 = scalar_lea.vmem %s4, 8
        %v1749 = vld [vmem:[%s1748] sm:$0x1]
        %v1751 = vlaneseq
        %v1752 = vshrl.u32 %v1751, 7
        %v1753 = vsub.s32 0, %v1752
        %v1754 = vrot.slane %v1749, %v1753
        %v1760 = vunpack.c.l.b16 %v1744
        %v1761 = vunpack.c.l.b16 %v1745
        %v1762 = vunpack.c.l.b16 %v1746
        %v1763 = vunpack.c.l.b16 %v1747
        %v1764 = vpack.c.b16 %v1761, %v1760
        %v1765 = vpack.c.b16 %v1763, %v1762
        %v1769 = vsel %vm616, %v592, 0
        %1771 = vmatprep.subr.bf16.mxu0 0
        %1772 = vmatpush1.bf16.msra.mxu0 %v1764
        %1773 = vmatprep.subr.bf16.mxu0 0
        %1774 = vmatpush1.bf16.msra.mxu0 %v1765
        %1775 = vmatprep.subr.bf16.mxu0 0
        %1776 = vmatpush1.bf16.msra.mxu0 0
        %1777 = vmatprep.subr.bf16.mxu0 0
        %1778 = vmatpush1.bf16.msra.mxu0 0
        %1779 = vmatprep.subr.bf16.mxu0 0
        %1780 = vmatpush1.bf16.msra.mxu0 0
        %1781 = vmatprep.subr.bf16.mxu0 0
        %1782 = vmatpush1.bf16.msra.mxu0 0
        %1783 = vmatprep.subr.bf16.mxu0 0
        %1784 = vmatpush1.bf16.msra.mxu0 0
        %1785 = vmatprep.subr.bf16.mxu0 0
        %1786 = vmatpush1.bf16.msra.mxu0 0
        %1787 = vmatprep.subr.bf16.mxu0 0
        %1788 = vmatpush1.bf16.msra.mxu0 0
        %1789 = vmatprep.subr.bf16.mxu0 0
        %1790 = vmatpush1.bf16.msra.mxu0 0
        %1791 = vmatprep.subr.bf16.mxu0 0
        %1792 = vmatpush1.bf16.msra.mxu0 0
        %1793 = vmatprep.subr.bf16.mxu0 0
        %1794 = vmatpush1.bf16.msra.mxu0 0
        %1795 = vmatprep.subr.bf16.mxu0 0
        %1796 = vmatpush1.bf16.msra.mxu0 0
        %1797 = vmatprep.subr.bf16.mxu0 0
        %1798 = vmatpush1.bf16.msra.mxu0 0
        %1799 = vmatprep.subr.bf16.mxu0 0
        %1800 = vmatpush1.bf16.msra.mxu0 0
        %1801 = vmatprep.subr.bf16.mxu0 0
        %1802 = vmatpush1.bf16.msra.mxu0 0
        %1803 = vmatprep.mubr.bf16.mxu0 0
        %1804 = vmatmul.mubr.bf16.gmra.mrb[0].mxu0 %v1769
        %v1805 = vpop.f32.mrb[0].mxu0
        %v1806 = vadd.f32 %v1754, %v1805
        %v1807 = vpop.f32.mrb[0].mxu0
        %v1808 = vpop.f32.mrb[0].mxu0
        %v1809 = vpop.f32.mrb[0].mxu0
        %1810 = vdwg.mxu0
        %v1811 = vmax.f32 %v1806, 0.0
        %v1812 = vpack.c.bf16 %v1811, %v1811
        %s1813 = scalar_lea.vmem [#allocation6], 128
        %v1814 = vld [vmem:[%s1813] sm:$0xf]
        %v1815 = vld [vmem:[%s1813 + $0x4] sm:$0xf]
        %v1816 = vld [vmem:[%s1813 + $0x8] sm:$0xf]
        %v1817 = vld [vmem:[%s1813 + $0xc] sm:$0xf]
        %s1818 = scalar_lea.vmem %s6, 8
        %v1819 = vld [vmem:[%s1818] sm:$0x1]
        %v1821 = vlaneseq
        %v1822 = vshrl.u32 %v1821, 7
        %v1823 = vsub.s32 0, %v1822
        %v1824 = vrot.slane %v1819, %v1823
        %v1830 = vunpack.c.l.b16 %v1814
        %v1831 = vunpack.c.l.b16 %v1815
        %v1832 = vunpack.c.l.b16 %v1816
        %v1833 = vunpack.c.l.b16 %v1817
        %v1834 = vpack.c.b16 %v1831, %v1830
        %v1835 = vpack.c.b16 %v1833, %v1832
        %v1839 = vsel %vm616, %v1812, 0
        %1841 = vmatprep.subr.bf16.mxu0 0
        %1842 = vmatpush1.bf16.msra.mxu0 %v1834
        %1843 = vmatprep.subr.bf16.mxu0 0
        %1844 = vmatpush1.bf16.msra.mxu0 %v1835
        %1845 = vmatprep.subr.bf16.mxu0 0
        %1846 = vmatpush1.bf16.msra.mxu0 0
        %1847 = vmatprep.subr.bf16.mxu0 0
        %1848 = vmatpush1.bf16.msra.mxu0 0
        %1849 = vmatprep.subr.bf16.mxu0 0
        %1850 = vmatpush1.bf16.msra.mxu0 0
        %1851 = vmatprep.subr.bf16.mxu0 0
        %1852 = vmatpush1.bf16.msra.mxu0 0
        %1853 = vmatprep.subr.bf16.mxu0 0
        %1854 = vmatpush1.bf16.msra.mxu0 0
        %1855 = vmatprep.subr.bf16.mxu0 0
        %1856 = vmatpush1.bf16.msra.mxu0 0
        %1857 = vmatprep.subr.bf16.mxu0 0
        %1858 = vmatpush1.bf16.msra.mxu0 0
        %1859 = vmatprep.subr.bf16.mxu0 0
        %1860 = vmatpush1.bf16.msra.mxu0 0
        %1861 = vmatprep.subr.bf16.mxu0 0
        %1862 = vmatpush1.bf16.msra.mxu0 0
        %1863 = vmatprep.subr.bf16.mxu0 0
        %1864 = vmatpush1.bf16.msra.mxu0 0
        %1865 = vmatprep.subr.bf16.mxu0 0
        %1866 = vmatpush1.bf16.msra.mxu0 0
        %1867 = vmatprep.subr.bf16.mxu0 0
        %1868 = vmatpush1.bf16.msra.mxu0 0
        %1869 = vmatprep.subr.bf16.mxu0 0
        %1870 = vmatpush1.bf16.msra.mxu0 0
        %1871 = vmatprep.subr.bf16.mxu0 0
        %1872 = vmatpush1.bf16.msra.mxu0 0
        %1873 = vmatprep.mubr.bf16.mxu0 0
        %1874 = vmatmul.mubr.bf16.gmra.mrb[0].mxu0 %v1839
        %v1875 = vpop.f32.mrb[0].mxu0
        %v1876 = vadd.f32 %v1824, %v1875
        %v1877 = vpop.f32.mrb[0].mxu0
        %v1878 = vpop.f32.mrb[0].mxu0
        %v1879 = vpop.f32.mrb[0].mxu0
        %1880 = vdwg.mxu0
        %1881 = vst.msk [vmem:[%s325 + $0x10] sm:$0xff] %vm616, %v1876
        %s1882 = scalar_lea.vmem [#allocation4], 144
        %v1883 = vld [vmem:[%s1882] sm:$0xf]
        %v1884 = vld [vmem:[%s1882 + $0x4] sm:$0xf]
        %v1885 = vld [vmem:[%s1882 + $0x8] sm:$0xf]
        %v1886 = vld [vmem:[%s1882 + $0xc] sm:$0xf]
        %s1887 = scalar_lea.vmem %s4, 9
        %v1888 = vld [vmem:[%s1887] sm:$0x1]
        %v1890 = vlaneseq
        %v1891 = vshrl.u32 %v1890, 7
        %v1892 = vsub.s32 0, %v1891
        %v1893 = vrot.slane %v1888, %v1892
        %1896 = vrot.lane.b32.xlu0 %v592, 96
        %v1897 = vpop.permute.xlu0 %1896
        %v1902 = vunpack.c.l.b16 %v1883
        %v1903 = vunpack.c.l.b16 %v1884
        %v1904 = vunpack.c.l.b16 %v1885
        %v1905 = vunpack.c.l.b16 %v1886
        %v1906 = vpack.c.b16 %v1903, %v1902
        %v1907 = vpack.c.b16 %v1905, %v1904
        %v1911 = vsel %vm616, %v1897, 0
        %1913 = vmatprep.subr.bf16.mxu0 0
        %1914 = vmatpush1.bf16.msra.mxu0 %v1906
        %1915 = vmatprep.subr.bf16.mxu0 0
        %1916 = vmatpush1.bf16.msra.mxu0 %v1907
        %1917 = vmatprep.subr.bf16.mxu0 0
        %1918 = vmatpush1.bf16.msra.mxu0 0
        %1919 = vmatprep.subr.bf16.mxu0 0
        %1920 = vmatpush1.bf16.msra.mxu0 0
        %1921 = vmatprep.subr.bf16.mxu0 0
        %1922 = vmatpush1.bf16.msra.mxu0 0
        %1923 = vmatprep.subr.bf16.mxu0 0
        %1924 = vmatpush1.bf16.msra.mxu0 0
        %1925 = vmatprep.subr.bf16.mxu0 0
        %1926 = vmatpush1.bf16.msra.mxu0 0
        %1927 = vmatprep.subr.bf16.mxu0 0
        %1928 = vmatpush1.bf16.msra.mxu0 0
        %1929 = vmatprep.subr.bf16.mxu0 0
        %1930 = vmatpush1.bf16.msra.mxu0 0
        %1931 = vmatprep.subr.bf16.mxu0 0
        %1932 = vmatpush1.bf16.msra.mxu0 0
        %1933 = vmatprep.subr.bf16.mxu0 0
        %1934 = vmatpush1.bf16.msra.mxu0 0
        %1935 = vmatprep.subr.bf16.mxu0 0
        %1936 = vmatpush1.bf16.msra.mxu0 0
        %1937 = vmatprep.subr.bf16.mxu0 0
        %1938 = vmatpush1.bf16.msra.mxu0 0
        %1939 = vmatprep.subr.bf16.mxu0 0
        %1940 = vmatpush1.bf16.msra.mxu0 0
        %1941 = vmatprep.subr.bf16.mxu0 0
        %1942 = vmatpush1.bf16.msra.mxu0 0
        %1943 = vmatprep.subr.bf16.mxu0 0
        %1944 = vmatpush1.bf16.msra.mxu0 0
        %1945 = vmatprep.mubr.bf16.mxu0 0
        %1946 = vmatmul.mubr.bf16.gmra.mrb[0].mxu0 %v1911
        %v1947 = vpop.f32.mrb[0].mxu0
        %v1948 = vadd.f32 %v1893, %v1947
        %v1949 = vpop.f32.mrb[0].mxu0
        %v1950 = vpop.f32.mrb[0].mxu0
        %v1951 = vpop.f32.mrb[0].mxu0
        %1952 = vdwg.mxu0
        %v1953 = vmax.f32 %v1948, 0.0
        %v1954 = vpack.c.bf16 %v1953, %v1953
        %s1955 = scalar_lea.vmem [#allocation6], 144
        %v1956 = vld [vmem:[%s1955] sm:$0xf]
        %v1957 = vld [vmem:[%s1955 + $0x4] sm:$0xf]
        %v1958 = vld [vmem:[%s1955 + $0x8] sm:$0xf]
        %v1959 = vld [vmem:[%s1955 + $0xc] sm:$0xf]
        %s1960 = scalar_lea.vmem %s6, 9
        %v1961 = vld [vmem:[%s1960] sm:$0x1]
        %v1963 = vlaneseq
        %v1964 = vshrl.u32 %v1963, 7
        %v1965 = vsub.s32 0, %v1964
        %v1966 = vrot.slane %v1961, %v1965
        %v1972 = vunpack.c.l.b16 %v1956
        %v1973 = vunpack.c.l.b16 %v1957
        %v1974 = vunpack.c.l.b16 %v1958
        %v1975 = vunpack.c.l.b16 %v1959
        %v1976 = vpack.c.b16 %v1973, %v1972
        %v1977 = vpack.c.b16 %v1975, %v1974
        %v1981 = vsel %vm616, %v1954, 0
        %1983 = vmatprep.subr.bf16.mxu0 0
        %1984 = vmatpush1.bf16.msra.mxu0 %v1976
        %1985 = vmatprep.subr.bf16.mxu0 0
        %1986 = vmatpush1.bf16.msra.mxu0 %v1977
        %1987 = vmatprep.subr.bf16.mxu0 0
        %1988 = vmatpush1.bf16.msra.mxu0 0
        %1989 = vmatprep.subr.bf16.mxu0 0
        %1990 = vmatpush1.bf16.msra.mxu0 0
        %1991 = vmatprep.subr.bf16.mxu0 0
        %1992 = vmatpush1.bf16.msra.mxu0 0
        %1993 = vmatprep.subr.bf16.mxu0 0
        %1994 = vmatpush1.bf16.msra.mxu0 0
        %1995 = vmatprep.subr.bf16.mxu0 0
        %1996 = vmatpush1.bf16.msra.mxu0 0
        %1997 = vmatprep.subr.bf16.mxu0 0
        %1998 = vmatpush1.bf16.msra.mxu0 0
        %1999 = vmatprep.subr.bf16.mxu0 0
        %2000 = vmatpush1.bf16.msra.mxu0 0
        %2001 = vmatprep.subr.bf16.mxu0 0
        %2002 = vmatpush1.bf16.msra.mxu0 0
        %2003 = vmatprep.subr.bf16.mxu0 0
        %2004 = vmatpush1.bf16.msra.mxu0 0
        %2005 = vmatprep.subr.bf16.mxu0 0
        %2006 = vmatpush1.bf16.msra.mxu0 0
        %2007 = vmatprep.subr.bf16.mxu0 0
        %2008 = vmatpush1.bf16.msra.mxu0 0
        %2009 = vmatprep.subr.bf16.mxu0 0
        %2010 = vmatpush1.bf16.msra.mxu0 0
        %2011 = vmatprep.subr.bf16.mxu0 0
        %2012 = vmatpush1.bf16.msra.mxu0 0
        %2013 = vmatprep.subr.bf16.mxu0 0
        %2014 = vmatpush1.bf16.msra.mxu0 0
        %2015 = vmatprep.mubr.bf16.mxu0 0
        %2016 = vmatmul.mubr.bf16.gmra.mrb[0].mxu0 %v1981
        %v2017 = vpop.f32.mrb[0].mxu0
        %v2018 = vadd.f32 %v1966, %v2017
        %v2019 = vpop.f32.mrb[0].mxu0
        %v2020 = vpop.f32.mrb[0].mxu0
        %v2021 = vpop.f32.mrb[0].mxu0
        %2022 = vdwg.mxu0
        %2024 = vrot.lane.b32.xlu0 %v2018, 32
        %v2025 = vpop.permute.xlu0 %2024
        %2027 = vst.msk [vmem:[%s325 + $0x10] sm:$0xff] %vm874, %v2025
        %s2028 = scalar_lea.vmem [#allocation4], 160
        %v2029 = vld [vmem:[%s2028] sm:$0xf]
        %v2030 = vld [vmem:[%s2028 + $0x4] sm:$0xf]
        %v2031 = vld [vmem:[%s2028 + $0x8] sm:$0xf]
        %v2032 = vld [vmem:[%s2028 + $0xc] sm:$0xf]
        %s2033 = scalar_lea.vmem %s4, 10
        %v2034 = vld [vmem:[%s2033] sm:$0x1]
        %v2036 = vlaneseq
        %v2037 = vshrl.u32 %v2036, 7
        %v2038 = vsub.s32 0, %v2037
        %v2039 = vrot.slane %v2034, %v2038
        %2041 = vrot.lane.b32.xlu0 %v592, 64
        %v2042 = vpop.permute.xlu0 %2041
        %v2047 = vunpack.c.l.b16 %v2029
        %v2048 = vunpack.c.l.b16 %v2030
        %v2049 = vunpack.c.l.b16 %v2031
        %v2050 = vunpack.c.l.b16 %v2032
        %v2051 = vpack.c.b16 %v2048, %v2047
        %v2052 = vpack.c.b16 %v2050, %v2049
        %v2056 = vsel %vm616, %v2042, 0
        %2058 = vmatprep.subr.bf16.mxu0 0
        %2059 = vmatpush1.bf16.msra.mxu0 %v2051
        %2060 = vmatprep.subr.bf16.mxu0 0
        %2061 = vmatpush1.bf16.msra.mxu0 %v2052
        %2062 = vmatprep.subr.bf16.mxu0 0
        %2063 = vmatpush1.bf16.msra.mxu0 0
        %2064 = vmatprep.subr.bf16.mxu0 0
        %2065 = vmatpush1.bf16.msra.mxu0 0
        %2066 = vmatprep.subr.bf16.mxu0 0
        %2067 = vmatpush1.bf16.msra.mxu0 0
        %2068 = vmatprep.subr.bf16.mxu0 0
        %2069 = vmatpush1.bf16.msra.mxu0 0
        %2070 = vmatprep.subr.bf16.mxu0 0
        %2071 = vmatpush1.bf16.msra.mxu0 0
        %2072 = vmatprep.subr.bf16.mxu0 0
        %2073 = vmatpush1.bf16.msra.mxu0 0
        %2074 = vmatprep.subr.bf16.mxu0 0
        %2075 = vmatpush1.bf16.msra.mxu0 0
        %2076 = vmatprep.subr.bf16.mxu0 0
        %2077 = vmatpush1.bf16.msra.mxu0 0
        %2078 = vmatprep.subr.bf16.mxu0 0
        %2079 = vmatpush1.bf16.msra.mxu0 0
        %2080 = vmatprep.subr.bf16.mxu0 0
        %2081 = vmatpush1.bf16.msra.mxu0 0
        %2082 = vmatprep.subr.bf16.mxu0 0
        %2083 = vmatpush1.bf16.msra.mxu0 0
        %2084 = vmatprep.subr.bf16.mxu0 0
        %2085 = vmatpush1.bf16.msra.mxu0 0
        %2086 = vmatprep.subr.bf16.mxu0 0
        %2087 = vmatpush1.bf16.msra.mxu0 0
        %2088 = vmatprep.subr.bf16.mxu0 0
        %2089 = vmatpush1.bf16.msra.mxu0 0
        %2090 = vmatprep.mubr.bf16.mxu0 0
        %2091 = vmatmul.mubr.bf16.gmra.mrb[0].mxu0 %v2056
        %v2092 = vpop.f32.mrb[0].mxu0
        %v2093 = vadd.f32 %v2039, %v2092
        %v2094 = vpop.f32.mrb[0].mxu0
        %v2095 = vpop.f32.mrb[0].mxu0
        %v2096 = vpop.f32.mrb[0].mxu0
        %2097 = vdwg.mxu0
        %v2098 = vmax.f32 %v2093, 0.0
        %v2099 = vpack.c.bf16 %v2098, %v2098
        %s2100 = scalar_lea.vmem [#allocation6], 160
        %v2101 = vld [vmem:[%s2100] sm:$0xf]
        %v2102 = vld [vmem:[%s2100 + $0x4] sm:$0xf]
        %v2103 = vld [vmem:[%s2100 + $0x8] sm:$0xf]
        %v2104 = vld [vmem:[%s2100 + $0xc] sm:$0xf]
        %s2105 = scalar_lea.vmem %s6, 10
        %v2106 = vld [vmem:[%s2105] sm:$0x1]
        %v2108 = vlaneseq
        %v2109 = vshrl.u32 %v2108, 7
        %v2110 = vsub.s32 0, %v2109
        %v2111 = vrot.slane %v2106, %v2110
        %v2117 = vunpack.c.l.b16 %v2101
        %v2118 = vunpack.c.l.b16 %v2102
        %v2119 = vunpack.c.l.b16 %v2103
        %v2120 = vunpack.c.l.b16 %v2104
        %v2121 = vpack.c.b16 %v2118, %v2117
        %v2122 = vpack.c.b16 %v2120, %v2119
        %v2126 = vsel %vm616, %v2099, 0
        %2128 = vmatprep.subr.bf16.mxu0 0
        %2129 = vmatpush1.bf16.msra.mxu0 %v2121
        %2130 = vmatprep.subr.bf16.mxu0 0
        %2131 = vmatpush1.bf16.msra.mxu0 %v2122
        %2132 = vmatprep.subr.bf16.mxu0 0
        %2133 = vmatpush1.bf16.msra.mxu0 0
        %2134 = vmatprep.subr.bf16.mxu0 0
        %2135 = vmatpush1.bf16.msra.mxu0 0
        %2136 = vmatprep.subr.bf16.mxu0 0
        %2137 = vmatpush1.bf16.msra.mxu0 0
        %2138 = vmatprep.subr.bf16.mxu0 0
        %2139 = vmatpush1.bf16.msra.mxu0 0
        %2140 = vmatprep.subr.bf16.mxu0 0
        %2141 = vmatpush1.bf16.msra.mxu0 0
        %2142 = vmatprep.subr.bf16.mxu0 0
        %2143 = vmatpush1.bf16.msra.mxu0 0
        %2144 = vmatprep.subr.bf16.mxu0 0
        %2145 = vmatpush1.bf16.msra.mxu0 0
        %2146 = vmatprep.subr.bf16.mxu0 0
        %2147 = vmatpush1.bf16.msra.mxu0 0
        %2148 = vmatprep.subr.bf16.mxu0 0
        %2149 = vmatpush1.bf16.msra.mxu0 0
        %2150 = vmatprep.subr.bf16.mxu0 0
        %2151 = vmatpush1.bf16.msra.mxu0 0
        %2152 = vmatprep.subr.bf16.mxu0 0
        %2153 = vmatpush1.bf16.msra.mxu0 0
        %2154 = vmatprep.subr.bf16.mxu0 0
        %2155 = vmatpush1.bf16.msra.mxu0 0
        %2156 = vmatprep.subr.bf16.mxu0 0
        %2157 = vmatpush1.bf16.msra.mxu0 0
        %2158 = vmatprep.subr.bf16.mxu0 0
        %2159 = vmatpush1.bf16.msra.mxu0 0
        %2160 = vmatprep.mubr.bf16.mxu0 0
        %2161 = vmatmul.mubr.bf16.gmra.mrb[0].mxu0 %v2126
        %v2162 = vpop.f32.mrb[0].mxu0
        %v2163 = vadd.f32 %v2111, %v2162
        %v2164 = vpop.f32.mrb[0].mxu0
        %v2165 = vpop.f32.mrb[0].mxu0
        %v2166 = vpop.f32.mrb[0].mxu0
        %2167 = vdwg.mxu0
        %2169 = vrot.lane.b32.xlu0 %v2163, 64
        %v2170 = vpop.permute.xlu0 %2169
        %2172 = vst.msk [vmem:[%s325 + $0x10] sm:$0xff] %vm1020, %v2170
        %s2173 = scalar_lea.vmem [#allocation4], 176
        %v2174 = vld [vmem:[%s2173] sm:$0xf]
        %v2175 = vld [vmem:[%s2173 + $0x4] sm:$0xf]
        %v2176 = vld [vmem:[%s2173 + $0x8] sm:$0xf]
        %v2177 = vld [vmem:[%s2173 + $0xc] sm:$0xf]
        %s2178 = scalar_lea.vmem %s4, 11
        %v2179 = vld [vmem:[%s2178] sm:$0x1]
        %v2181 = vlaneseq
        %v2182 = vshrl.u32 %v2181, 7
        %v2183 = vsub.s32 0, %v2182
        %v2184 = vrot.slane %v2179, %v2183
        %2186 = vrot.lane.b32.xlu0 %v592, 32
        %v2187 = vpop.permute.xlu0 %2186
        %v2192 = vunpack.c.l.b16 %v2174
        %v2193 = vunpack.c.l.b16 %v2175
        %v2194 = vunpack.c.l.b16 %v2176
        %v2195 = vunpack.c.l.b16 %v2177
        %v2196 = vpack.c.b16 %v2193, %v2192
        %v2197 = vpack.c.b16 %v2195, %v2194
        %v2201 = vsel %vm616, %v2187, 0
        %2203 = vmatprep.subr.bf16.mxu0 0
        %2204 = vmatpush1.bf16.msra.mxu0 %v2196
        %2205 = vmatprep.subr.bf16.mxu0 0
        %2206 = vmatpush1.bf16.msra.mxu0 %v2197
        %2207 = vmatprep.subr.bf16.mxu0 0
        %2208 = vmatpush1.bf16.msra.mxu0 0
        %2209 = vmatprep.subr.bf16.mxu0 0
        %2210 = vmatpush1.bf16.msra.mxu0 0
        %2211 = vmatprep.subr.bf16.mxu0 0
        %2212 = vmatpush1.bf16.msra.mxu0 0
        %2213 = vmatprep.subr.bf16.mxu0 0
        %2214 = vmatpush1.bf16.msra.mxu0 0
        %2215 = vmatprep.subr.bf16.mxu0 0
        %2216 = vmatpush1.bf16.msra.mxu0 0
        %2217 = vmatprep.subr.bf16.mxu0 0
        %2218 = vmatpush1.bf16.msra.mxu0 0
        %2219 = vmatprep.subr.bf16.mxu0 0
        %2220 = vmatpush1.bf16.msra.mxu0 0
        %2221 = vmatprep.subr.bf16.mxu0 0
        %2222 = vmatpush1.bf16.msra.mxu0 0
        %2223 = vmatprep.subr.bf16.mxu0 0
        %2224 = vmatpush1.bf16.msra.mxu0 0
        %2225 = vmatprep.subr.bf16.mxu0 0
        %2226 = vmatpush1.bf16.msra.mxu0 0
        %2227 = vmatprep.subr.bf16.mxu0 0
        %2228 = vmatpush1.bf16.msra.mxu0 0
        %2229 = vmatprep.subr.bf16.mxu0 0
        %2230 = vmatpush1.bf16.msra.mxu0 0
        %2231 = vmatprep.subr.bf16.mxu0 0
        %2232 = vmatpush1.bf16.msra.mxu0 0
        %2233 = vmatprep.subr.bf16.mxu0 0
        %2234 = vmatpush1.bf16.msra.mxu0 0
        %2235 = vmatprep.mubr.bf16.mxu0 0
        %2236 = vmatmul.mubr.bf16.gmra.mrb[0].mxu0 %v2201
        %v2237 = vpop.f32.mrb[0].mxu0
        %v2238 = vadd.f32 %v2184, %v2237
        %v2239 = vpop.f32.mrb[0].mxu0
        %v2240 = vpop.f32.mrb[0].mxu0
        %v2241 = vpop.f32.mrb[0].mxu0
        %2242 = vdwg.mxu0
        %v2243 = vmax.f32 %v2238, 0.0
        %v2244 = vpack.c.bf16 %v2243, %v2243
        %s2245 = scalar_lea.vmem [#allocation6], 176
        %v2246 = vld [vmem:[%s2245] sm:$0xf]
        %v2247 = vld [vmem:[%s2245 + $0x4] sm:$0xf]
        %v2248 = vld [vmem:[%s2245 + $0x8] sm:$0xf]
        %v2249 = vld [vmem:[%s2245 + $0xc] sm:$0xf]
        %s2250 = scalar_lea.vmem %s6, 11
        %v2251 = vld [vmem:[%s2250] sm:$0x1]
        %v2253 = vlaneseq
        %v2254 = vshrl.u32 %v2253, 7
        %v2255 = vsub.s32 0, %v2254
        %v2256 = vrot.slane %v2251, %v2255
        %v2262 = vunpack.c.l.b16 %v2246
        %v2263 = vunpack.c.l.b16 %v2247
        %v2264 = vunpack.c.l.b16 %v2248
        %v2265 = vunpack.c.l.b16 %v2249
        %v2266 = vpack.c.b16 %v2263, %v2262
        %v2267 = vpack.c.b16 %v2265, %v2264
        %v2271 = vsel %vm616, %v2244, 0
        %2273 = vmatprep.subr.bf16.mxu0 0
        %2274 = vmatpush1.bf16.msra.mxu0 %v2266
        %2275 = vmatprep.subr.bf16.mxu0 0
        %2276 = vmatpush1.bf16.msra.mxu0 %v2267
        %2277 = vmatprep.subr.bf16.mxu0 0
        %2278 = vmatpush1.bf16.msra.mxu0 0
        %2279 = vmatprep.subr.bf16.mxu0 0
        %2280 = vmatpush1.bf16.msra.mxu0 0
        %2281 = vmatprep.subr.bf16.mxu0 0
        %2282 = vmatpush1.bf16.msra.mxu0 0
        %2283 = vmatprep.subr.bf16.mxu0 0
        %2284 = vmatpush1.bf16.msra.mxu0 0
        %2285 = vmatprep.subr.bf16.mxu0 0
        %2286 = vmatpush1.bf16.msra.mxu0 0
        %2287 = vmatprep.subr.bf16.mxu0 0
        %2288 = vmatpush1.bf16.msra.mxu0 0
        %2289 = vmatprep.subr.bf16.mxu0 0
        %2290 = vmatpush1.bf16.msra.mxu0 0
        %2291 = vmatprep.subr.bf16.mxu0 0
        %2292 = vmatpush1.bf16.msra.mxu0 0
        %2293 = vmatprep.subr.bf16.mxu0 0
        %2294 = vmatpush1.bf16.msra.mxu0 0
        %2295 = vmatprep.subr.bf16.mxu0 0
        %2296 = vmatpush1.bf16.msra.mxu0 0
        %2297 = vmatprep.subr.bf16.mxu0 0
        %2298 = vmatpush1.bf16.msra.mxu0 0
        %2299 = vmatprep.subr.bf16.mxu0 0
        %2300 = vmatpush1.bf16.msra.mxu0 0
        %2301 = vmatprep.subr.bf16.mxu0 0
        %2302 = vmatpush1.bf16.msra.mxu0 0
        %2303 = vmatprep.subr.bf16.mxu0 0
        %2304 = vmatpush1.bf16.msra.mxu0 0
        %2305 = vmatprep.mubr.bf16.mxu0 0
        %2306 = vmatmul.mubr.bf16.gmra.mrb[0].mxu0 %v2271
        %v2307 = vpop.f32.mrb[0].mxu0
        %v2308 = vadd.f32 %v2256, %v2307
        %v2309 = vpop.f32.mrb[0].mxu0
        %v2310 = vpop.f32.mrb[0].mxu0
        %v2311 = vpop.f32.mrb[0].mxu0
        %2312 = vdwg.mxu0
        %2314 = vrot.lane.b32.xlu0 %v2308, 96
        %v2315 = vpop.permute.xlu0 %2314
        %2317 = vst.msk [vmem:[%s325 + $0x10] sm:$0xff] %vm1166, %v2315
        %p2318 = scmp.lt.s32.totalorder %s20, 1
        %s2319 = scalar_select %p2318, %s20, 1
        %s2320 = smul.addr %s2319, 3
        %s2321 = smul.addr %s2320, 8
        %s2322 = scalar_lea.vmem %s7, %s2321
        // Predicated region
        $region61: #{vima_action_decoder_forward.1} parent=47 // pred_check
          %p2323 = pneg %p190
        $region62: #{vima_action_decoder_forward.1} parent=47 // pred_check_branch
          %2325 = sbr.rel (%p2323) target = $region64
        $region63: #{vima_action_decoder_forward.1} parent=47 // pred_region
          _
        $region64: #{vima_action_decoder_forward.1} parent=47 // pred_fallthru
          _
      $region48: #{vima_action_decoder_forward.1} parent=5 // pred_fallthru
        _
      %p2326 = scmp.le.s32.totalorder 2, %s15
      // Predicated region
      $region65: #{vima_action_decoder_forward.1} parent=5 // pred_check
        %p2327 = pneg %p2326
      $region66: #{vima_action_decoder_forward.1} parent=5 // pred_check_branch
        %2329 = sbr.rel (%p2327) target = $region68
      $region67: #{vima_action_decoder_forward.1} parent=5 // pred_region
        %s2330 = ssub.s32 %s15, 2
        // Predicated region
        $region69: #{vima_action_decoder_forward.1} parent=67 // pred_check
          %p2331 = pneg %p196
        $region70: #{vima_action_decoder_forward.1} parent=67 // pred_check_branch
          %2333 = sbr.rel (%p2331) target = $region72
        $region71: #{vima_action_decoder_forward.1} parent=67 // pred_region
          %p2334 = scmp.lt.s32.totalorder %s21, 1
          %s2335 = scalar_select %p2334, %s21, 1
          %s2336 = smul.addr %s2335, 3
          %s2337 = smul.addr %s2336, 8
          %s2338 = scalar_lea.vmem %s7, %s2337
        $region72: #{vima_action_decoder_forward.1} parent=67 // pred_fallthru
          _
      $region68: #{vima_action_decoder_forward.1} parent=5 // pred_fallthru
        _
    $region6: #{vima_action_decoder_forward.1} parent=1 // loop_footer
      %s19 = sadd.s32 1, %s15
    $region7: #{vima_action_decoder_forward.1} parent=1 // loop_footer_branch
      %14 = sbr.rel target = $region3
    $region8: #{vima_action_decoder_forward.1} parent=1 // loop_exit
      _
    %2339 = vsyncpa [#allocation3], 1
    %s2340 = scalar_lea.sflag [#allocation3], 1
    %2341 = vsyncpa %s2340, 1
    %2342 = vsyncpa [#allocation5], 1

</llo_original>
